<compile_context>
chip_gen: v7x
topology: tpu7x:2x2x1
jax: 0.10.0
libtpu: 0.0.40
codegen_flags: <defaults>
</compile_context>

<pallas_src>
import functools

import jax
import jax.numpy as jnp
from jax.experimental import pallas as pl
from jax.experimental.pallas import tpu as pltpu


def _bridge_kernel(x_ref, mask_ref, w1_ref, p1_ref, w2_ref, p2_ref, o_ref, *,
                   offsets, negative_slope):
    # x_ref:    (C_in,  L)   flattened zero-padded image (one batch element)
    # mask_ref: (1,     L)   1.0 at valid (interior) flat positions, else 0.0
    # w1_ref:   (9, C_mid, C_in)   per-tap conv1 weights
    # p1_ref:   (3, C_mid, 1)      [bias, bn_scale, bn_shift] for layer 1
    # w2_ref:   (9, C_out, C_mid)
    # p2_ref:   (3, C_out, 1)
    # o_ref:    (C_out, L)
    L = x_ref.shape[-1]

    def shift(v, off):
        # returns y with y[:, q] = v[:, (q + off) mod L]; valid positions never wrap.
        sh = (-off) % L
        if sh == 0:
            return v
        return pltpu.roll(v, shift=sh, axis=1)

    def leaky(v):
        return jnp.where(v >= 0, v, negative_slope * v)

    x = x_ref[...]
    mask = mask_ref[...]                       # (1, L), f32

    # ---- conv1: 9 shifted channel-matmuls, f32 accumulate ----
    acc1 = jnp.zeros((w1_ref.shape[1], L), jnp.float32)
    for t, off in enumerate(offsets):
        acc1 = acc1 + jnp.dot(w1_ref[t], shift(x, off),
                              preferred_element_type=jnp.float32)
    h = leaky(acc1 + p1_ref[0])                # bias + LeakyReLU
    h = (h * p1_ref[1] + p1_ref[2]) * mask     # BN1 affine; zero the padding ring
    h = h.astype(x_ref.dtype)                  # feed MXU in the input compute dtype

    # ---- conv2 ----
    acc2 = jnp.zeros((w2_ref.shape[1], L), jnp.float32)
    for t, off in enumerate(offsets):
        acc2 = acc2 + jnp.dot(w2_ref[t], shift(h, off),
                              preferred_element_type=jnp.float32)
    y = leaky(acc2 + p2_ref[0])
    y = y * p2_ref[1] + p2_ref[2]              # BN2 affine
    o_ref[...] = y.astype(o_ref.dtype)


def _bn_affine(gamma, beta, mean, var, eps):
    s = gamma / jnp.sqrt(var + eps)
    t = beta - mean * s
    return s.astype(jnp.float32), t.astype(jnp.float32)


def bridge_pallas(x, w1, b1, bn1, w2, b2, bn2, *, negative_slope=0.01):
    """x: (N, C_in, H, W); w1: (C_mid, C_in, 3, 3); w2: (C_out, C_mid, 3, 3).

    bn1 / bn2 = (gamma, beta, running_mean, running_var, eps) (eval mode)."""
    N, C_in, H, W = x.shape
    C_mid = w1.shape[0]
    C_out = w2.shape[0]
    assert w1.shape[2:] == (3, 3) and w2.shape[2:] == (3, 3)

    Wp = W + 2                 # left pad 1, right pad 1
    Hp = H + 3                 # top pad 1, bottom pad 2 (margin for flat tap offsets)
    L = Hp * Wp
    L_pad = ((L + 127) // 128) * 128          # lane-dense output width

    cdt = x.dtype              # compute dtype fed to the MXU (f32 here; bf16 also ok)

    # NCHW kept: spatial zero-pad once, then free reshape to a flat lane dim.
    x_pad = jnp.pad(x, ((0, 0), (0, 0), (1, 2), (1, 1)))
    x_flat = x_pad.reshape(N, C_in, L)
    if L_pad != L:
        x_flat = jnp.pad(x_flat, ((0, 0), (0, 0), (0, L_pad - L)))

    # Validity mask over flat padded positions (interior pixels only).
    idx = jnp.arange(L_pad)
    rows = idx // Wp
    cols = idx % Wp
    mask = ((rows >= 1) & (rows <= H) & (cols >= 1) & (cols <= W))
    mask = mask.astype(jnp.float32).reshape(1, L_pad)

    # Per-tap weight matrices, tap index t = dh*3 + dw.
    w1_taps = jnp.transpose(w1, (2, 3, 0, 1)).reshape(9, C_mid, C_in).astype(cdt)
    w2_taps = jnp.transpose(w2, (2, 3, 0, 1)).reshape(9, C_out, C_mid).astype(cdt)

    s1, t1 = _bn_affine(*bn1)
    s2, t2 = _bn_affine(*bn2)
    p1 = jnp.stack([b1.astype(jnp.float32), s1, t1]).reshape(3, C_mid, 1)
    p2 = jnp.stack([b2.astype(jnp.float32), s2, t2]).reshape(3, C_out, 1)

    offsets = tuple((dh - 1) * Wp + (dw - 1) for dh in range(3) for dw in range(3))
    kernel = functools.partial(_bridge_kernel, offsets=offsets,
                               negative_slope=negative_slope)

    itemsize = jnp.dtype(cdt).itemsize
    flops = 2 * N * L_pad * 9 * (C_in * C_mid + C_mid * C_out)
    bytes_accessed = int(x_flat.size * itemsize + w1_taps.size * itemsize +
                         w2_taps.size * itemsize + (p1.size + p2.size + mask.size) * 4 +
                         N * C_out * L_pad * itemsize)

    out_flat = pl.pallas_call(
        kernel,
        out_shape=jax.ShapeDtypeStruct((N, C_out, L_pad), x.dtype),
        grid_spec=pltpu.PrefetchScalarGridSpec(
            num_scalar_prefetch=0,
            grid=(N,),
            in_specs=[
                pl.BlockSpec((None, C_in, L_pad), lambda n: (n, 0, 0)),
                pl.BlockSpec((1, L_pad), lambda n: (0, 0)),
                pl.BlockSpec((9, C_mid, C_in), lambda n: (0, 0, 0)),
                pl.BlockSpec((3, C_mid, 1), lambda n: (0, 0, 0)),
                pl.BlockSpec((9, C_out, C_mid), lambda n: (0, 0, 0)),
                pl.BlockSpec((3, C_out, 1), lambda n: (0, 0, 0)),
            ],
            out_specs=pl.BlockSpec((None, C_out, L_pad), lambda n: (n, 0, 0)),
        ),
        compiler_params=pltpu.CompilerParams(dimension_semantics=("parallel",)),
        cost_estimate=pl.CostEstimate(flops=flops, transcendentals=0,
                                      bytes_accessed=bytes_accessed),
    )(x_flat, mask, w1_taps, p1, w2_taps, p2)

    # Free reshape + one small slice back to (N, C_out, H, W) NCHW.
    out = out_flat[:, :, :L].reshape(N, C_out, Hp, Wp)[:, :, 1:H + 1, 1:W + 1]
    return out


def bridge_ref(x, w1, b1, bn1, w2, b2, bn2, negative_slope=0.01):
    """Pure-JAX reference matching the PyTorch forward (eval mode)."""
    def conv(v, w, b):
        y = jax.lax.conv_general_dilated(
            v.astype(jnp.float32), w.astype(jnp.float32),
            window_strides=(1, 1), padding=((1, 1), (1, 1)),
            dimension_numbers=("NCHW", "OIHW", "NCHW"))
        return y + b.reshape(1, -1, 1, 1)

    def bn(y, params):
        gamma, beta, mean, var, eps = params
        s = gamma / jnp.sqrt(var + eps)
        return y * s.reshape(1, -1, 1, 1) + (beta - mean * s).reshape(1, -1, 1, 1)

    def leaky(v):
        return jnp.where(v >= 0, v, negative_slope * v)

    h = bn(leaky(conv(x, w1, b1)), bn1)      # conv1 -> (dropout) -> LeakyReLU -> BN1
    y = bn(leaky(conv(h, w2, b2)), bn2)      # conv2 -> (dropout) -> LeakyReLU -> BN2
    return y.astype(x.dtype)                 # final Bridge dropout = identity (eval)


if __name__ == "__main__":
    # Small shapes: batch=2, in_channels=8, out_channels=16, spatial 16x16.
    N, C_in, C_out, H, W = 2, 8, 16, 16, 16

    key = jax.random.PRNGKey(0)
    ks = jax.random.split(key, 13)

    x = jax.random.normal(ks[0], (N, C_in, H, W), dtype=jnp.float32)

    def conv_init(kw, kb, cout, cin):
        fan_in = cin * 9
        bound = 1.0 / (fan_in ** 0.5)
        w = jax.random.uniform(kw, (cout, cin, 3, 3), minval=-bound, maxval=bound,
                               dtype=jnp.float32)
        b = jax.random.uniform(kb, (cout,), minval=-bound, maxval=bound,
                               dtype=jnp.float32)
        return w, b

    w1, b1 = conv_init(ks[1], ks[2], C_out, C_in)
    w2, b2 = conv_init(ks[3], ks[4], C_out, C_out)

    eps = 1e-5

    def bn_init(kg, kb, km, kv, c):
        gamma = 1.0 + 0.1 * jax.random.normal(kg, (c,), dtype=jnp.float32)
        beta = 0.1 * jax.random.normal(kb, (c,), dtype=jnp.float32)
        mean = 0.1 * jax.random.normal(km, (c,), dtype=jnp.float32)
        var = jnp.abs(1.0 + 0.1 * jax.random.normal(kv, (c,), dtype=jnp.float32))
        return (gamma, beta, mean, var, eps)

    bn1 = bn_init(ks[5], ks[6], ks[7], ks[8], C_out)
    bn2 = bn_init(ks[9], ks[10], ks[11], ks[12], C_out)

    out = bridge_pallas(x, w1, b1, bn1, w2, b2, bn2)
    out = jax.block_until_ready(out)

    ref = bridge_ref(x, w1, b1, bn1, w2, b2, bn2)
    assert out.shape == (N, C_out, H, W), out.shape
    # Loose tolerance: TPU default-precision f32 matmul/conv may round through bf16
    # with different summation order in kernel vs reference.
    err = float(jnp.max(jnp.abs(out - ref)))
    assert jnp.allclose(out, ref, atol=2e-2, rtol=2e-2), f"mismatch vs reference: {err}"

    print("KERNEL_OK")
</pallas_src>

<mosaic_0001>
module attributes {stable_mosaic.version = 11 : i64} {
  func.func @_bridge_kernel(%arg0: i32, %arg1: memref<1x8x384xf32, #tpu.memory_space<vmem>>, %arg2: memref<1x384xf32, #tpu.memory_space<vmem>>, %arg3: memref<9x16x8xf32, #tpu.memory_space<vmem>>, %arg4: memref<3x16x1xf32, #tpu.memory_space<vmem>>, %arg5: memref<9x16x16xf32, #tpu.memory_space<vmem>>, %arg6: memref<3x16x1xf32, #tpu.memory_space<vmem>>, %arg7: memref<1x16x384xf32, #tpu.memory_space<vmem>>) attributes {dimension_semantics = [#tpu.dimension_semantics<parallel>], iteration_bounds = array<i64: 2>, scalar_prefetch = 0 : i64, scratch_operands = 0 : i64, tpu.core_type = #tpu.core_type<tc>, window_params = [{transform_indices = @transform_0, window_bounds = array<i64: 1, 8, 384>}, {pipeline_mode = #tpu.pipeline_mode<synchronous>, transform_indices = @transform_1, window_bounds = array<i64: 1, 384>}, {pipeline_mode = #tpu.pipeline_mode<synchronous>, transform_indices = @transform_2, window_bounds = array<i64: 9, 16, 8>}, {pipeline_mode = #tpu.pipeline_mode<synchronous>, transform_indices = @transform_3, window_bounds = array<i64: 3, 16, 1>}, {pipeline_mode = #tpu.pipeline_mode<synchronous>, transform_indices = @transform_4, window_bounds = array<i64: 9, 16, 16>}, {pipeline_mode = #tpu.pipeline_mode<synchronous>, transform_indices = @transform_5, window_bounds = array<i64: 3, 16, 1>}, {transform_indices = @transform_6, window_bounds = array<i64: 1, 16, 384>}]} {
    %c0 = arith.constant 0 : index
    %c0_0 = arith.constant 0 : index
    %c0_1 = arith.constant 0 : index
    %0 = vector.load %arg1[%c0, %c0_0, %c0_1] : memref<1x8x384xf32, #tpu.memory_space<vmem>>, vector<1x8x384xf32>
    %1 = vector.shape_cast %0 : vector<1x8x384xf32> to vector<8x384xf32>
    %c0_2 = arith.constant 0 : index
    %c0_3 = arith.constant 0 : index
    %2 = vector.load %arg2[%c0_2, %c0_3] : memref<1x384xf32, #tpu.memory_space<vmem>>, vector<1x384xf32>
    %cst = arith.constant 0.000000e+00 : f32
    %3 = vector.broadcast %cst : f32 to vector<16x384xf32>
    %c0_4 = arith.constant 0 : index
    %c0_5 = arith.constant 0 : index
    %c0_6 = arith.constant 0 : index
    %4 = vector.load %arg3[%c0_4, %c0_5, %c0_6] : memref<9x16x8xf32, #tpu.memory_space<vmem>>, vector<1x16x8xf32>
    %5 = vector.shape_cast %4 : vector<1x16x8xf32> to vector<16x8xf32>
    %c19_i32 = arith.constant 19 : i32
    %6 = tpu.dynamic_rotate %1 by %c19_i32 dim 1 : vector<8x384xf32>, i32 -> vector<8x384xf32>
    %cst_7 = arith.constant dense<0.000000e+00> : vector<16x384xf32>
    %7 = tpu.matmul %5, %6, %cst_7 {dimension_numbers = #tpu.dot_dimension_numbers<[1], [0], [0], [1], [0, 0, 1, 1], [], []>} : vector<16x8xf32>, vector<8x384xf32>, vector<16x384xf32> -> vector<16x384xf32>
    %8 = arith.addf %3, %7 : vector<16x384xf32>
    %c1 = arith.constant 1 : index
    %c0_8 = arith.constant 0 : index
    %c0_9 = arith.constant 0 : index
    %9 = vector.load %arg3[%c1, %c0_8, %c0_9] : memref<9x16x8xf32, #tpu.memory_space<vmem>>, vector<1x16x8xf32>
    %10 = vector.shape_cast %9 : vector<1x16x8xf32> to vector<16x8xf32>
    %c18_i32 = arith.constant 18 : i32
    %11 = tpu.dynamic_rotate %1 by %c18_i32 dim 1 : vector<8x384xf32>, i32 -> vector<8x384xf32>
    %cst_10 = arith.constant dense<0.000000e+00> : vector<16x384xf32>
    %12 = tpu.matmul %10, %11, %cst_10 {dimension_numbers = #tpu.dot_dimension_numbers<[1], [0], [0], [1], [0, 0, 1, 1], [], []>} : vector<16x8xf32>, vector<8x384xf32>, vector<16x384xf32> -> vector<16x384xf32>
    %13 = arith.addf %8, %12 : vector<16x384xf32>
    %c2 = arith.constant 2 : index
    %c0_11 = arith.constant 0 : index
    %c0_12 = arith.constant 0 : index
    %14 = vector.load %arg3[%c2, %c0_11, %c0_12] : memref<9x16x8xf32, #tpu.memory_space<vmem>>, vector<1x16x8xf32>
    %15 = vector.shape_cast %14 : vector<1x16x8xf32> to vector<16x8xf32>
    %c17_i32 = arith.constant 17 : i32
    %16 = tpu.dynamic_rotate %1 by %c17_i32 dim 1 : vector<8x384xf32>, i32 -> vector<8x384xf32>
    %cst_13 = arith.constant dense<0.000000e+00> : vector<16x384xf32>
    %17 = tpu.matmul %15, %16, %cst_13 {dimension_numbers = #tpu.dot_dimension_numbers<[1], [0], [0], [1], [0, 0, 1, 1], [], []>} : vector<16x8xf32>, vector<8x384xf32>, vector<16x384xf32> -> vector<16x384xf32>
    %18 = arith.addf %13, %17 : vector<16x384xf32>
    %c3 = arith.constant 3 : index
    %c0_14 = arith.constant 0 : index
    %c0_15 = arith.constant 0 : index
    %19 = vector.load %arg3[%c3, %c0_14, %c0_15] : memref<9x16x8xf32, #tpu.memory_space<vmem>>, vector<1x16x8xf32>
    %20 = vector.shape_cast %19 : vector<1x16x8xf32> to vector<16x8xf32>
    %c1_i32 = arith.constant 1 : i32
    %21 = tpu.dynamic_rotate %1 by %c1_i32 dim 1 : vector<8x384xf32>, i32 -> vector<8x384xf32>
    %cst_16 = arith.constant dense<0.000000e+00> : vector<16x384xf32>
    %22 = tpu.matmul %20, %21, %cst_16 {dimension_numbers = #tpu.dot_dimension_numbers<[1], [0], [0], [1], [0, 0, 1, 1], [], []>} : vector<16x8xf32>, vector<8x384xf32>, vector<16x384xf32> -> vector<16x384xf32>
    %23 = arith.addf %18, %22 : vector<16x384xf32>
    %c4 = arith.constant 4 : index
    %c0_17 = arith.constant 0 : index
    %c0_18 = arith.constant 0 : index
    %24 = vector.load %arg3[%c4, %c0_17, %c0_18] : memref<9x16x8xf32, #tpu.memory_space<vmem>>, vector<1x16x8xf32>
    %25 = vector.shape_cast %24 : vector<1x16x8xf32> to vector<16x8xf32>
    %cst_19 = arith.constant dense<0.000000e+00> : vector<16x384xf32>
    %26 = tpu.matmul %25, %1, %cst_19 {dimension_numbers = #tpu.dot_dimension_numbers<[1], [0], [0], [1], [0, 0, 1, 1], [], []>} : vector<16x8xf32>, vector<8x384xf32>, vector<16x384xf32> -> vector<16x384xf32>
    %27 = arith.addf %23, %26 : vector<16x384xf32>
    %c5 = arith.constant 5 : index
    %c0_20 = arith.constant 0 : index
    %c0_21 = arith.constant 0 : index
    %28 = vector.load %arg3[%c5, %c0_20, %c0_21] : memref<9x16x8xf32, #tpu.memory_space<vmem>>, vector<1x16x8xf32>
    %29 = vector.shape_cast %28 : vector<1x16x8xf32> to vector<16x8xf32>
    %c383_i32 = arith.constant 383 : i32
    %30 = tpu.dynamic_rotate %1 by %c383_i32 dim 1 : vector<8x384xf32>, i32 -> vector<8x384xf32>
    %cst_22 = arith.constant dense<0.000000e+00> : vector<16x384xf32>
    %31 = tpu.matmul %29, %30, %cst_22 {dimension_numbers = #tpu.dot_dimension_numbers<[1], [0], [0], [1], [0, 0, 1, 1], [], []>} : vector<16x8xf32>, vector<8x384xf32>, vector<16x384xf32> -> vector<16x384xf32>
    %32 = arith.addf %27, %31 : vector<16x384xf32>
    %c6 = arith.constant 6 : index
    %c0_23 = arith.constant 0 : index
    %c0_24 = arith.constant 0 : index
    %33 = vector.load %arg3[%c6, %c0_23, %c0_24] : memref<9x16x8xf32, #tpu.memory_space<vmem>>, vector<1x16x8xf32>
    %34 = vector.shape_cast %33 : vector<1x16x8xf32> to vector<16x8xf32>
    %c367_i32 = arith.constant 367 : i32
    %35 = tpu.dynamic_rotate %1 by %c367_i32 dim 1 : vector<8x384xf32>, i32 -> vector<8x384xf32>
    %cst_25 = arith.constant dense<0.000000e+00> : vector<16x384xf32>
    %36 = tpu.matmul %34, %35, %cst_25 {dimension_numbers = #tpu.dot_dimension_numbers<[1], [0], [0], [1], [0, 0, 1, 1], [], []>} : vector<16x8xf32>, vector<8x384xf32>, vector<16x384xf32> -> vector<16x384xf32>
    %37 = arith.addf %32, %36 : vector<16x384xf32>
    %c7 = arith.constant 7 : index
    %c0_26 = arith.constant 0 : index
    %c0_27 = arith.constant 0 : index
    %38 = vector.load %arg3[%c7, %c0_26, %c0_27] : memref<9x16x8xf32, #tpu.memory_space<vmem>>, vector<1x16x8xf32>
    %39 = vector.shape_cast %38 : vector<1x16x8xf32> to vector<16x8xf32>
    %c366_i32 = arith.constant 366 : i32
    %40 = tpu.dynamic_rotate %1 by %c366_i32 dim 1 : vector<8x384xf32>, i32 -> vector<8x384xf32>
    %cst_28 = arith.constant dense<0.000000e+00> : vector<16x384xf32>
    %41 = tpu.matmul %39, %40, %cst_28 {dimension_numbers = #tpu.dot_dimension_numbers<[1], [0], [0], [1], [0, 0, 1, 1], [], []>} : vector<16x8xf32>, vector<8x384xf32>, vector<16x384xf32> -> vector<16x384xf32>
    %42 = arith.addf %37, %41 : vector<16x384xf32>
    %c8 = arith.constant 8 : index
    %c0_29 = arith.constant 0 : index
    %c0_30 = arith.constant 0 : index
    %43 = vector.load %arg3[%c8, %c0_29, %c0_30] : memref<9x16x8xf32, #tpu.memory_space<vmem>>, vector<1x16x8xf32>
    %44 = vector.shape_cast %43 : vector<1x16x8xf32> to vector<16x8xf32>
    %c365_i32 = arith.constant 365 : i32
    %45 = tpu.dynamic_rotate %1 by %c365_i32 dim 1 : vector<8x384xf32>, i32 -> vector<8x384xf32>
    %cst_31 = arith.constant dense<0.000000e+00> : vector<16x384xf32>
    %46 = tpu.matmul %44, %45, %cst_31 {dimension_numbers = #tpu.dot_dimension_numbers<[1], [0], [0], [1], [0, 0, 1, 1], [], []>} : vector<16x8xf32>, vector<8x384xf32>, vector<16x384xf32> -> vector<16x384xf32>
    %47 = arith.addf %42, %46 : vector<16x384xf32>
    %c0_32 = arith.constant 0 : index
    %c0_33 = arith.constant 0 : index
    %c0_34 = arith.constant 0 : index
    %48 = vector.load %arg4[%c0_32, %c0_33, %c0_34] : memref<3x16x1xf32, #tpu.memory_space<vmem>>, vector<1x16x1xf32>
    %49 = vector.shape_cast %48 : vector<1x16x1xf32> to vector<16x1xf32>
    %50 = vector.broadcast %49 : vector<16x1xf32> to vector<16x384xf32>
    %51 = arith.addf %47, %50 : vector<16x384xf32>
    %cst_35 = arith.constant 0.000000e+00 : f32
    %52 = vector.broadcast %cst_35 : f32 to vector<16x384xf32>
    %53 = arith.cmpf oge, %51, %52 : vector<16x384xf32>
    %cst_36 = arith.constant 0.00999999977 : f32
    %54 = vector.broadcast %cst_36 : f32 to vector<16x384xf32>
    %55 = arith.mulf %54, %51 : vector<16x384xf32>
    %56 = arith.select %53, %51, %55 : vector<16x384xi1>, vector<16x384xf32>
    %c1_37 = arith.constant 1 : index
    %c0_38 = arith.constant 0 : index
    %c0_39 = arith.constant 0 : index
    %57 = vector.load %arg4[%c1_37, %c0_38, %c0_39] : memref<3x16x1xf32, #tpu.memory_space<vmem>>, vector<1x16x1xf32>
    %58 = vector.shape_cast %57 : vector<1x16x1xf32> to vector<16x1xf32>
    %59 = vector.broadcast %58 : vector<16x1xf32> to vector<16x384xf32>
    %60 = arith.mulf %56, %59 : vector<16x384xf32>
    %c2_40 = arith.constant 2 : index
    %c0_41 = arith.constant 0 : index
    %c0_42 = arith.constant 0 : index
    %61 = vector.load %arg4[%c2_40, %c0_41, %c0_42] : memref<3x16x1xf32, #tpu.memory_space<vmem>>, vector<1x16x1xf32>
    %62 = vector.shape_cast %61 : vector<1x16x1xf32> to vector<16x1xf32>
    %63 = vector.broadcast %62 : vector<16x1xf32> to vector<16x384xf32>
    %64 = arith.addf %60, %63 : vector<16x384xf32>
    %65 = vector.broadcast %2 : vector<1x384xf32> to vector<16x384xf32>
    %66 = arith.mulf %64, %65 : vector<16x384xf32>
    %cst_43 = arith.constant 0.000000e+00 : f32
    %67 = vector.broadcast %cst_43 : f32 to vector<16x384xf32>
    %c0_44 = arith.constant 0 : index
    %c0_45 = arith.constant 0 : index
    %c0_46 = arith.constant 0 : index
    %68 = vector.load %arg5[%c0_44, %c0_45, %c0_46] : memref<9x16x16xf32, #tpu.memory_space<vmem>>, vector<1x16x16xf32>
    %69 = vector.shape_cast %68 : vector<1x16x16xf32> to vector<16x16xf32>
    %c19_i32_47 = arith.constant 19 : i32
    %70 = tpu.dynamic_rotate %66 by %c19_i32_47 dim 1 : vector<16x384xf32>, i32 -> vector<16x384xf32>
    %cst_48 = arith.constant dense<0.000000e+00> : vector<16x384xf32>
    %71 = tpu.matmul %69, %70, %cst_48 {dimension_numbers = #tpu.dot_dimension_numbers<[1], [0], [0], [1], [0, 0, 1, 1], [], []>} : vector<16x16xf32>, vector<16x384xf32>, vector<16x384xf32> -> vector<16x384xf32>
    %72 = arith.addf %67, %71 : vector<16x384xf32>
    %c1_49 = arith.constant 1 : index
    %c0_50 = arith.constant 0 : index
    %c0_51 = arith.constant 0 : index
    %73 = vector.load %arg5[%c1_49, %c0_50, %c0_51] : memref<9x16x16xf32, #tpu.memory_space<vmem>>, vector<1x16x16xf32>
    %74 = vector.shape_cast %73 : vector<1x16x16xf32> to vector<16x16xf32>
    %c18_i32_52 = arith.constant 18 : i32
    %75 = tpu.dynamic_rotate %66 by %c18_i32_52 dim 1 : vector<16x384xf32>, i32 -> vector<16x384xf32>
    %cst_53 = arith.constant dense<0.000000e+00> : vector<16x384xf32>
    %76 = tpu.matmul %74, %75, %cst_53 {dimension_numbers = #tpu.dot_dimension_numbers<[1], [0], [0], [1], [0, 0, 1, 1], [], []>} : vector<16x16xf32>, vector<16x384xf32>, vector<16x384xf32> -> vector<16x384xf32>
    %77 = arith.addf %72, %76 : vector<16x384xf32>
    %c2_54 = arith.constant 2 : index
    %c0_55 = arith.constant 0 : index
    %c0_56 = arith.constant 0 : index
    %78 = vector.load %arg5[%c2_54, %c0_55, %c0_56] : memref<9x16x16xf32, #tpu.memory_space<vmem>>, vector<1x16x16xf32>
    %79 = vector.shape_cast %78 : vector<1x16x16xf32> to vector<16x16xf32>
    %c17_i32_57 = arith.constant 17 : i32
    %80 = tpu.dynamic_rotate %66 by %c17_i32_57 dim 1 : vector<16x384xf32>, i32 -> vector<16x384xf32>
    %cst_58 = arith.constant dense<0.000000e+00> : vector<16x384xf32>
    %81 = tpu.matmul %79, %80, %cst_58 {dimension_numbers = #tpu.dot_dimension_numbers<[1], [0], [0], [1], [0, 0, 1, 1], [], []>} : vector<16x16xf32>, vector<16x384xf32>, vector<16x384xf32> -> vector<16x384xf32>
    %82 = arith.addf %77, %81 : vector<16x384xf32>
    %c3_59 = arith.constant 3 : index
    %c0_60 = arith.constant 0 : index
    %c0_61 = arith.constant 0 : index
    %83 = vector.load %arg5[%c3_59, %c0_60, %c0_61] : memref<9x16x16xf32, #tpu.memory_space<vmem>>, vector<1x16x16xf32>
    %84 = vector.shape_cast %83 : vector<1x16x16xf32> to vector<16x16xf32>
    %c1_i32_62 = arith.constant 1 : i32
    %85 = tpu.dynamic_rotate %66 by %c1_i32_62 dim 1 : vector<16x384xf32>, i32 -> vector<16x384xf32>
    %cst_63 = arith.constant dense<0.000000e+00> : vector<16x384xf32>
    %86 = tpu.matmul %84, %85, %cst_63 {dimension_numbers = #tpu.dot_dimension_numbers<[1], [0], [0], [1], [0, 0, 1, 1], [], []>} : vector<16x16xf32>, vector<16x384xf32>, vector<16x384xf32> -> vector<16x384xf32>
    %87 = arith.addf %82, %86 : vector<16x384xf32>
    %c4_64 = arith.constant 4 : index
    %c0_65 = arith.constant 0 : index
    %c0_66 = arith.constant 0 : index
    %88 = vector.load %arg5[%c4_64, %c0_65, %c0_66] : memref<9x16x16xf32, #tpu.memory_space<vmem>>, vector<1x16x16xf32>
    %89 = vector.shape_cast %88 : vector<1x16x16xf32> to vector<16x16xf32>
    %cst_67 = arith.constant dense<0.000000e+00> : vector<16x384xf32>
    %90 = tpu.matmul %89, %66, %cst_67 {dimension_numbers = #tpu.dot_dimension_numbers<[1], [0], [0], [1], [0, 0, 1, 1], [], []>} : vector<16x16xf32>, vector<16x384xf32>, vector<16x384xf32> -> vector<16x384xf32>
    %91 = arith.addf %87, %90 : vector<16x384xf32>
    %c5_68 = arith.constant 5 : index
    %c0_69 = arith.constant 0 : index
    %c0_70 = arith.constant 0 : index
    %92 = vector.load %arg5[%c5_68, %c0_69, %c0_70] : memref<9x16x16xf32, #tpu.memory_space<vmem>>, vector<1x16x16xf32>
    %93 = vector.shape_cast %92 : vector<1x16x16xf32> to vector<16x16xf32>
    %c383_i32_71 = arith.constant 383 : i32
    %94 = tpu.dynamic_rotate %66 by %c383_i32_71 dim 1 : vector<16x384xf32>, i32 -> vector<16x384xf32>
    %cst_72 = arith.constant dense<0.000000e+00> : vector<16x384xf32>
    %95 = tpu.matmul %93, %94, %cst_72 {dimension_numbers = #tpu.dot_dimension_numbers<[1], [0], [0], [1], [0, 0, 1, 1], [], []>} : vector<16x16xf32>, vector<16x384xf32>, vector<16x384xf32> -> vector<16x384xf32>
    %96 = arith.addf %91, %95 : vector<16x384xf32>
    %c6_73 = arith.constant 6 : index
    %c0_74 = arith.constant 0 : index
    %c0_75 = arith.constant 0 : index
    %97 = vector.load %arg5[%c6_73, %c0_74, %c0_75] : memref<9x16x16xf32, #tpu.memory_space<vmem>>, vector<1x16x16xf32>
    %98 = vector.shape_cast %97 : vector<1x16x16xf32> to vector<16x16xf32>
    %c367_i32_76 = arith.constant 367 : i32
    %99 = tpu.dynamic_rotate %66 by %c367_i32_76 dim 1 : vector<16x384xf32>, i32 -> vector<16x384xf32>
    %cst_77 = arith.constant dense<0.000000e+00> : vector<16x384xf32>
    %100 = tpu.matmul %98, %99, %cst_77 {dimension_numbers = #tpu.dot_dimension_numbers<[1], [0], [0], [1], [0, 0, 1, 1], [], []>} : vector<16x16xf32>, vector<16x384xf32>, vector<16x384xf32> -> vector<16x384xf32>
    %101 = arith.addf %96, %100 : vector<16x384xf32>
    %c7_78 = arith.constant 7 : index
    %c0_79 = arith.constant 0 : index
    %c0_80 = arith.constant 0 : index
    %102 = vector.load %arg5[%c7_78, %c0_79, %c0_80] : memref<9x16x16xf32, #tpu.memory_space<vmem>>, vector<1x16x16xf32>
    %103 = vector.shape_cast %102 : vector<1x16x16xf32> to vector<16x16xf32>
    %c366_i32_81 = arith.constant 366 : i32
    %104 = tpu.dynamic_rotate %66 by %c366_i32_81 dim 1 : vector<16x384xf32>, i32 -> vector<16x384xf32>
    %cst_82 = arith.constant dense<0.000000e+00> : vector<16x384xf32>
    %105 = tpu.matmul %103, %104, %cst_82 {dimension_numbers = #tpu.dot_dimension_numbers<[1], [0], [0], [1], [0, 0, 1, 1], [], []>} : vector<16x16xf32>, vector<16x384xf32>, vector<16x384xf32> -> vector<16x384xf32>
    %106 = arith.addf %101, %105 : vector<16x384xf32>
    %c8_83 = arith.constant 8 : index
    %c0_84 = arith.constant 0 : index
    %c0_85 = arith.constant 0 : index
    %107 = vector.load %arg5[%c8_83, %c0_84, %c0_85] : memref<9x16x16xf32, #tpu.memory_space<vmem>>, vector<1x16x16xf32>
    %108 = vector.shape_cast %107 : vector<1x16x16xf32> to vector<16x16xf32>
    %c365_i32_86 = arith.constant 365 : i32
    %109 = tpu.dynamic_rotate %66 by %c365_i32_86 dim 1 : vector<16x384xf32>, i32 -> vector<16x384xf32>
    %cst_87 = arith.constant dense<0.000000e+00> : vector<16x384xf32>
    %110 = tpu.matmul %108, %109, %cst_87 {dimension_numbers = #tpu.dot_dimension_numbers<[1], [0], [0], [1], [0, 0, 1, 1], [], []>} : vector<16x16xf32>, vector<16x384xf32>, vector<16x384xf32> -> vector<16x384xf32>
    %111 = arith.addf %106, %110 : vector<16x384xf32>
    %c0_88 = arith.constant 0 : index
    %c0_89 = arith.constant 0 : index
    %c0_90 = arith.constant 0 : index
    %112 = vector.load %arg6[%c0_88, %c0_89, %c0_90] : memref<3x16x1xf32, #tpu.memory_space<vmem>>, vector<1x16x1xf32>
    %113 = vector.shape_cast %112 : vector<1x16x1xf32> to vector<16x1xf32>
    %114 = vector.broadcast %113 : vector<16x1xf32> to vector<16x384xf32>
    %115 = arith.addf %111, %114 : vector<16x384xf32>
    %cst_91 = arith.constant 0.000000e+00 : f32
    %116 = vector.broadcast %cst_91 : f32 to vector<16x384xf32>
    %117 = arith.cmpf oge, %115, %116 : vector<16x384xf32>
    %cst_92 = arith.constant 0.00999999977 : f32
    %118 = vector.broadcast %cst_92 : f32 to vector<16x384xf32>
    %119 = arith.mulf %118, %115 : vector<16x384xf32>
    %120 = arith.select %117, %115, %119 : vector<16x384xi1>, vector<16x384xf32>
    %c1_93 = arith.constant 1 : index
    %c0_94 = arith.constant 0 : index
    %c0_95 = arith.constant 0 : index
    %121 = vector.load %arg6[%c1_93, %c0_94, %c0_95] : memref<3x16x1xf32, #tpu.memory_space<vmem>>, vector<1x16x1xf32>
    %122 = vector.shape_cast %121 : vector<1x16x1xf32> to vector<16x1xf32>
    %123 = vector.broadcast %122 : vector<16x1xf32> to vector<16x384xf32>
    %124 = arith.mulf %120, %123 : vector<16x384xf32>
    %c2_96 = arith.constant 2 : index
    %c0_97 = arith.constant 0 : index
    %c0_98 = arith.constant 0 : index
    %125 = vector.load %arg6[%c2_96, %c0_97, %c0_98] : memref<3x16x1xf32, #tpu.memory_space<vmem>>, vector<1x16x1xf32>
    %126 = vector.shape_cast %125 : vector<1x16x1xf32> to vector<16x1xf32>
    %127 = vector.broadcast %126 : vector<16x1xf32> to vector<16x384xf32>
    %128 = arith.addf %124, %127 : vector<16x384xf32>
    %c0_99 = arith.constant 0 : index
    %c0_100 = arith.constant 0 : index
    %c0_101 = arith.constant 0 : index
    %129 = vector.load %arg7[%c0_99, %c0_100, %c0_101] : memref<1x16x384xf32, #tpu.memory_space<vmem>>, vector<1x16x384xf32>
    %130 = vector.shape_cast %129 : vector<1x16x384xf32> to vector<16x384xf32>
    %131 = vector.shape_cast %128 : vector<16x384xf32> to vector<1x16x384xf32>
    tpu.vector_store %arg7[%c0_99, %c0_100, %c0_101], %131 {strides = array<i32>} : memref<1x16x384xf32, #tpu.memory_space<vmem>>, vector<1x16x384xf32>,
    return
  }
  func.func @transform_0(%arg0: i32) -> (i32, i32, i32) {
    %c0_i32 = arith.constant 0 : i32
    %c0_i32_0 = arith.constant 0 : i32
    %c0_i32_1 = arith.constant 0 : i32
    return %arg0, %c0_i32, %c0_i32_0 : i32, i32, i32
  }
  func.func @transform_1(%arg0: i32) -> (i32, i32) {
    %c0_i32 = arith.constant 0 : i32
    %c0_i32_0 = arith.constant 0 : i32
    %c0_i32_1 = arith.constant 0 : i32
    return %c0_i32, %c0_i32_0 : i32, i32
  }
  func.func @transform_2(%arg0: i32) -> (i32, i32, i32) {
    %c0_i32 = arith.constant 0 : i32
    %c0_i32_0 = arith.constant 0 : i32
    %c0_i32_1 = arith.constant 0 : i32
    %c0_i32_2 = arith.constant 0 : i32
    return %c0_i32, %c0_i32_0, %c0_i32_1 : i32, i32, i32
  }
  func.func @transform_3(%arg0: i32) -> (i32, i32, i32) {
    %c0_i32 = arith.constant 0 : i32
    %c0_i32_0 = arith.constant 0 : i32
    %c0_i32_1 = arith.constant 0 : i32
    %c0_i32_2 = arith.constant 0 : i32
    return %c0_i32, %c0_i32_0, %c0_i32_1 : i32, i32, i32
  }
  func.func @transform_4(%arg0: i32) -> (i32, i32, i32) {
    %c0_i32 = arith.constant 0 : i32
    %c0_i32_0 = arith.constant 0 : i32
    %c0_i32_1 = arith.constant 0 : i32
    %c0_i32_2 = arith.constant 0 : i32
    return %c0_i32, %c0_i32_0, %c0_i32_1 : i32, i32, i32
  }
  func.func @transform_5(%arg0: i32) -> (i32, i32, i32) {
    %c0_i32 = arith.constant 0 : i32
    %c0_i32_0 = arith.constant 0 : i32
    %c0_i32_1 = arith.constant 0 : i32
    %c0_i32_2 = arith.constant 0 : i32
    return %c0_i32, %c0_i32_0, %c0_i32_1 : i32, i32, i32
  }
  func.func @transform_6(%arg0: i32) -> (i32, i32, i32) {
    %c0_i32 = arith.constant 0 : i32
    %c0_i32_0 = arith.constant 0 : i32
    %c0_i32_1 = arith.constant 0 : i32
    return %arg0, %c0_i32, %c0_i32_0 : i32, i32, i32
  }
}

</mosaic_0001>

<llo_original>
// kernel: tpu_custom_call.1
$region0: #{tpu_custom_call.1}
  #allocation0 [shape = 'u32[]', space=smem, size = 0x4, offset = 0x4, fixed_abs, tag = 'smem constant byte address 0x4 - core index']
  #allocation1 [shape = 'u32[144,128]{1,0:T(1,128)}', space=vmem, size = 0x12000, scoped, tag = 'internal scratch']
  %s0 = inlined_call_operand.vmem [shape: f32[2,8,384], index: 0, kind: input, shape index: {}]
  %s1 = inlined_call_operand.vmem [shape: f32[1,384], index: 1, kind: input, shape index: {}]
  %s2 = inlined_call_operand.vmem [shape: f32[9,16,8], index: 2, kind: input, shape index: {}]
  %s3 = inlined_call_operand.vmem [shape: f32[3,16,1], index: 3, kind: input, shape index: {}]
  %s4 = inlined_call_operand.vmem [shape: f32[9,16,16], index: 4, kind: input, shape index: {}]
  %s5 = inlined_call_operand.vmem [shape: f32[3,16,1], index: 5, kind: input, shape index: {}]
  %s6 = inlined_call_operand.hbm [shape: f32[2,16,384], index: 6, kind: output, shape index: {}]
  %s7 = sld [smem:[#allocation0]]
  $region57: #{tpu_custom_call.1} parent=0
    _
  %s9 = ssub.s32 1, %s7
  %s10 = scalar_select 0, %s9, %s7
  $region1: #{tpu_custom_call.1} parent=0
    #allocation2 [shape = 'u8[49152]{0}', space=vmem, size = 0xc000, scoped, tag = 'output window, operand 0']
    #allocation3 [shape = 's32[2]{0}', space=sflag, size = 0x8, scoped, tag = 'scoped memory for tpu_custom_call.1']
    %11 = vsyncpa [#allocation3], 0
    %s12 = scalar_lea.sflag [#allocation3], 1
    %13 = vsyncpa %s12, 0
    loop: start=0, step=1, limit=4
    $region2: #{tpu_custom_call.1} parent=1 // loop_pre_header
      _
    $region3: #{tpu_custom_call.1} parent=1 // loop_header
      %s15 = sphi 0, %s19
      %p16 = scmp.ge.s32.totalorder %s15, 4
      %s25 = sphi 0, %s27
      %s28 = sphi 0, %s25
      %s29 = sphi 0, %s28
      %s45 = sphi 0, %s29
      %s49 = sphi 0, %s49
      %s51 = sphi 0, %s49
      %s52 = sphi 0, %s51
      %s66 = sphi 0, %s52
      %s70 = sphi 0, %s70
      %s72 = sphi 0, %s70
      %s73 = sphi 0, %s72
      %s87 = sphi 0, %s73
      %s91 = sphi 0, %s91
      %s93 = sphi 0, %s91
      %s94 = sphi 0, %s93
      %s108 = sphi 0, %s94
      %s112 = sphi 0, %s112
      %s114 = sphi 0, %s112
      %s115 = sphi 0, %s114
      %s129 = sphi 0, %s115
      %s133 = sphi 0, %s133
      %s135 = sphi 0, %s133
      %s136 = sphi 0, %s135
      %s150 = sphi 0, %s136
      %s156 = sphi 0, %s158
      %s159 = sphi 0, %s156
      %s160 = sphi 0, %s159
      %s176 = sphi 0, %s160
    $region4: #{tpu_custom_call.1} parent=1 // loop_header_branch
      %18 = sbr.rel (%p16) target = $region8
    $region5: #{tpu_custom_call.1} parent=1 // loop_body
      %s20 = ssub.s32 %s15, 1
      %s21 = ssub.s32 %s15, 2
      %s22 = sadd.s32 %s15, 1
      %s23 = ssub.s32 %s15, %s22
      %p24 = scmp.eq.s32.totalorder %s23, 0
      %s26 = sadd.s32 %s25, 1
      %s27 = scalar_select %p24, %s25, %s26
      %p30 = pneg %p24
      %p31 = scmp.eq.s32.totalorder %s15, 1
      %p32 = por %p30, %p31
      %p33 = scmp.ne.s32.totalorder %s25, %s28
      %p34 = scmp.eq.s32.totalorder %s15, 0
      %p35 = por %p33, %p34
      %p36 = scmp.ne.s32.totalorder %s25, %s28
      %p37 = scmp.eq.s32.totalorder %s20, 1
      %p38 = por %p36, %p37
      %p39 = scmp.ne.s32.totalorder %s28, %s29
      %p40 = scmp.eq.s32.totalorder %s20, 0
      %p41 = por %p39, %p40
      %p42 = scmp.ne.s32.totalorder %s28, %s29
      %p43 = scmp.eq.s32.totalorder %s21, 1
      %p44 = por %p42, %p43
      %p46 = scmp.ne.s32.totalorder %s29, %s45
      %p47 = scmp.eq.s32.totalorder %s21, 0
      %p48 = por %p46, %p47
      %s50 = sadd.s32 %s49, 1
      %p53 = scmp.eq.s32.totalorder %s15, 1
      %p54 = scmp.ne.s32.totalorder %s49, %s51
      %p55 = scmp.eq.s32.totalorder %s15, 0
      %p56 = por %p54, %p55
      %p57 = scmp.ne.s32.totalorder %s49, %s51
      %p58 = scmp.eq.s32.totalorder %s20, 1
      %p59 = por %p57, %p58
      %p60 = scmp.ne.s32.totalorder %s51, %s52
      %p61 = scmp.eq.s32.totalorder %s20, 0
      %p62 = por %p60, %p61
      %p63 = scmp.ne.s32.totalorder %s51, %s52
      %p64 = scmp.eq.s32.totalorder %s21, 1
      %p65 = por %p63, %p64
      %p67 = scmp.ne.s32.totalorder %s52, %s66
      %p68 = scmp.eq.s32.totalorder %s21, 0
      %p69 = por %p67, %p68
      %s71 = sadd.s32 %s70, 1
      %p74 = scmp.eq.s32.totalorder %s15, 1
      %p75 = scmp.ne.s32.totalorder %s70, %s72
      %p76 = scmp.eq.s32.totalorder %s15, 0
      %p77 = por %p75, %p76
      %p78 = scmp.ne.s32.totalorder %s70, %s72
      %p79 = scmp.eq.s32.totalorder %s20, 1
      %p80 = por %p78, %p79
      %p81 = scmp.ne.s32.totalorder %s72, %s73
      %p82 = scmp.eq.s32.totalorder %s20, 0
      %p83 = por %p81, %p82
      %p84 = scmp.ne.s32.totalorder %s72, %s73
      %p85 = scmp.eq.s32.totalorder %s21, 1
      %p86 = por %p84, %p85
      %p88 = scmp.ne.s32.totalorder %s73, %s87
      %p89 = scmp.eq.s32.totalorder %s21, 0
      %p90 = por %p88, %p89
      %s92 = sadd.s32 %s91, 1
      %p95 = scmp.eq.s32.totalorder %s15, 1
      %p96 = scmp.ne.s32.totalorder %s91, %s93
      %p97 = scmp.eq.s32.totalorder %s15, 0
      %p98 = por %p96, %p97
      %p99 = scmp.ne.s32.totalorder %s91, %s93
      %p100 = scmp.eq.s32.totalorder %s20, 1
      %p101 = por %p99, %p100
      %p102 = scmp.ne.s32.totalorder %s93, %s94
      %p103 = scmp.eq.s32.totalorder %s20, 0
      %p104 = por %p102, %p103
      %p105 = scmp.ne.s32.totalorder %s93, %s94
      %p106 = scmp.eq.s32.totalorder %s21, 1
      %p107 = por %p105, %p106
      %p109 = scmp.ne.s32.totalorder %s94, %s108
      %p110 = scmp.eq.s32.totalorder %s21, 0
      %p111 = por %p109, %p110
      %s113 = sadd.s32 %s112, 1
      %p116 = scmp.eq.s32.totalorder %s15, 1
      %p117 = scmp.ne.s32.totalorder %s112, %s114
      %p118 = scmp.eq.s32.totalorder %s15, 0
      %p119 = por %p117, %p118
      %p120 = scmp.ne.s32.totalorder %s112, %s114
      %p121 = scmp.eq.s32.totalorder %s20, 1
      %p122 = por %p120, %p121
      %p123 = scmp.ne.s32.totalorder %s114, %s115
      %p124 = scmp.eq.s32.totalorder %s20, 0
      %p125 = por %p123, %p124
      %p126 = scmp.ne.s32.totalorder %s114, %s115
      %p127 = scmp.eq.s32.totalorder %s21, 1
      %p128 = por %p126, %p127
      %p130 = scmp.ne.s32.totalorder %s115, %s129
      %p131 = scmp.eq.s32.totalorder %s21, 0
      %p132 = por %p130, %p131
      %s134 = sadd.s32 %s133, 1
      %p137 = scmp.eq.s32.totalorder %s15, 1
      %p138 = scmp.ne.s32.totalorder %s133, %s135
      %p139 = scmp.eq.s32.totalorder %s15, 0
      %p140 = por %p138, %p139
      %p141 = scmp.ne.s32.totalorder %s133, %s135
      %p142 = scmp.eq.s32.totalorder %s20, 1
      %p143 = por %p141, %p142
      %p144 = scmp.ne.s32.totalorder %s135, %s136
      %p145 = scmp.eq.s32.totalorder %s20, 0
      %p146 = por %p144, %p145
      %p147 = scmp.ne.s32.totalorder %s135, %s136
      %p148 = scmp.eq.s32.totalorder %s21, 1
      %p149 = por %p147, %p148
      %p151 = scmp.ne.s32.totalorder %s136, %s150
      %p152 = scmp.eq.s32.totalorder %s21, 0
      %p153 = por %p151, %p152
      %s154 = ssub.s32 %s15, %s22
      %p155 = scmp.eq.s32.totalorder %s154, 0
      %s157 = sadd.s32 %s156, 1
      %s158 = scalar_select %p155, %s156, %s157
      %p161 = pneg %p155
      %p162 = scmp.eq.s32.totalorder %s15, 1
      %p163 = por %p161, %p162
      %p164 = scmp.ne.s32.totalorder %s156, %s159
      %p165 = scmp.eq.s32.totalorder %s15, 0
      %p166 = por %p164, %p165
      %p167 = scmp.ne.s32.totalorder %s156, %s159
      %p168 = scmp.eq.s32.totalorder %s20, 1
      %p169 = por %p167, %p168
      %p170 = scmp.ne.s32.totalorder %s159, %s160
      %p171 = scmp.eq.s32.totalorder %s20, 0
      %p172 = por %p170, %p171
      %p173 = scmp.ne.s32.totalorder %s159, %s160
      %p174 = scmp.eq.s32.totalorder %s21, 1
      %p175 = por %p173, %p174
      %p177 = scmp.ne.s32.totalorder %s160, %s176
      %p178 = scmp.eq.s32.totalorder %s21, 0
      %p179 = por %p177, %p178
      %p180 = scmp.le.s32.totalorder 1, %s15
      %p181 = scmp.lt.s32.totalorder %s15, 3
      %p182 = pnand %p180, %p181
      %p183 = pneg %p182
      // Predicated region
      $region9: #{tpu_custom_call.1} parent=5 // pred_check
        _
      $region10: #{tpu_custom_call.1} parent=5 // pred_check_branch
        %185 = sbr.rel (%p182) target = $region12
      $region11: #{tpu_custom_call.1} parent=5 // pred_region
        %s186 = ssub.s32 %s15, 1
        // Predicated region
        $region13: #{tpu_custom_call.1} parent=11 // pred_check
          %p187 = pneg %p62
        $region14: #{tpu_custom_call.1} parent=11 // pred_check_branch
          %189 = sbr.rel (%p187) target = $region16
        $region15: #{tpu_custom_call.1} parent=11 // pred_region
          _
        $region16: #{tpu_custom_call.1} parent=11 // pred_fallthru
          _
        // Predicated region
        $region17: #{tpu_custom_call.1} parent=11 // pred_check
          %p190 = pneg %p83
        $region18: #{tpu_custom_call.1} parent=11 // pred_check_branch
          %192 = sbr.rel (%p190) target = $region20
        $region19: #{tpu_custom_call.1} parent=11 // pred_region
          _
        $region20: #{tpu_custom_call.1} parent=11 // pred_fallthru
          _
        // Predicated region
        $region21: #{tpu_custom_call.1} parent=11 // pred_check
          %p193 = pneg %p104
        $region22: #{tpu_custom_call.1} parent=11 // pred_check_branch
          %195 = sbr.rel (%p193) target = $region24
        $region23: #{tpu_custom_call.1} parent=11 // pred_region
          _
        $region24: #{tpu_custom_call.1} parent=11 // pred_fallthru
          _
        // Predicated region
        $region25: #{tpu_custom_call.1} parent=11 // pred_check
          %p196 = pneg %p125
        $region26: #{tpu_custom_call.1} parent=11 // pred_check_branch
          %198 = sbr.rel (%p196) target = $region28
        $region27: #{tpu_custom_call.1} parent=11 // pred_region
          _
        $region28: #{tpu_custom_call.1} parent=11 // pred_fallthru
          _
        // Predicated region
        $region29: #{tpu_custom_call.1} parent=11 // pred_check
          %p199 = pneg %p146
        $region30: #{tpu_custom_call.1} parent=11 // pred_check_branch
          %201 = sbr.rel (%p199) target = $region32
        $region31: #{tpu_custom_call.1} parent=11 // pred_region
          _
        $region32: #{tpu_custom_call.1} parent=11 // pred_fallthru
          _
      $region12: #{tpu_custom_call.1} parent=5 // pred_fallthru
        _
      %p202 = scmp.lt.s32.totalorder %s15, 2
      // Predicated region
      $region33: #{tpu_custom_call.1} parent=5 // pred_check
        %p203 = pneg %p202
      $region34: #{tpu_custom_call.1} parent=5 // pred_check_branch
        %205 = sbr.rel (%p203) target = $region36
      $region35: #{tpu_custom_call.1} parent=5 // pred_region
        // Predicated region
        $region37: #{tpu_custom_call.1} parent=35 // pred_check
          %p206 = pneg %p35
        $region38: #{tpu_custom_call.1} parent=35 // pred_check_branch
          %208 = sbr.rel (%p206) target = $region40
        $region39: #{tpu_custom_call.1} parent=35 // pred_region
          %p209 = scmp.lt.s32.totalorder %s15, 1
          %s210 = scalar_select %p209, %s15, 1
          %s211 = smul.addr %s210, 3
          %s212 = smul.addr %s211, 8
          %s213 = scalar_lea.vmem %s0, %s212
        $region40: #{tpu_custom_call.1} parent=35 // pred_fallthru
          _
      $region36: #{tpu_custom_call.1} parent=5 // pred_fallthru
        _
      %p214 = scmp.le.s32.totalorder 1, %s15
      %p215 = scmp.lt.s32.totalorder %s15, 3
      %p216 = pnand %p214, %p215
      %p217 = pneg %p216
      // Predicated region
      $region41: #{tpu_custom_call.1} parent=5 // pred_check
        _
      $region42: #{tpu_custom_call.1} parent=5 // pred_check_branch
        %219 = sbr.rel (%p216) target = $region44
      $region43: #{tpu_custom_call.1} parent=5 // pred_region
        %s220 = ssub.s32 %s15, 1
        %p221 = scmp.lt.s32.totalorder %s20, 1
        %s222 = scalar_select %p221, %s20, 1
        %s223 = smul.addr %s222, 3
        %s224 = smul.addr %s223, 8
        %s225 = scalar_lea.vmem %s0, %s224
        %p226 = pneg %p41
        %p227 = pneg %p38
        %p228 = pneg %p62
        %p229 = pneg %p59
        %p230 = pneg %p83
        %p231 = pneg %p80
        %p232 = pneg %p104
        %p233 = pneg %p101
        %p234 = pneg %p125
        %p235 = pneg %p122
        %p236 = pneg %p146
        %p237 = pneg %p143
        %p238 = pneg %p172
        %p239 = pneg %p169
        %s240 = sand.u32 %s159, 1
        %s241 = scalar_lea.sflag [#allocation3], %s240
        %s242 = sand.u32 %s159, 1
        %s243 = smul.addr %s242, 48
        %s244 = scalar_lea.vmem [#allocation2], %s243
        %p245 = scmp.lt.s32.totalorder %s20, 1
        %s246 = scalar_select %p245, %s20, 1
        %s247 = smul.addr %s246, 3
        %s248 = smul.addr %s247, 8
        %s249 = scalar_lea.vmem %s0, %s248
        %v250 = vld [vmem:[%s249] sm:$0xff]
        %v251 = vld [vmem:[%s249 + $0x8] sm:$0xff]
        %v252 = vld [vmem:[%s249 + $0x10] sm:$0xff]
        %v253 = vld [vmem:[%s1] sm:$0x7]
        %v254 = vld [vmem:[%s2] sm:$0xff]
        %v255 = vld [vmem:[%s2 + $0x8] sm:$0xff]
        %256 = vrot.lane.b32.xlu0 %v250, 19
        %v257 = vpop.permute.xlu0 %256
        %258 = vrot.lane.b32.xlu0 %v251, 19
        %v259 = vpop.permute.xlu0 %258
        %260 = vrot.lane.b32.xlu0 %v252, 19
        %v261 = vpop.permute.xlu0 %260
        %v262 = vlaneseq
        %v263 = vand.u32 %v262, 127
        %vm264 = vcmp.lt.s32.totalorder %v263, 19
        %v265 = vsel %vm264, %v259, %v261
        %v266 = vsel %vm264, %v257, %v259
        %v267 = vsel %vm264, %v261, %v257
        %s268 = scalar_lea.vmem %s2, 16
        %v269 = vld [vmem:[%s268] sm:$0xff]
        %v270 = vld [vmem:[%s268 + $0x8] sm:$0xff]
        %271 = vrot.lane.b32.xlu0 %v250, 18
        %v272 = vpop.permute.xlu0 %271
        %273 = vrot.lane.b32.xlu0 %v251, 18
        %v274 = vpop.permute.xlu0 %273
        %275 = vrot.lane.b32.xlu0 %v252, 18
        %v276 = vpop.permute.xlu0 %275
        %vm277 = vcmp.lt.s32.totalorder %v263, 18
        %v278 = vsel %vm277, %v274, %v276
        %v279 = vsel %vm277, %v272, %v274
        %v280 = vsel %vm277, %v276, %v272
        %vm281 = vcmask 64512
        %v283 = vsel %vm281, %v269, 0
        %v286 = vsel %vm281, %v270, 0
        %288 = vmatprep.subr.mxu0 %v279
        %289 = vmatpush1.msra.mxu0 %v280
        %290 = vmatprep.subr.mxu0 0.0
        %291 = vmatpush1.msra.mxu0 0.0
        %292 = vmatprep.subr.mxu0 0.0
        %293 = vmatpush1.msra.mxu0 0.0
        %294 = vmatprep.subr.mxu0 0.0
        %295 = vmatpush1.msra.mxu0 0.0
        %296 = vmatprep.subr.mxu0 0.0
        %297 = vmatpush1.msra.mxu0 0.0
        %298 = vmatprep.subr.mxu0 0.0
        %299 = vmatpush1.msra.mxu0 0.0
        %300 = vmatprep.subr.mxu0 0.0
        %301 = vmatpush1.msra.mxu0 0.0
        %302 = vmatprep.subr.mxu0 0.0
        %303 = vmatpush1.msra.mxu0 0.0
        %304 = vmatprep.subr.mxu0 0.0
        %305 = vmatpush1.msra.mxu0 0.0
        %306 = vmatprep.subr.mxu0 0.0
        %307 = vmatpush1.msra.mxu0 0.0
        %308 = vmatprep.subr.mxu0 0.0
        %309 = vmatpush1.msra.mxu0 0.0
        %310 = vmatprep.subr.mxu0 0.0
        %311 = vmatpush1.msra.mxu0 0.0
        %312 = vmatprep.subr.mxu0 0.0
        %313 = vmatpush1.msra.mxu0 0.0
        %314 = vmatprep.subr.mxu0 0.0
        %315 = vmatpush1.msra.mxu0 0.0
        %316 = vmatprep.subr.mxu0 0.0
        %317 = vmatpush1.msra.mxu0 0.0
        %318 = vmatprep.subr.mxu0 0.0
        %319 = vmatpush1.msra.mxu0 0.0
        %320 = vmatprep.subr.mxu0 0.0
        %321 = vmatpush1.msra.mxu0 0.0
        %322 = vmatprep.subr.mxu0 0.0
        %323 = vmatpush1.msra.mxu0 0.0
        %324 = vmatprep.subr.mxu0 0.0
        %325 = vmatpush1.msra.mxu0 0.0
        %326 = vmatprep.subr.mxu0 0.0
        %327 = vmatpush1.msra.mxu0 0.0
        %328 = vmatprep.subr.mxu0 0.0
        %329 = vmatpush1.msra.mxu0 0.0
        %330 = vmatprep.subr.mxu0 0.0
        %331 = vmatpush1.msra.mxu0 0.0
        %332 = vmatprep.subr.mxu0 0.0
        %333 = vmatpush1.msra.mxu0 0.0
        %334 = vmatprep.subr.mxu0 0.0
        %335 = vmatpush1.msra.mxu0 0.0
        %336 = vmatprep.subr.mxu0 0.0
        %337 = vmatpush1.msra.mxu0 0.0
        %338 = vmatprep.subr.mxu0 0.0
        %339 = vmatpush1.msra.mxu0 0.0
        %340 = vmatprep.subr.mxu0 0.0
        %341 = vmatpush1.msra.mxu0 0.0
        %342 = vmatprep.subr.mxu0 0.0
        %343 = vmatpush1.msra.mxu0 0.0
        %344 = vmatprep.subr.mxu0 0.0
        %345 = vmatpush1.msra.mxu0 0.0
        %346 = vmatprep.subr.mxu0 0.0
        %347 = vmatpush1.msra.mxu0 0.0
        %348 = vmatprep.subr.mxu0 0.0
        %349 = vmatpush1.msra.mxu0 0.0
        %350 = vmatprep.subr.mxu0 0.0
        %351 = vmatpush1.msra.mxu0 0.0
        %352 = vmatprep.mubr.f32.mxu0 0.0
        %353 = vmatmul.mubr.f32.gmra.mrb[0].mxu0 %v283
        %v354 = vpop.f32.mrb[0].mxu0
        %v355 = vadd.f32 0.0, %v354
        %v356 = vpop.f32.mrb[0].mxu0
        %v357 = vadd.f32 0.0, %v356
        %358 = vmatprep.mubr.f32.mxu0 0.0
        %359 = vmatmul.mubr.f32.gmra.mrb[0].mxu0 %v286
        %v360 = vpop.f32.mrb[0].mxu0
        %v361 = vadd.f32 0.0, %v360
        %v362 = vpop.f32.mrb[0].mxu0
        %v363 = vadd.f32 0.0, %v362
        %364 = vdwg.mxu0
        %365 = vmatprep.subr.mxu0 0.0
        %366 = vmatpush1.msra.mxu0 %v278
        %367 = vmatprep.subr.mxu0 0.0
        %368 = vmatpush1.msra.mxu0 0.0
        %369 = vmatprep.subr.mxu0 0.0
        %370 = vmatpush1.msra.mxu0 0.0
        %371 = vmatprep.subr.mxu0 0.0
        %372 = vmatpush1.msra.mxu0 0.0
        %373 = vmatprep.subr.mxu0 0.0
        %374 = vmatpush1.msra.mxu0 0.0
        %375 = vmatprep.subr.mxu0 0.0
        %376 = vmatpush1.msra.mxu0 0.0
        %377 = vmatprep.subr.mxu0 0.0
        %378 = vmatpush1.msra.mxu0 0.0
        %379 = vmatprep.subr.mxu0 0.0
        %380 = vmatpush1.msra.mxu0 0.0
        %381 = vmatprep.subr.mxu0 0.0
        %382 = vmatpush1.msra.mxu0 0.0
        %383 = vmatprep.subr.mxu0 0.0
        %384 = vmatpush1.msra.mxu0 0.0
        %385 = vmatprep.subr.mxu0 0.0
        %386 = vmatpush1.msra.mxu0 0.0
        %387 = vmatprep.subr.mxu0 0.0
        %388 = vmatpush1.msra.mxu0 0.0
        %389 = vmatprep.subr.mxu0 0.0
        %390 = vmatpush1.msra.mxu0 0.0
        %391 = vmatprep.subr.mxu0 0.0
        %392 = vmatpush1.msra.mxu0 0.0
        %393 = vmatprep.subr.mxu0 0.0
        %394 = vmatpush1.msra.mxu0 0.0
        %395 = vmatprep.subr.mxu0 0.0
        %396 = vmatpush1.msra.mxu0 0.0
        %397 = vmatprep.subr.mxu0 0.0
        %398 = vmatpush1.msra.mxu0 0.0
        %399 = vmatprep.subr.mxu0 0.0
        %400 = vmatpush1.msra.mxu0 0.0
        %401 = vmatprep.subr.mxu0 0.0
        %402 = vmatpush1.msra.mxu0 0.0
        %403 = vmatprep.subr.mxu0 0.0
        %404 = vmatpush1.msra.mxu0 0.0
        %405 = vmatprep.subr.mxu0 0.0
        %406 = vmatpush1.msra.mxu0 0.0
        %407 = vmatprep.subr.mxu0 0.0
        %408 = vmatpush1.msra.mxu0 0.0
        %409 = vmatprep.subr.mxu0 0.0
        %410 = vmatpush1.msra.mxu0 0.0
        %411 = vmatprep.subr.mxu0 0.0
        %412 = vmatpush1.msra.mxu0 0.0
        %413 = vmatprep.subr.mxu0 0.0
        %414 = vmatpush1.msra.mxu0 0.0
        %415 = vmatprep.subr.mxu0 0.0
        %416 = vmatpush1.msra.mxu0 0.0
        %417 = vmatprep.subr.mxu0 0.0
        %418 = vmatpush1.msra.mxu0 0.0
        %419 = vmatprep.subr.mxu0 0.0
        %420 = vmatpush1.msra.mxu0 0.0
        %421 = vmatprep.subr.mxu0 0.0
        %422 = vmatpush1.msra.mxu0 0.0
        %423 = vmatprep.subr.mxu0 0.0
        %424 = vmatpush1.msra.mxu0 0.0
        %425 = vmatprep.subr.mxu0 0.0
        %426 = vmatpush1.msra.mxu0 0.0
        %427 = vmatprep.subr.mxu0 0.0
        %428 = vmatpush1.msra.mxu0 0.0
        %429 = vmatprep.mubr.f32.mxu0 0.0
        %430 = vmatmul.mubr.f32.gmra.mrb[0].mxu0 %v283
        %v431 = vpop.f32.mrb[0].mxu0
        %v432 = vadd.f32 0.0, %v431
        %v433 = vpop.f32.mrb[0].mxu0
        %434 = vmatprep.mubr.f32.mxu0 0.0
        %435 = vmatmul.mubr.f32.gmra.mrb[0].mxu0 %v286
        %v436 = vpop.f32.mrb[0].mxu0
        %v437 = vadd.f32 0.0, %v436
        %v438 = vpop.f32.mrb[0].mxu0
        %439 = vdwg.mxu0
        %v441 = vsel %vm281, %v254, 0
        %v444 = vsel %vm281, %v255, 0
        %446 = vmatprep.subr.mxu0 %v266
        %447 = vmatpush1.msra.mxu0 %v267
        %448 = vmatprep.subr.mxu0 0.0
        %449 = vmatpush1.msra.mxu0 0.0
        %450 = vmatprep.subr.mxu0 0.0
        %451 = vmatpush1.msra.mxu0 0.0
        %452 = vmatprep.subr.mxu0 0.0
        %453 = vmatpush1.msra.mxu0 0.0
        %454 = vmatprep.subr.mxu0 0.0
        %455 = vmatpush1.msra.mxu0 0.0
        %456 = vmatprep.subr.mxu0 0.0
        %457 = vmatpush1.msra.mxu0 0.0
        %458 = vmatprep.subr.mxu0 0.0
        %459 = vmatpush1.msra.mxu0 0.0
        %460 = vmatprep.subr.mxu0 0.0
        %461 = vmatpush1.msra.mxu0 0.0
        %462 = vmatprep.subr.mxu0 0.0
        %463 = vmatpush1.msra.mxu0 0.0
        %464 = vmatprep.subr.mxu0 0.0
        %465 = vmatpush1.msra.mxu0 0.0
        %466 = vmatprep.subr.mxu0 0.0
        %467 = vmatpush1.msra.mxu0 0.0
        %468 = vmatprep.subr.mxu0 0.0
        %469 = vmatpush1.msra.mxu0 0.0
        %470 = vmatprep.subr.mxu0 0.0
        %471 = vmatpush1.msra.mxu0 0.0
        %472 = vmatprep.subr.mxu0 0.0
        %473 = vmatpush1.msra.mxu0 0.0
        %474 = vmatprep.subr.mxu0 0.0
        %475 = vmatpush1.msra.mxu0 0.0
        %476 = vmatprep.subr.mxu0 0.0
        %477 = vmatpush1.msra.mxu0 0.0
        %478 = vmatprep.subr.mxu0 0.0
        %479 = vmatpush1.msra.mxu0 0.0
        %480 = vmatprep.subr.mxu0 0.0
        %481 = vmatpush1.msra.mxu0 0.0
        %482 = vmatprep.subr.mxu0 0.0
        %483 = vmatpush1.msra.mxu0 0.0
        %484 = vmatprep.subr.mxu0 0.0
        %485 = vmatpush1.msra.mxu0 0.0
        %486 = vmatprep.subr.mxu0 0.0
        %487 = vmatpush1.msra.mxu0 0.0
        %488 = vmatprep.subr.mxu0 0.0
        %489 = vmatpush1.msra.mxu0 0.0
        %490 = vmatprep.subr.mxu0 0.0
        %491 = vmatpush1.msra.mxu0 0.0
        %492 = vmatprep.subr.mxu0 0.0
        %493 = vmatpush1.msra.mxu0 0.0
        %494 = vmatprep.subr.mxu0 0.0
        %495 = vmatpush1.msra.mxu0 0.0
        %496 = vmatprep.subr.mxu0 0.0
        %497 = vmatpush1.msra.mxu0 0.0
        %498 = vmatprep.subr.mxu0 0.0
        %499 = vmatpush1.msra.mxu0 0.0
        %500 = vmatprep.subr.mxu0 0.0
        %501 = vmatpush1.msra.mxu0 0.0
        %502 = vmatprep.subr.mxu0 0.0
        %503 = vmatpush1.msra.mxu0 0.0
        %504 = vmatprep.subr.mxu0 0.0
        %505 = vmatpush1.msra.mxu0 0.0
        %506 = vmatprep.subr.mxu0 0.0
        %507 = vmatpush1.msra.mxu0 0.0
        %508 = vmatprep.subr.mxu0 0.0
        %509 = vmatpush1.msra.mxu0 0.0
        %510 = vmatprep.mubr.f32.mxu0 0.0
        %511 = vmatmul.mubr.f32.gmra.mrb[0].mxu0 %v441
        %v512 = vpop.f32.mrb[0].mxu0
        %v513 = vadd.f32 %v355, %v512
        %v514 = vpop.f32.mrb[0].mxu0
        %v515 = vadd.f32 %v357, %v514
        %516 = vmatprep.mubr.f32.mxu0 0.0
        %517 = vmatmul.mubr.f32.gmra.mrb[0].mxu0 %v444
        %v518 = vpop.f32.mrb[0].mxu0
        %v519 = vadd.f32 %v361, %v518
        %v520 = vpop.f32.mrb[0].mxu0
        %v521 = vadd.f32 %v363, %v520
        %522 = vdwg.mxu0
        %523 = vmatprep.subr.mxu0 0.0
        %524 = vmatpush1.msra.mxu0 %v265
        %525 = vmatprep.subr.mxu0 0.0
        %526 = vmatpush1.msra.mxu0 0.0
        %527 = vmatprep.subr.mxu0 0.0
        %528 = vmatpush1.msra.mxu0 0.0
        %529 = vmatprep.subr.mxu0 0.0
        %530 = vmatpush1.msra.mxu0 0.0
        %531 = vmatprep.subr.mxu0 0.0
        %532 = vmatpush1.msra.mxu0 0.0
        %533 = vmatprep.subr.mxu0 0.0
        %534 = vmatpush1.msra.mxu0 0.0
        %535 = vmatprep.subr.mxu0 0.0
        %536 = vmatpush1.msra.mxu0 0.0
        %537 = vmatprep.subr.mxu0 0.0
        %538 = vmatpush1.msra.mxu0 0.0
        %539 = vmatprep.subr.mxu0 0.0
        %540 = vmatpush1.msra.mxu0 0.0
        %541 = vmatprep.subr.mxu0 0.0
        %542 = vmatpush1.msra.mxu0 0.0
        %543 = vmatprep.subr.mxu0 0.0
        %544 = vmatpush1.msra.mxu0 0.0
        %545 = vmatprep.subr.mxu0 0.0
        %546 = vmatpush1.msra.mxu0 0.0
        %547 = vmatprep.subr.mxu0 0.0
        %548 = vmatpush1.msra.mxu0 0.0
        %549 = vmatprep.subr.mxu0 0.0
        %550 = vmatpush1.msra.mxu0 0.0
        %551 = vmatprep.subr.mxu0 0.0
        %552 = vmatpush1.msra.mxu0 0.0
        %553 = vmatprep.subr.mxu0 0.0
        %554 = vmatpush1.msra.mxu0 0.0
        %555 = vmatprep.subr.mxu0 0.0
        %556 = vmatpush1.msra.mxu0 0.0
        %557 = vmatprep.subr.mxu0 0.0
        %558 = vmatpush1.msra.mxu0 0.0
        %559 = vmatprep.subr.mxu0 0.0
        %560 = vmatpush1.msra.mxu0 0.0
        %561 = vmatprep.subr.mxu0 0.0
        %562 = vmatpush1.msra.mxu0 0.0
        %563 = vmatprep.subr.mxu0 0.0
        %564 = vmatpush1.msra.mxu0 0.0
        %565 = vmatprep.subr.mxu0 0.0
        %566 = vmatpush1.msra.mxu0 0.0
        %567 = vmatprep.subr.mxu0 0.0
        %568 = vmatpush1.msra.mxu0 0.0
        %569 = vmatprep.subr.mxu0 0.0
        %570 = vmatpush1.msra.mxu0 0.0
        %571 = vmatprep.subr.mxu0 0.0
        %572 = vmatpush1.msra.mxu0 0.0
        %573 = vmatprep.subr.mxu0 0.0
        %574 = vmatpush1.msra.mxu0 0.0
        %575 = vmatprep.subr.mxu0 0.0
        %576 = vmatpush1.msra.mxu0 0.0
        %577 = vmatprep.subr.mxu0 0.0
        %578 = vmatpush1.msra.mxu0 0.0
        %579 = vmatprep.subr.mxu0 0.0
        %580 = vmatpush1.msra.mxu0 0.0
        %581 = vmatprep.subr.mxu0 0.0
        %582 = vmatpush1.msra.mxu0 0.0
        %583 = vmatprep.subr.mxu0 0.0
        %584 = vmatpush1.msra.mxu0 0.0
        %585 = vmatprep.subr.mxu0 0.0
        %586 = vmatpush1.msra.mxu0 0.0
        %587 = vmatprep.mubr.f32.mxu0 0.0
        %588 = vmatmul.mubr.f32.gmra.mrb[0].mxu0 %v441
        %v589 = vpop.f32.mrb[0].mxu0
        %v590 = vadd.f32 %v432, %v589
        %v591 = vpop.f32.mrb[0].mxu0
        %592 = vmatprep.mubr.f32.mxu0 0.0
        %593 = vmatmul.mubr.f32.gmra.mrb[0].mxu0 %v444
        %v594 = vpop.f32.mrb[0].mxu0
        %v595 = vadd.f32 %v437, %v594
        %v596 = vpop.f32.mrb[0].mxu0
        %597 = vdwg.mxu0
        %s598 = scalar_lea.vmem %s2, 32
        %v599 = vld [vmem:[%s598] sm:$0xff]
        %v600 = vld [vmem:[%s598 + $0x8] sm:$0xff]
        %601 = vrot.lane.b32.xlu0 %v250, 17
        %v602 = vpop.permute.xlu0 %601
        %603 = vrot.lane.b32.xlu0 %v251, 17
        %v604 = vpop.permute.xlu0 %603
        %605 = vrot.lane.b32.xlu0 %v252, 17
        %v606 = vpop.permute.xlu0 %605
        %vm607 = vcmp.lt.s32.totalorder %v263, 17
        %v608 = vsel %vm607, %v604, %v606
        %v609 = vsel %vm607, %v602, %v604
        %v610 = vsel %vm607, %v606, %v602
        %v612 = vsel %vm281, %v599, 0
        %v615 = vsel %vm281, %v600, 0
        %617 = vmatprep.subr.mxu0 %v609
        %618 = vmatpush1.msra.mxu0 %v610
        %619 = vmatprep.subr.mxu0 0.0
        %620 = vmatpush1.msra.mxu0 0.0
        %621 = vmatprep.subr.mxu0 0.0
        %622 = vmatpush1.msra.mxu0 0.0
        %623 = vmatprep.subr.mxu0 0.0
        %624 = vmatpush1.msra.mxu0 0.0
        %625 = vmatprep.subr.mxu0 0.0
        %626 = vmatpush1.msra.mxu0 0.0
        %627 = vmatprep.subr.mxu0 0.0
        %628 = vmatpush1.msra.mxu0 0.0
        %629 = vmatprep.subr.mxu0 0.0
        %630 = vmatpush1.msra.mxu0 0.0
        %631 = vmatprep.subr.mxu0 0.0
        %632 = vmatpush1.msra.mxu0 0.0
        %633 = vmatprep.subr.mxu0 0.0
        %634 = vmatpush1.msra.mxu0 0.0
        %635 = vmatprep.subr.mxu0 0.0
        %636 = vmatpush1.msra.mxu0 0.0
        %637 = vmatprep.subr.mxu0 0.0
        %638 = vmatpush1.msra.mxu0 0.0
        %639 = vmatprep.subr.mxu0 0.0
        %640 = vmatpush1.msra.mxu0 0.0
        %641 = vmatprep.subr.mxu0 0.0
        %642 = vmatpush1.msra.mxu0 0.0
        %643 = vmatprep.subr.mxu0 0.0
        %644 = vmatpush1.msra.mxu0 0.0
        %645 = vmatprep.subr.mxu0 0.0
        %646 = vmatpush1.msra.mxu0 0.0
        %647 = vmatprep.subr.mxu0 0.0
        %648 = vmatpush1.msra.mxu0 0.0
        %649 = vmatprep.subr.mxu0 0.0
        %650 = vmatpush1.msra.mxu0 0.0
        %651 = vmatprep.subr.mxu0 0.0
        %652 = vmatpush1.msra.mxu0 0.0
        %653 = vmatprep.subr.mxu0 0.0
        %654 = vmatpush1.msra.mxu0 0.0
        %655 = vmatprep.subr.mxu0 0.0
        %656 = vmatpush1.msra.mxu0 0.0
        %657 = vmatprep.subr.mxu0 0.0
        %658 = vmatpush1.msra.mxu0 0.0
        %659 = vmatprep.subr.mxu0 0.0
        %660 = vmatpush1.msra.mxu0 0.0
        %661 = vmatprep.subr.mxu0 0.0
        %662 = vmatpush1.msra.mxu0 0.0
        %663 = vmatprep.subr.mxu0 0.0
        %664 = vmatpush1.msra.mxu0 0.0
        %665 = vmatprep.subr.mxu0 0.0
        %666 = vmatpush1.msra.mxu0 0.0
        %667 = vmatprep.subr.mxu0 0.0
        %668 = vmatpush1.msra.mxu0 0.0
        %669 = vmatprep.subr.mxu0 0.0
        %670 = vmatpush1.msra.mxu0 0.0
        %671 = vmatprep.subr.mxu0 0.0
        %672 = vmatpush1.msra.mxu0 0.0
        %673 = vmatprep.subr.mxu0 0.0
        %674 = vmatpush1.msra.mxu0 0.0
        %675 = vmatprep.subr.mxu0 0.0
        %676 = vmatpush1.msra.mxu0 0.0
        %677 = vmatprep.subr.mxu0 0.0
        %678 = vmatpush1.msra.mxu0 0.0
        %679 = vmatprep.subr.mxu0 0.0
        %680 = vmatpush1.msra.mxu0 0.0
        %681 = vmatprep.mubr.f32.mxu0 0.0
        %682 = vmatmul.mubr.f32.gmra.mrb[0].mxu0 %v612
        %v683 = vpop.f32.mrb[0].mxu0
        %v684 = vadd.f32 0.0, %v683
        %v685 = vpop.f32.mrb[0].mxu0
        %v686 = vadd.f32 0.0, %v685
        %687 = vmatprep.mubr.f32.mxu0 0.0
        %688 = vmatmul.mubr.f32.gmra.mrb[0].mxu0 %v615
        %v689 = vpop.f32.mrb[0].mxu0
        %v690 = vadd.f32 0.0, %v689
        %v691 = vpop.f32.mrb[0].mxu0
        %v692 = vadd.f32 0.0, %v691
        %693 = vdwg.mxu0
        %694 = vmatprep.subr.mxu0 0.0
        %695 = vmatpush1.msra.mxu0 %v608
        %696 = vmatprep.subr.mxu0 0.0
        %697 = vmatpush1.msra.mxu0 0.0
        %698 = vmatprep.subr.mxu0 0.0
        %699 = vmatpush1.msra.mxu0 0.0
        %700 = vmatprep.subr.mxu0 0.0
        %701 = vmatpush1.msra.mxu0 0.0
        %702 = vmatprep.subr.mxu0 0.0
        %703 = vmatpush1.msra.mxu0 0.0
        %704 = vmatprep.subr.mxu0 0.0
        %705 = vmatpush1.msra.mxu0 0.0
        %706 = vmatprep.subr.mxu0 0.0
        %707 = vmatpush1.msra.mxu0 0.0
        %708 = vmatprep.subr.mxu0 0.0
        %709 = vmatpush1.msra.mxu0 0.0
        %710 = vmatprep.subr.mxu0 0.0
        %711 = vmatpush1.msra.mxu0 0.0
        %712 = vmatprep.subr.mxu0 0.0
        %713 = vmatpush1.msra.mxu0 0.0
        %714 = vmatprep.subr.mxu0 0.0
        %715 = vmatpush1.msra.mxu0 0.0
        %716 = vmatprep.subr.mxu0 0.0
        %717 = vmatpush1.msra.mxu0 0.0
        %718 = vmatprep.subr.mxu0 0.0
        %719 = vmatpush1.msra.mxu0 0.0
        %720 = vmatprep.subr.mxu0 0.0
        %721 = vmatpush1.msra.mxu0 0.0
        %722 = vmatprep.subr.mxu0 0.0
        %723 = vmatpush1.msra.mxu0 0.0
        %724 = vmatprep.subr.mxu0 0.0
        %725 = vmatpush1.msra.mxu0 0.0
        %726 = vmatprep.subr.mxu0 0.0
        %727 = vmatpush1.msra.mxu0 0.0
        %728 = vmatprep.subr.mxu0 0.0
        %729 = vmatpush1.msra.mxu0 0.0
        %730 = vmatprep.subr.mxu0 0.0
        %731 = vmatpush1.msra.mxu0 0.0
        %732 = vmatprep.subr.mxu0 0.0
        %733 = vmatpush1.msra.mxu0 0.0
        %734 = vmatprep.subr.mxu0 0.0
        %735 = vmatpush1.msra.mxu0 0.0
        %736 = vmatprep.subr.mxu0 0.0
        %737 = vmatpush1.msra.mxu0 0.0
        %738 = vmatprep.subr.mxu0 0.0
        %739 = vmatpush1.msra.mxu0 0.0
        %740 = vmatprep.subr.mxu0 0.0
        %741 = vmatpush1.msra.mxu0 0.0
        %742 = vmatprep.subr.mxu0 0.0
        %743 = vmatpush1.msra.mxu0 0.0
        %744 = vmatprep.subr.mxu0 0.0
        %745 = vmatpush1.msra.mxu0 0.0
        %746 = vmatprep.subr.mxu0 0.0
        %747 = vmatpush1.msra.mxu0 0.0
        %748 = vmatprep.subr.mxu0 0.0
        %749 = vmatpush1.msra.mxu0 0.0
        %750 = vmatprep.subr.mxu0 0.0
        %751 = vmatpush1.msra.mxu0 0.0
        %752 = vmatprep.subr.mxu0 0.0
        %753 = vmatpush1.msra.mxu0 0.0
        %754 = vmatprep.subr.mxu0 0.0
        %755 = vmatpush1.msra.mxu0 0.0
        %756 = vmatprep.subr.mxu0 0.0
        %757 = vmatpush1.msra.mxu0 0.0
        %758 = vmatprep.mubr.f32.mxu0 0.0
        %759 = vmatmul.mubr.f32.gmra.mrb[0].mxu0 %v612
        %v760 = vpop.f32.mrb[0].mxu0
        %v761 = vadd.f32 0.0, %v760
        %v762 = vpop.f32.mrb[0].mxu0
        %763 = vmatprep.mubr.f32.mxu0 0.0
        %764 = vmatmul.mubr.f32.gmra.mrb[0].mxu0 %v615
        %v765 = vpop.f32.mrb[0].mxu0
        %v766 = vadd.f32 0.0, %v765
        %v767 = vpop.f32.mrb[0].mxu0
        %768 = vdwg.mxu0
        %v769 = vadd.f32 %v513, %v684
        %v770 = vadd.f32 %v515, %v686
        %v771 = vadd.f32 %v590, %v761
        %v772 = vadd.f32 %v519, %v690
        %v773 = vadd.f32 %v521, %v692
        %v774 = vadd.f32 %v595, %v766
        %s775 = scalar_lea.vmem %s2, 48
        %v776 = vld [vmem:[%s775] sm:$0xff]
        %v777 = vld [vmem:[%s775 + $0x8] sm:$0xff]
        %778 = vrot.lane.b32.xlu0 %v250, 1
        %v779 = vpop.permute.xlu0 %778
        %780 = vrot.lane.b32.xlu0 %v251, 1
        %v781 = vpop.permute.xlu0 %780
        %782 = vrot.lane.b32.xlu0 %v252, 1
        %v783 = vpop.permute.xlu0 %782
        %vm784 = vcmp.lt.s32.totalorder %v263, 1
        %v785 = vsel %vm784, %v781, %v783
        %v786 = vsel %vm784, %v779, %v781
        %v787 = vsel %vm784, %v783, %v779
        %v789 = vsel %vm281, %v776, 0
        %v792 = vsel %vm281, %v777, 0
        %794 = vmatprep.subr.mxu0 %v786
        %795 = vmatpush1.msra.mxu0 %v787
        %796 = vmatprep.subr.mxu0 0.0
        %797 = vmatpush1.msra.mxu0 0.0
        %798 = vmatprep.subr.mxu0 0.0
        %799 = vmatpush1.msra.mxu0 0.0
        %800 = vmatprep.subr.mxu0 0.0
        %801 = vmatpush1.msra.mxu0 0.0
        %802 = vmatprep.subr.mxu0 0.0
        %803 = vmatpush1.msra.mxu0 0.0
        %804 = vmatprep.subr.mxu0 0.0
        %805 = vmatpush1.msra.mxu0 0.0
        %806 = vmatprep.subr.mxu0 0.0
        %807 = vmatpush1.msra.mxu0 0.0
        %808 = vmatprep.subr.mxu0 0.0
        %809 = vmatpush1.msra.mxu0 0.0
        %810 = vmatprep.subr.mxu0 0.0
        %811 = vmatpush1.msra.mxu0 0.0
        %812 = vmatprep.subr.mxu0 0.0
        %813 = vmatpush1.msra.mxu0 0.0
        %814 = vmatprep.subr.mxu0 0.0
        %815 = vmatpush1.msra.mxu0 0.0
        %816 = vmatprep.subr.mxu0 0.0
        %817 = vmatpush1.msra.mxu0 0.0
        %818 = vmatprep.subr.mxu0 0.0
        %819 = vmatpush1.msra.mxu0 0.0
        %820 = vmatprep.subr.mxu0 0.0
        %821 = vmatpush1.msra.mxu0 0.0
        %822 = vmatprep.subr.mxu0 0.0
        %823 = vmatpush1.msra.mxu0 0.0
        %824 = vmatprep.subr.mxu0 0.0
        %825 = vmatpush1.msra.mxu0 0.0
        %826 = vmatprep.subr.mxu0 0.0
        %827 = vmatpush1.msra.mxu0 0.0
        %828 = vmatprep.subr.mxu0 0.0
        %829 = vmatpush1.msra.mxu0 0.0
        %830 = vmatprep.subr.mxu0 0.0
        %831 = vmatpush1.msra.mxu0 0.0
        %832 = vmatprep.subr.mxu0 0.0
        %833 = vmatpush1.msra.mxu0 0.0
        %834 = vmatprep.subr.mxu0 0.0
        %835 = vmatpush1.msra.mxu0 0.0
        %836 = vmatprep.subr.mxu0 0.0
        %837 = vmatpush1.msra.mxu0 0.0
        %838 = vmatprep.subr.mxu0 0.0
        %839 = vmatpush1.msra.mxu0 0.0
        %840 = vmatprep.subr.mxu0 0.0
        %841 = vmatpush1.msra.mxu0 0.0
        %842 = vmatprep.subr.mxu0 0.0
        %843 = vmatpush1.msra.mxu0 0.0
        %844 = vmatprep.subr.mxu0 0.0
        %845 = vmatpush1.msra.mxu0 0.0
        %846 = vmatprep.subr.mxu0 0.0
        %847 = vmatpush1.msra.mxu0 0.0
        %848 = vmatprep.subr.mxu0 0.0
        %849 = vmatpush1.msra.mxu0 0.0
        %850 = vmatprep.subr.mxu0 0.0
        %851 = vmatpush1.msra.mxu0 0.0
        %852 = vmatprep.subr.mxu0 0.0
        %853 = vmatpush1.msra.mxu0 0.0
        %854 = vmatprep.subr.mxu0 0.0
        %855 = vmatpush1.msra.mxu0 0.0
        %856 = vmatprep.subr.mxu0 0.0
        %857 = vmatpush1.msra.mxu0 0.0
        %858 = vmatprep.mubr.f32.mxu0 0.0
        %859 = vmatmul.mubr.f32.gmra.mrb[0].mxu0 %v789
        %v860 = vpop.f32.mrb[0].mxu0
        %v861 = vadd.f32 0.0, %v860
        %v862 = vpop.f32.mrb[0].mxu0
        %v863 = vadd.f32 0.0, %v862
        %864 = vmatprep.mubr.f32.mxu0 0.0
        %865 = vmatmul.mubr.f32.gmra.mrb[0].mxu0 %v792
        %v866 = vpop.f32.mrb[0].mxu0
        %v867 = vadd.f32 0.0, %v866
        %v868 = vpop.f32.mrb[0].mxu0
        %v869 = vadd.f32 0.0, %v868
        %870 = vdwg.mxu0
        %871 = vmatprep.subr.mxu0 0.0
        %872 = vmatpush1.msra.mxu0 %v785
        %873 = vmatprep.subr.mxu0 0.0
        %874 = vmatpush1.msra.mxu0 0.0
        %875 = vmatprep.subr.mxu0 0.0
        %876 = vmatpush1.msra.mxu0 0.0
        %877 = vmatprep.subr.mxu0 0.0
        %878 = vmatpush1.msra.mxu0 0.0
        %879 = vmatprep.subr.mxu0 0.0
        %880 = vmatpush1.msra.mxu0 0.0
        %881 = vmatprep.subr.mxu0 0.0
        %882 = vmatpush1.msra.mxu0 0.0
        %883 = vmatprep.subr.mxu0 0.0
        %884 = vmatpush1.msra.mxu0 0.0
        %885 = vmatprep.subr.mxu0 0.0
        %886 = vmatpush1.msra.mxu0 0.0
        %887 = vmatprep.subr.mxu0 0.0
        %888 = vmatpush1.msra.mxu0 0.0
        %889 = vmatprep.subr.mxu0 0.0
        %890 = vmatpush1.msra.mxu0 0.0
        %891 = vmatprep.subr.mxu0 0.0
        %892 = vmatpush1.msra.mxu0 0.0
        %893 = vmatprep.subr.mxu0 0.0
        %894 = vmatpush1.msra.mxu0 0.0
        %895 = vmatprep.subr.mxu0 0.0
        %896 = vmatpush1.msra.mxu0 0.0
        %897 = vmatprep.subr.mxu0 0.0
        %898 = vmatpush1.msra.mxu0 0.0
        %899 = vmatprep.subr.mxu0 0.0
        %900 = vmatpush1.msra.mxu0 0.0
        %901 = vmatprep.subr.mxu0 0.0
        %902 = vmatpush1.msra.mxu0 0.0
        %903 = vmatprep.subr.mxu0 0.0
        %904 = vmatpush1.msra.mxu0 0.0
        %905 = vmatprep.subr.mxu0 0.0
        %906 = vmatpush1.msra.mxu0 0.0
        %907 = vmatprep.subr.mxu0 0.0
        %908 = vmatpush1.msra.mxu0 0.0
        %909 = vmatprep.subr.mxu0 0.0
        %910 = vmatpush1.msra.mxu0 0.0
        %911 = vmatprep.subr.mxu0 0.0
        %912 = vmatpush1.msra.mxu0 0.0
        %913 = vmatprep.subr.mxu0 0.0
        %914 = vmatpush1.msra.mxu0 0.0
        %915 = vmatprep.subr.mxu0 0.0
        %916 = vmatpush1.msra.mxu0 0.0
        %917 = vmatprep.subr.mxu0 0.0
        %918 = vmatpush1.msra.mxu0 0.0
        %919 = vmatprep.subr.mxu0 0.0
        %920 = vmatpush1.msra.mxu0 0.0
        %921 = vmatprep.subr.mxu0 0.0
        %922 = vmatpush1.msra.mxu0 0.0
        %923 = vmatprep.subr.mxu0 0.0
        %924 = vmatpush1.msra.mxu0 0.0
        %925 = vmatprep.subr.mxu0 0.0
        %926 = vmatpush1.msra.mxu0 0.0
        %927 = vmatprep.subr.mxu0 0.0
        %928 = vmatpush1.msra.mxu0 0.0
        %929 = vmatprep.subr.mxu0 0.0
        %930 = vmatpush1.msra.mxu0 0.0
        %931 = vmatprep.subr.mxu0 0.0
        %932 = vmatpush1.msra.mxu0 0.0
        %933 = vmatprep.subr.mxu0 0.0
        %934 = vmatpush1.msra.mxu0 0.0
        %935 = vmatprep.mubr.f32.mxu0 0.0
        %936 = vmatmul.mubr.f32.gmra.mrb[0].mxu0 %v789
        %v937 = vpop.f32.mrb[0].mxu0
        %v938 = vadd.f32 0.0, %v937
        %v939 = vpop.f32.mrb[0].mxu0
        %940 = vmatprep.mubr.f32.mxu0 0.0
        %941 = vmatmul.mubr.f32.gmra.mrb[0].mxu0 %v792
        %v942 = vpop.f32.mrb[0].mxu0
        %v943 = vadd.f32 0.0, %v942
        %v944 = vpop.f32.mrb[0].mxu0
        %945 = vdwg.mxu0
        %v946 = vadd.f32 %v769, %v861
        %v947 = vadd.f32 %v770, %v863
        %v948 = vadd.f32 %v771, %v938
        %v949 = vadd.f32 %v772, %v867
        %v950 = vadd.f32 %v773, %v869
        %v951 = vadd.f32 %v774, %v943
        %s952 = scalar_lea.vmem %s2, 64
        %v953 = vld [vmem:[%s952] sm:$0xff]
        %v954 = vld [vmem:[%s952 + $0x8] sm:$0xff]
        %v956 = vsel %vm281, %v953, 0
        %v959 = vsel %vm281, %v954, 0
        %961 = vmatprep.subr.mxu0 %v251
        %962 = vmatpush1.msra.mxu0 %v250
        %963 = vmatprep.subr.mxu0 0.0
        %964 = vmatpush1.msra.mxu0 0.0
        %965 = vmatprep.subr.mxu0 0.0
        %966 = vmatpush1.msra.mxu0 0.0
        %967 = vmatprep.subr.mxu0 0.0
        %968 = vmatpush1.msra.mxu0 0.0
        %969 = vmatprep.subr.mxu0 0.0
        %970 = vmatpush1.msra.mxu0 0.0
        %971 = vmatprep.subr.mxu0 0.0
        %972 = vmatpush1.msra.mxu0 0.0
        %973 = vmatprep.subr.mxu0 0.0
        %974 = vmatpush1.msra.mxu0 0.0
        %975 = vmatprep.subr.mxu0 0.0
        %976 = vmatpush1.msra.mxu0 0.0
        %977 = vmatprep.subr.mxu0 0.0
        %978 = vmatpush1.msra.mxu0 0.0
        %979 = vmatprep.subr.mxu0 0.0
        %980 = vmatpush1.msra.mxu0 0.0
        %981 = vmatprep.subr.mxu0 0.0
        %982 = vmatpush1.msra.mxu0 0.0
        %983 = vmatprep.subr.mxu0 0.0
        %984 = vmatpush1.msra.mxu0 0.0
        %985 = vmatprep.subr.mxu0 0.0
        %986 = vmatpush1.msra.mxu0 0.0
        %987 = vmatprep.subr.mxu0 0.0
        %988 = vmatpush1.msra.mxu0 0.0
        %989 = vmatprep.subr.mxu0 0.0
        %990 = vmatpush1.msra.mxu0 0.0
        %991 = vmatprep.subr.mxu0 0.0
        %992 = vmatpush1.msra.mxu0 0.0
        %993 = vmatprep.subr.mxu0 0.0
        %994 = vmatpush1.msra.mxu0 0.0
        %995 = vmatprep.subr.mxu0 0.0
        %996 = vmatpush1.msra.mxu0 0.0
        %997 = vmatprep.subr.mxu0 0.0
        %998 = vmatpush1.msra.mxu0 0.0
        %999 = vmatprep.subr.mxu0 0.0
        %1000 = vmatpush1.msra.mxu0 0.0
        %1001 = vmatprep.subr.mxu0 0.0
        %1002 = vmatpush1.msra.mxu0 0.0
        %1003 = vmatprep.subr.mxu0 0.0
        %1004 = vmatpush1.msra.mxu0 0.0
        %1005 = vmatprep.subr.mxu0 0.0
        %1006 = vmatpush1.msra.mxu0 0.0
        %1007 = vmatprep.subr.mxu0 0.0
        %1008 = vmatpush1.msra.mxu0 0.0
        %1009 = vmatprep.subr.mxu0 0.0
        %1010 = vmatpush1.msra.mxu0 0.0
        %1011 = vmatprep.subr.mxu0 0.0
        %1012 = vmatpush1.msra.mxu0 0.0
        %1013 = vmatprep.subr.mxu0 0.0
        %1014 = vmatpush1.msra.mxu0 0.0
        %1015 = vmatprep.subr.mxu0 0.0
        %1016 = vmatpush1.msra.mxu0 0.0
        %1017 = vmatprep.subr.mxu0 0.0
        %1018 = vmatpush1.msra.mxu0 0.0
        %1019 = vmatprep.subr.mxu0 0.0
        %1020 = vmatpush1.msra.mxu0 0.0
        %1021 = vmatprep.subr.mxu0 0.0
        %1022 = vmatpush1.msra.mxu0 0.0
        %1023 = vmatprep.subr.mxu0 0.0
        %1024 = vmatpush1.msra.mxu0 0.0
        %1025 = vmatprep.mubr.f32.mxu0 0.0
        %1026 = vmatmul.mubr.f32.gmra.mrb[0].mxu0 %v956
        %v1027 = vpop.f32.mrb[0].mxu0
        %v1028 = vadd.f32 0.0, %v1027
        %v1029 = vpop.f32.mrb[0].mxu0
        %v1030 = vadd.f32 0.0, %v1029
        %1031 = vmatprep.mubr.f32.mxu0 0.0
        %1032 = vmatmul.mubr.f32.gmra.mrb[0].mxu0 %v959
        %v1033 = vpop.f32.mrb[0].mxu0
        %v1034 = vadd.f32 0.0, %v1033
        %v1035 = vpop.f32.mrb[0].mxu0
        %v1036 = vadd.f32 0.0, %v1035
        %1037 = vdwg.mxu0
        %1038 = vmatprep.subr.mxu0 0.0
        %1039 = vmatpush1.msra.mxu0 %v252
        %1040 = vmatprep.subr.mxu0 0.0
        %1041 = vmatpush1.msra.mxu0 0.0
        %1042 = vmatprep.subr.mxu0 0.0
        %1043 = vmatpush1.msra.mxu0 0.0
        %1044 = vmatprep.subr.mxu0 0.0
        %1045 = vmatpush1.msra.mxu0 0.0
        %1046 = vmatprep.subr.mxu0 0.0
        %1047 = vmatpush1.msra.mxu0 0.0
        %1048 = vmatprep.subr.mxu0 0.0
        %1049 = vmatpush1.msra.mxu0 0.0
        %1050 = vmatprep.subr.mxu0 0.0
        %1051 = vmatpush1.msra.mxu0 0.0
        %1052 = vmatprep.subr.mxu0 0.0
        %1053 = vmatpush1.msra.mxu0 0.0
        %1054 = vmatprep.subr.mxu0 0.0
        %1055 = vmatpush1.msra.mxu0 0.0
        %1056 = vmatprep.subr.mxu0 0.0
        %1057 = vmatpush1.msra.mxu0 0.0
        %1058 = vmatprep.subr.mxu0 0.0
        %1059 = vmatpush1.msra.mxu0 0.0
        %1060 = vmatprep.subr.mxu0 0.0
        %1061 = vmatpush1.msra.mxu0 0.0
        %1062 = vmatprep.subr.mxu0 0.0
        %1063 = vmatpush1.msra.mxu0 0.0
        %1064 = vmatprep.subr.mxu0 0.0
        %1065 = vmatpush1.msra.mxu0 0.0
        %1066 = vmatprep.subr.mxu0 0.0
        %1067 = vmatpush1.msra.mxu0 0.0
        %1068 = vmatprep.subr.mxu0 0.0
        %1069 = vmatpush1.msra.mxu0 0.0
        %1070 = vmatprep.subr.mxu0 0.0
        %1071 = vmatpush1.msra.mxu0 0.0
        %1072 = vmatprep.subr.mxu0 0.0
        %1073 = vmatpush1.msra.mxu0 0.0
        %1074 = vmatprep.subr.mxu0 0.0
        %1075 = vmatpush1.msra.mxu0 0.0
        %1076 = vmatprep.subr.mxu0 0.0
        %1077 = vmatpush1.msra.mxu0 0.0
        %1078 = vmatprep.subr.mxu0 0.0
        %1079 = vmatpush1.msra.mxu0 0.0
        %1080 = vmatprep.subr.mxu0 0.0
        %1081 = vmatpush1.msra.mxu0 0.0
        %1082 = vmatprep.subr.mxu0 0.0
        %1083 = vmatpush1.msra.mxu0 0.0
        %1084 = vmatprep.subr.mxu0 0.0
        %1085 = vmatpush1.msra.mxu0 0.0
        %1086 = vmatprep.subr.mxu0 0.0
        %1087 = vmatpush1.msra.mxu0 0.0
        %1088 = vmatprep.subr.mxu0 0.0
        %1089 = vmatpush1.msra.mxu0 0.0
        %1090 = vmatprep.subr.mxu0 0.0
        %1091 = vmatpush1.msra.mxu0 0.0
        %1092 = vmatprep.subr.mxu0 0.0
        %1093 = vmatpush1.msra.mxu0 0.0
        %1094 = vmatprep.subr.mxu0 0.0
        %1095 = vmatpush1.msra.mxu0 0.0
        %1096 = vmatprep.subr.mxu0 0.0
        %1097 = vmatpush1.msra.mxu0 0.0
        %1098 = vmatprep.subr.mxu0 0.0
        %1099 = vmatpush1.msra.mxu0 0.0
        %1100 = vmatprep.subr.mxu0 0.0
        %1101 = vmatpush1.msra.mxu0 0.0
        %1102 = vmatprep.mubr.f32.mxu0 0.0
        %1103 = vmatmul.mubr.f32.gmra.mrb[0].mxu0 %v956
        %v1104 = vpop.f32.mrb[0].mxu0
        %v1105 = vadd.f32 0.0, %v1104
        %v1106 = vpop.f32.mrb[0].mxu0
        %1107 = vmatprep.mubr.f32.mxu0 0.0
        %1108 = vmatmul.mubr.f32.gmra.mrb[0].mxu0 %v959
        %v1109 = vpop.f32.mrb[0].mxu0
        %v1110 = vadd.f32 0.0, %v1109
        %v1111 = vpop.f32.mrb[0].mxu0
        %1112 = vdwg.mxu0
        %v1113 = vadd.f32 %v946, %v1028
        %v1114 = vadd.f32 %v947, %v1030
        %v1115 = vadd.f32 %v948, %v1105
        %v1116 = vadd.f32 %v949, %v1034
        %v1117 = vadd.f32 %v950, %v1036
        %v1118 = vadd.f32 %v951, %v1110
        %s1119 = scalar_lea.vmem %s2, 80
        %v1120 = vld [vmem:[%s1119] sm:$0xff]
        %v1121 = vld [vmem:[%s1119 + $0x8] sm:$0xff]
        %1122 = vrot.lane.b32.xlu0 %v250, 127
        %v1123 = vpop.permute.xlu0 %1122
        %1124 = vrot.lane.b32.xlu0 %v251, 127
        %v1125 = vpop.permute.xlu0 %1124
        %1126 = vrot.lane.b32.xlu0 %v252, 127
        %v1127 = vpop.permute.xlu0 %1126
        %vm1128 = vcmp.lt.s32.totalorder %v263, 127
        %v1129 = vsel %vm1128, %v1125, %v1127
        %v1130 = vsel %vm1128, %v1123, %v1125
        %v1131 = vsel %vm1128, %v1127, %v1123
        %v1133 = vsel %vm281, %v1120, 0
        %v1136 = vsel %vm281, %v1121, 0
        %1138 = vmatprep.subr.mxu0 %v1129
        %1139 = vmatpush1.msra.mxu0 %v1130
        %1140 = vmatprep.subr.mxu0 0.0
        %1141 = vmatpush1.msra.mxu0 0.0
        %1142 = vmatprep.subr.mxu0 0.0
        %1143 = vmatpush1.msra.mxu0 0.0
        %1144 = vmatprep.subr.mxu0 0.0
        %1145 = vmatpush1.msra.mxu0 0.0
        %1146 = vmatprep.subr.mxu0 0.0
        %1147 = vmatpush1.msra.mxu0 0.0
        %1148 = vmatprep.subr.mxu0 0.0
        %1149 = vmatpush1.msra.mxu0 0.0
        %1150 = vmatprep.subr.mxu0 0.0
        %1151 = vmatpush1.msra.mxu0 0.0
        %1152 = vmatprep.subr.mxu0 0.0
        %1153 = vmatpush1.msra.mxu0 0.0
        %1154 = vmatprep.subr.mxu0 0.0
        %1155 = vmatpush1.msra.mxu0 0.0
        %1156 = vmatprep.subr.mxu0 0.0
        %1157 = vmatpush1.msra.mxu0 0.0
        %1158 = vmatprep.subr.mxu0 0.0
        %1159 = vmatpush1.msra.mxu0 0.0
        %1160 = vmatprep.subr.mxu0 0.0
        %1161 = vmatpush1.msra.mxu0 0.0
        %1162 = vmatprep.subr.mxu0 0.0
        %1163 = vmatpush1.msra.mxu0 0.0
        %1164 = vmatprep.subr.mxu0 0.0
        %1165 = vmatpush1.msra.mxu0 0.0
        %1166 = vmatprep.subr.mxu0 0.0
        %1167 = vmatpush1.msra.mxu0 0.0
        %1168 = vmatprep.subr.mxu0 0.0
        %1169 = vmatpush1.msra.mxu0 0.0
        %1170 = vmatprep.subr.mxu0 0.0
        %1171 = vmatpush1.msra.mxu0 0.0
        %1172 = vmatprep.subr.mxu0 0.0
        %1173 = vmatpush1.msra.mxu0 0.0
        %1174 = vmatprep.subr.mxu0 0.0
        %1175 = vmatpush1.msra.mxu0 0.0
        %1176 = vmatprep.subr.mxu0 0.0
        %1177 = vmatpush1.msra.mxu0 0.0
        %1178 = vmatprep.subr.mxu0 0.0
        %1179 = vmatpush1.msra.mxu0 0.0
        %1180 = vmatprep.subr.mxu0 0.0
        %1181 = vmatpush1.msra.mxu0 0.0
        %1182 = vmatprep.subr.mxu0 0.0
        %1183 = vmatpush1.msra.mxu0 0.0
        %1184 = vmatprep.subr.mxu0 0.0
        %1185 = vmatpush1.msra.mxu0 0.0
        %1186 = vmatprep.subr.mxu0 0.0
        %1187 = vmatpush1.msra.mxu0 0.0
        %1188 = vmatprep.subr.mxu0 0.0
        %1189 = vmatpush1.msra.mxu0 0.0
        %1190 = vmatprep.subr.mxu0 0.0
        %1191 = vmatpush1.msra.mxu0 0.0
        %1192 = vmatprep.subr.mxu0 0.0
        %1193 = vmatpush1.msra.mxu0 0.0
        %1194 = vmatprep.subr.mxu0 0.0
        %1195 = vmatpush1.msra.mxu0 0.0
        %1196 = vmatprep.subr.mxu0 0.0
        %1197 = vmatpush1.msra.mxu0 0.0
        %1198 = vmatprep.subr.mxu0 0.0
        %1199 = vmatpush1.msra.mxu0 0.0
        %1200 = vmatprep.subr.mxu0 0.0
        %1201 = vmatpush1.msra.mxu0 0.0
        %1202 = vmatprep.mubr.f32.mxu0 0.0
        %1203 = vmatmul.mubr.f32.gmra.mrb[0].mxu0 %v1133
        %v1204 = vpop.f32.mrb[0].mxu0
        %v1205 = vadd.f32 0.0, %v1204
        %v1206 = vpop.f32.mrb[0].mxu0
        %v1207 = vadd.f32 0.0, %v1206
        %1208 = vmatprep.mubr.f32.mxu0 0.0
        %1209 = vmatmul.mubr.f32.gmra.mrb[0].mxu0 %v1136
        %v1210 = vpop.f32.mrb[0].mxu0
        %v1211 = vadd.f32 0.0, %v1210
        %v1212 = vpop.f32.mrb[0].mxu0
        %v1213 = vadd.f32 0.0, %v1212
        %1214 = vdwg.mxu0
        %1215 = vmatprep.subr.mxu0 0.0
        %1216 = vmatpush1.msra.mxu0 %v1131
        %1217 = vmatprep.subr.mxu0 0.0
        %1218 = vmatpush1.msra.mxu0 0.0
        %1219 = vmatprep.subr.mxu0 0.0
        %1220 = vmatpush1.msra.mxu0 0.0
        %1221 = vmatprep.subr.mxu0 0.0
        %1222 = vmatpush1.msra.mxu0 0.0
        %1223 = vmatprep.subr.mxu0 0.0
        %1224 = vmatpush1.msra.mxu0 0.0
        %1225 = vmatprep.subr.mxu0 0.0
        %1226 = vmatpush1.msra.mxu0 0.0
        %1227 = vmatprep.subr.mxu0 0.0
        %1228 = vmatpush1.msra.mxu0 0.0
        %1229 = vmatprep.subr.mxu0 0.0
        %1230 = vmatpush1.msra.mxu0 0.0
        %1231 = vmatprep.subr.mxu0 0.0
        %1232 = vmatpush1.msra.mxu0 0.0
        %1233 = vmatprep.subr.mxu0 0.0
        %1234 = vmatpush1.msra.mxu0 0.0
        %1235 = vmatprep.subr.mxu0 0.0
        %1236 = vmatpush1.msra.mxu0 0.0
        %1237 = vmatprep.subr.mxu0 0.0
        %1238 = vmatpush1.msra.mxu0 0.0
        %1239 = vmatprep.subr.mxu0 0.0
        %1240 = vmatpush1.msra.mxu0 0.0
        %1241 = vmatprep.subr.mxu0 0.0
        %1242 = vmatpush1.msra.mxu0 0.0
        %1243 = vmatprep.subr.mxu0 0.0
        %1244 = vmatpush1.msra.mxu0 0.0
        %1245 = vmatprep.subr.mxu0 0.0
        %1246 = vmatpush1.msra.mxu0 0.0
        %1247 = vmatprep.subr.mxu0 0.0
        %1248 = vmatpush1.msra.mxu0 0.0
        %1249 = vmatprep.subr.mxu0 0.0
        %1250 = vmatpush1.msra.mxu0 0.0
        %1251 = vmatprep.subr.mxu0 0.0
        %1252 = vmatpush1.msra.mxu0 0.0
        %1253 = vmatprep.subr.mxu0 0.0
        %1254 = vmatpush1.msra.mxu0 0.0
        %1255 = vmatprep.subr.mxu0 0.0
        %1256 = vmatpush1.msra.mxu0 0.0
        %1257 = vmatprep.subr.mxu0 0.0
        %1258 = vmatpush1.msra.mxu0 0.0
        %1259 = vmatprep.subr.mxu0 0.0
        %1260 = vmatpush1.msra.mxu0 0.0
        %1261 = vmatprep.subr.mxu0 0.0
        %1262 = vmatpush1.msra.mxu0 0.0
        %1263 = vmatprep.subr.mxu0 0.0
        %1264 = vmatpush1.msra.mxu0 0.0
        %1265 = vmatprep.subr.mxu0 0.0
        %1266 = vmatpush1.msra.mxu0 0.0
        %1267 = vmatprep.subr.mxu0 0.0
        %1268 = vmatpush1.msra.mxu0 0.0
        %1269 = vmatprep.subr.mxu0 0.0
        %1270 = vmatpush1.msra.mxu0 0.0
        %1271 = vmatprep.subr.mxu0 0.0
        %1272 = vmatpush1.msra.mxu0 0.0
        %1273 = vmatprep.subr.mxu0 0.0
        %1274 = vmatpush1.msra.mxu0 0.0
        %1275 = vmatprep.subr.mxu0 0.0
        %1276 = vmatpush1.msra.mxu0 0.0
        %1277 = vmatprep.subr.mxu0 0.0
        %1278 = vmatpush1.msra.mxu0 0.0
        %1279 = vmatprep.mubr.f32.mxu0 0.0
        %1280 = vmatmul.mubr.f32.gmra.mrb[0].mxu0 %v1133
        %v1281 = vpop.f32.mrb[0].mxu0
        %v1282 = vadd.f32 0.0, %v1281
        %v1283 = vpop.f32.mrb[0].mxu0
        %1284 = vmatprep.mubr.f32.mxu0 0.0
        %1285 = vmatmul.mubr.f32.gmra.mrb[0].mxu0 %v1136
        %v1286 = vpop.f32.mrb[0].mxu0
        %v1287 = vadd.f32 0.0, %v1286
        %v1288 = vpop.f32.mrb[0].mxu0
        %1289 = vdwg.mxu0
        %v1290 = vadd.f32 %v1113, %v1205
        %v1291 = vadd.f32 %v1114, %v1207
        %v1292 = vadd.f32 %v1115, %v1282
        %v1293 = vadd.f32 %v1116, %v1211
        %v1294 = vadd.f32 %v1117, %v1213
        %v1295 = vadd.f32 %v1118, %v1287
        %s1296 = scalar_lea.vmem %s2, 96
        %v1297 = vld [vmem:[%s1296] sm:$0xff]
        %v1298 = vld [vmem:[%s1296 + $0x8] sm:$0xff]
        %1299 = vrot.lane.b32.xlu0 %v250, 111
        %v1300 = vpop.permute.xlu0 %1299
        %1301 = vrot.lane.b32.xlu0 %v251, 111
        %v1302 = vpop.permute.xlu0 %1301
        %1303 = vrot.lane.b32.xlu0 %v252, 111
        %v1304 = vpop.permute.xlu0 %1303
        %vm1305 = vcmp.lt.s32.totalorder %v263, 111
        %v1306 = vsel %vm1305, %v1302, %v1304
        %v1307 = vsel %vm1305, %v1300, %v1302
        %v1308 = vsel %vm1305, %v1304, %v1300
        %v1310 = vsel %vm281, %v1297, 0
        %v1313 = vsel %vm281, %v1298, 0
        %1315 = vmatprep.subr.mxu0 %v1306
        %1316 = vmatpush1.msra.mxu0 %v1307
        %1317 = vmatprep.subr.mxu0 0.0
        %1318 = vmatpush1.msra.mxu0 0.0
        %1319 = vmatprep.subr.mxu0 0.0
        %1320 = vmatpush1.msra.mxu0 0.0
        %1321 = vmatprep.subr.mxu0 0.0
        %1322 = vmatpush1.msra.mxu0 0.0
        %1323 = vmatprep.subr.mxu0 0.0
        %1324 = vmatpush1.msra.mxu0 0.0
        %1325 = vmatprep.subr.mxu0 0.0
        %1326 = vmatpush1.msra.mxu0 0.0
        %1327 = vmatprep.subr.mxu0 0.0
        %1328 = vmatpush1.msra.mxu0 0.0
        %1329 = vmatprep.subr.mxu0 0.0
        %1330 = vmatpush1.msra.mxu0 0.0
        %1331 = vmatprep.subr.mxu0 0.0
        %1332 = vmatpush1.msra.mxu0 0.0
        %1333 = vmatprep.subr.mxu0 0.0
        %1334 = vmatpush1.msra.mxu0 0.0
        %1335 = vmatprep.subr.mxu0 0.0
        %1336 = vmatpush1.msra.mxu0 0.0
        %1337 = vmatprep.subr.mxu0 0.0
        %1338 = vmatpush1.msra.mxu0 0.0
        %1339 = vmatprep.subr.mxu0 0.0
        %1340 = vmatpush1.msra.mxu0 0.0
        %1341 = vmatprep.subr.mxu0 0.0
        %1342 = vmatpush1.msra.mxu0 0.0
        %1343 = vmatprep.subr.mxu0 0.0
        %1344 = vmatpush1.msra.mxu0 0.0
        %1345 = vmatprep.subr.mxu0 0.0
        %1346 = vmatpush1.msra.mxu0 0.0
        %1347 = vmatprep.subr.mxu0 0.0
        %1348 = vmatpush1.msra.mxu0 0.0
        %1349 = vmatprep.subr.mxu0 0.0
        %1350 = vmatpush1.msra.mxu0 0.0
        %1351 = vmatprep.subr.mxu0 0.0
        %1352 = vmatpush1.msra.mxu0 0.0
        %1353 = vmatprep.subr.mxu0 0.0
        %1354 = vmatpush1.msra.mxu0 0.0
        %1355 = vmatprep.subr.mxu0 0.0
        %1356 = vmatpush1.msra.mxu0 0.0
        %1357 = vmatprep.subr.mxu0 0.0
        %1358 = vmatpush1.msra.mxu0 0.0
        %1359 = vmatprep.subr.mxu0 0.0
        %1360 = vmatpush1.msra.mxu0 0.0
        %1361 = vmatprep.subr.mxu0 0.0
        %1362 = vmatpush1.msra.mxu0 0.0
        %1363 = vmatprep.subr.mxu0 0.0
        %1364 = vmatpush1.msra.mxu0 0.0
        %1365 = vmatprep.subr.mxu0 0.0
        %1366 = vmatpush1.msra.mxu0 0.0
        %1367 = vmatprep.subr.mxu0 0.0
        %1368 = vmatpush1.msra.mxu0 0.0
        %1369 = vmatprep.subr.mxu0 0.0
        %1370 = vmatpush1.msra.mxu0 0.0
        %1371 = vmatprep.subr.mxu0 0.0
        %1372 = vmatpush1.msra.mxu0 0.0
        %1373 = vmatprep.subr.mxu0 0.0
        %1374 = vmatpush1.msra.mxu0 0.0
        %1375 = vmatprep.subr.mxu0 0.0
        %1376 = vmatpush1.msra.mxu0 0.0
        %1377 = vmatprep.subr.mxu0 0.0
        %1378 = vmatpush1.msra.mxu0 0.0
        %1379 = vmatprep.mubr.f32.mxu0 0.0
        %1380 = vmatmul.mubr.f32.gmra.mrb[0].mxu0 %v1310
        %v1381 = vpop.f32.mrb[0].mxu0
        %v1382 = vadd.f32 0.0, %v1381
        %v1383 = vpop.f32.mrb[0].mxu0
        %v1384 = vadd.f32 0.0, %v1383
        %1385 = vmatprep.mubr.f32.mxu0 0.0
        %1386 = vmatmul.mubr.f32.gmra.mrb[0].mxu0 %v1313
        %v1387 = vpop.f32.mrb[0].mxu0
        %v1388 = vadd.f32 0.0, %v1387
        %v1389 = vpop.f32.mrb[0].mxu0
        %v1390 = vadd.f32 0.0, %v1389
        %1391 = vdwg.mxu0
        %1392 = vmatprep.subr.mxu0 0.0
        %1393 = vmatpush1.msra.mxu0 %v1308
        %1394 = vmatprep.subr.mxu0 0.0
        %1395 = vmatpush1.msra.mxu0 0.0
        %1396 = vmatprep.subr.mxu0 0.0
        %1397 = vmatpush1.msra.mxu0 0.0
        %1398 = vmatprep.subr.mxu0 0.0
        %1399 = vmatpush1.msra.mxu0 0.0
        %1400 = vmatprep.subr.mxu0 0.0
        %1401 = vmatpush1.msra.mxu0 0.0
        %1402 = vmatprep.subr.mxu0 0.0
        %1403 = vmatpush1.msra.mxu0 0.0
        %1404 = vmatprep.subr.mxu0 0.0
        %1405 = vmatpush1.msra.mxu0 0.0
        %1406 = vmatprep.subr.mxu0 0.0
        %1407 = vmatpush1.msra.mxu0 0.0
        %1408 = vmatprep.subr.mxu0 0.0
        %1409 = vmatpush1.msra.mxu0 0.0
        %1410 = vmatprep.subr.mxu0 0.0
        %1411 = vmatpush1.msra.mxu0 0.0
        %1412 = vmatprep.subr.mxu0 0.0
        %1413 = vmatpush1.msra.mxu0 0.0
        %1414 = vmatprep.subr.mxu0 0.0
        %1415 = vmatpush1.msra.mxu0 0.0
        %1416 = vmatprep.subr.mxu0 0.0
        %1417 = vmatpush1.msra.mxu0 0.0
        %1418 = vmatprep.subr.mxu0 0.0
        %1419 = vmatpush1.msra.mxu0 0.0
        %1420 = vmatprep.subr.mxu0 0.0
        %1421 = vmatpush1.msra.mxu0 0.0
        %1422 = vmatprep.subr.mxu0 0.0
        %1423 = vmatpush1.msra.mxu0 0.0
        %1424 = vmatprep.subr.mxu0 0.0
        %1425 = vmatpush1.msra.mxu0 0.0
        %1426 = vmatprep.subr.mxu0 0.0
        %1427 = vmatpush1.msra.mxu0 0.0
        %1428 = vmatprep.subr.mxu0 0.0
        %1429 = vmatpush1.msra.mxu0 0.0
        %1430 = vmatprep.subr.mxu0 0.0
        %1431 = vmatpush1.msra.mxu0 0.0
        %1432 = vmatprep.subr.mxu0 0.0
        %1433 = vmatpush1.msra.mxu0 0.0
        %1434 = vmatprep.subr.mxu0 0.0
        %1435 = vmatpush1.msra.mxu0 0.0
        %1436 = vmatprep.subr.mxu0 0.0
        %1437 = vmatpush1.msra.mxu0 0.0
        %1438 = vmatprep.subr.mxu0 0.0
        %1439 = vmatpush1.msra.mxu0 0.0
        %1440 = vmatprep.subr.mxu0 0.0
        %1441 = vmatpush1.msra.mxu0 0.0
        %1442 = vmatprep.subr.mxu0 0.0
        %1443 = vmatpush1.msra.mxu0 0.0
        %1444 = vmatprep.subr.mxu0 0.0
        %1445 = vmatpush1.msra.mxu0 0.0
        %1446 = vmatprep.subr.mxu0 0.0
        %1447 = vmatpush1.msra.mxu0 0.0
        %1448 = vmatprep.subr.mxu0 0.0
        %1449 = vmatpush1.msra.mxu0 0.0
        %1450 = vmatprep.subr.mxu0 0.0
        %1451 = vmatpush1.msra.mxu0 0.0
        %1452 = vmatprep.subr.mxu0 0.0
        %1453 = vmatpush1.msra.mxu0 0.0
        %1454 = vmatprep.subr.mxu0 0.0
        %1455 = vmatpush1.msra.mxu0 0.0
        %1456 = vmatprep.mubr.f32.mxu0 0.0
        %1457 = vmatmul.mubr.f32.gmra.mrb[0].mxu0 %v1310
        %v1458 = vpop.f32.mrb[0].mxu0
        %v1459 = vadd.f32 0.0, %v1458
        %v1460 = vpop.f32.mrb[0].mxu0
        %1461 = vmatprep.mubr.f32.mxu0 0.0
        %1462 = vmatmul.mubr.f32.gmra.mrb[0].mxu0 %v1313
        %v1463 = vpop.f32.mrb[0].mxu0
        %v1464 = vadd.f32 0.0, %v1463
        %v1465 = vpop.f32.mrb[0].mxu0
        %1466 = vdwg.mxu0
        %v1467 = vadd.f32 %v1290, %v1382
        %v1468 = vadd.f32 %v1291, %v1384
        %v1469 = vadd.f32 %v1292, %v1459
        %v1470 = vadd.f32 %v1293, %v1388
        %v1471 = vadd.f32 %v1294, %v1390
        %v1472 = vadd.f32 %v1295, %v1464
        %s1473 = scalar_lea.vmem %s2, 112
        %v1474 = vld [vmem:[%s1473] sm:$0xff]
        %v1475 = vld [vmem:[%s1473 + $0x8] sm:$0xff]
        %1476 = vrot.lane.b32.xlu0 %v250, 110
        %v1477 = vpop.permute.xlu0 %1476
        %1478 = vrot.lane.b32.xlu0 %v251, 110
        %v1479 = vpop.permute.xlu0 %1478
        %1480 = vrot.lane.b32.xlu0 %v252, 110
        %v1481 = vpop.permute.xlu0 %1480
        %vm1482 = vcmp.lt.s32.totalorder %v263, 110
        %v1483 = vsel %vm1482, %v1479, %v1481
        %v1484 = vsel %vm1482, %v1477, %v1479
        %v1485 = vsel %vm1482, %v1481, %v1477
        %v1487 = vsel %vm281, %v1474, 0
        %v1490 = vsel %vm281, %v1475, 0
        %1492 = vmatprep.subr.mxu0 %v1483
        %1493 = vmatpush1.msra.mxu0 %v1484
        %1494 = vmatprep.subr.mxu0 0.0
        %1495 = vmatpush1.msra.mxu0 0.0
        %1496 = vmatprep.subr.mxu0 0.0
        %1497 = vmatpush1.msra.mxu0 0.0
        %1498 = vmatprep.subr.mxu0 0.0
        %1499 = vmatpush1.msra.mxu0 0.0
        %1500 = vmatprep.subr.mxu0 0.0
        %1501 = vmatpush1.msra.mxu0 0.0
        %1502 = vmatprep.subr.mxu0 0.0
        %1503 = vmatpush1.msra.mxu0 0.0
        %1504 = vmatprep.subr.mxu0 0.0
        %1505 = vmatpush1.msra.mxu0 0.0
        %1506 = vmatprep.subr.mxu0 0.0
        %1507 = vmatpush1.msra.mxu0 0.0
        %1508 = vmatprep.subr.mxu0 0.0
        %1509 = vmatpush1.msra.mxu0 0.0
        %1510 = vmatprep.subr.mxu0 0.0
        %1511 = vmatpush1.msra.mxu0 0.0
        %1512 = vmatprep.subr.mxu0 0.0
        %1513 = vmatpush1.msra.mxu0 0.0
        %1514 = vmatprep.subr.mxu0 0.0
        %1515 = vmatpush1.msra.mxu0 0.0
        %1516 = vmatprep.subr.mxu0 0.0
        %1517 = vmatpush1.msra.mxu0 0.0
        %1518 = vmatprep.subr.mxu0 0.0
        %1519 = vmatpush1.msra.mxu0 0.0
        %1520 = vmatprep.subr.mxu0 0.0
        %1521 = vmatpush1.msra.mxu0 0.0
        %1522 = vmatprep.subr.mxu0 0.0
        %1523 = vmatpush1.msra.mxu0 0.0
        %1524 = vmatprep.subr.mxu0 0.0
        %1525 = vmatpush1.msra.mxu0 0.0
        %1526 = vmatprep.subr.mxu0 0.0
        %1527 = vmatpush1.msra.mxu0 0.0
        %1528 = vmatprep.subr.mxu0 0.0
        %1529 = vmatpush1.msra.mxu0 0.0
        %1530 = vmatprep.subr.mxu0 0.0
        %1531 = vmatpush1.msra.mxu0 0.0
        %1532 = vmatprep.subr.mxu0 0.0
        %1533 = vmatpush1.msra.mxu0 0.0
        %1534 = vmatprep.subr.mxu0 0.0
        %1535 = vmatpush1.msra.mxu0 0.0
        %1536 = vmatprep.subr.mxu0 0.0
        %1537 = vmatpush1.msra.mxu0 0.0
        %1538 = vmatprep.subr.mxu0 0.0
        %1539 = vmatpush1.msra.mxu0 0.0
        %1540 = vmatprep.subr.mxu0 0.0
        %1541 = vmatpush1.msra.mxu0 0.0
        %1542 = vmatprep.subr.mxu0 0.0
        %1543 = vmatpush1.msra.mxu0 0.0
        %1544 = vmatprep.subr.mxu0 0.0
        %1545 = vmatpush1.msra.mxu0 0.0
        %1546 = vmatprep.subr.mxu0 0.0
        %1547 = vmatpush1.msra.mxu0 0.0
        %1548 = vmatprep.subr.mxu0 0.0
        %1549 = vmatpush1.msra.mxu0 0.0
        %1550 = vmatprep.subr.mxu0 0.0
        %1551 = vmatpush1.msra.mxu0 0.0
        %1552 = vmatprep.subr.mxu0 0.0
        %1553 = vmatpush1.msra.mxu0 0.0
        %1554 = vmatprep.subr.mxu0 0.0
        %1555 = vmatpush1.msra.mxu0 0.0
        %1556 = vmatprep.mubr.f32.mxu0 0.0
        %1557 = vmatmul.mubr.f32.gmra.mrb[0].mxu0 %v1487
        %v1558 = vpop.f32.mrb[0].mxu0
        %v1559 = vadd.f32 0.0, %v1558
        %v1560 = vpop.f32.mrb[0].mxu0
        %v1561 = vadd.f32 0.0, %v1560
        %1562 = vmatprep.mubr.f32.mxu0 0.0
        %1563 = vmatmul.mubr.f32.gmra.mrb[0].mxu0 %v1490
        %v1564 = vpop.f32.mrb[0].mxu0
        %v1565 = vadd.f32 0.0, %v1564
        %v1566 = vpop.f32.mrb[0].mxu0
        %v1567 = vadd.f32 0.0, %v1566
        %1568 = vdwg.mxu0
        %1569 = vmatprep.subr.mxu0 0.0
        %1570 = vmatpush1.msra.mxu0 %v1485
        %1571 = vmatprep.subr.mxu0 0.0
        %1572 = vmatpush1.msra.mxu0 0.0
        %1573 = vmatprep.subr.mxu0 0.0
        %1574 = vmatpush1.msra.mxu0 0.0
        %1575 = vmatprep.subr.mxu0 0.0
        %1576 = vmatpush1.msra.mxu0 0.0
        %1577 = vmatprep.subr.mxu0 0.0
        %1578 = vmatpush1.msra.mxu0 0.0
        %1579 = vmatprep.subr.mxu0 0.0
        %1580 = vmatpush1.msra.mxu0 0.0
        %1581 = vmatprep.subr.mxu0 0.0
        %1582 = vmatpush1.msra.mxu0 0.0
        %1583 = vmatprep.subr.mxu0 0.0
        %1584 = vmatpush1.msra.mxu0 0.0
        %1585 = vmatprep.subr.mxu0 0.0
        %1586 = vmatpush1.msra.mxu0 0.0
        %1587 = vmatprep.subr.mxu0 0.0
        %1588 = vmatpush1.msra.mxu0 0.0
        %1589 = vmatprep.subr.mxu0 0.0
        %1590 = vmatpush1.msra.mxu0 0.0
        %1591 = vmatprep.subr.mxu0 0.0
        %1592 = vmatpush1.msra.mxu0 0.0
        %1593 = vmatprep.subr.mxu0 0.0
        %1594 = vmatpush1.msra.mxu0 0.0
        %1595 = vmatprep.subr.mxu0 0.0
        %1596 = vmatpush1.msra.mxu0 0.0
        %1597 = vmatprep.subr.mxu0 0.0
        %1598 = vmatpush1.msra.mxu0 0.0
        %1599 = vmatprep.subr.mxu0 0.0
        %1600 = vmatpush1.msra.mxu0 0.0
        %1601 = vmatprep.subr.mxu0 0.0
        %1602 = vmatpush1.msra.mxu0 0.0
        %1603 = vmatprep.subr.mxu0 0.0
        %1604 = vmatpush1.msra.mxu0 0.0
        %1605 = vmatprep.subr.mxu0 0.0
        %1606 = vmatpush1.msra.mxu0 0.0
        %1607 = vmatprep.subr.mxu0 0.0
        %1608 = vmatpush1.msra.mxu0 0.0
        %1609 = vmatprep.subr.mxu0 0.0
        %1610 = vmatpush1.msra.mxu0 0.0
        %1611 = vmatprep.subr.mxu0 0.0
        %1612 = vmatpush1.msra.mxu0 0.0
        %1613 = vmatprep.subr.mxu0 0.0
        %1614 = vmatpush1.msra.mxu0 0.0
        %1615 = vmatprep.subr.mxu0 0.0
        %1616 = vmatpush1.msra.mxu0 0.0
        %1617 = vmatprep.subr.mxu0 0.0
        %1618 = vmatpush1.msra.mxu0 0.0
        %1619 = vmatprep.subr.mxu0 0.0
        %1620 = vmatpush1.msra.mxu0 0.0
        %1621 = vmatprep.subr.mxu0 0.0
        %1622 = vmatpush1.msra.mxu0 0.0
        %1623 = vmatprep.subr.mxu0 0.0
        %1624 = vmatpush1.msra.mxu0 0.0
        %1625 = vmatprep.subr.mxu0 0.0
        %1626 = vmatpush1.msra.mxu0 0.0
        %1627 = vmatprep.subr.mxu0 0.0
        %1628 = vmatpush1.msra.mxu0 0.0
        %1629 = vmatprep.subr.mxu0 0.0
        %1630 = vmatpush1.msra.mxu0 0.0
        %1631 = vmatprep.subr.mxu0 0.0
        %1632 = vmatpush1.msra.mxu0 0.0
        %1633 = vmatprep.mubr.f32.mxu0 0.0
        %1634 = vmatmul.mubr.f32.gmra.mrb[0].mxu0 %v1487
        %v1635 = vpop.f32.mrb[0].mxu0
        %v1636 = vadd.f32 0.0, %v1635
        %v1637 = vpop.f32.mrb[0].mxu0
        %1638 = vmatprep.mubr.f32.mxu0 0.0
        %1639 = vmatmul.mubr.f32.gmra.mrb[0].mxu0 %v1490
        %v1640 = vpop.f32.mrb[0].mxu0
        %v1641 = vadd.f32 0.0, %v1640
        %v1642 = vpop.f32.mrb[0].mxu0
        %1643 = vdwg.mxu0
        %v1644 = vadd.f32 %v1467, %v1559
        %v1645 = vadd.f32 %v1468, %v1561
        %v1646 = vadd.f32 %v1469, %v1636
        %v1647 = vadd.f32 %v1470, %v1565
        %v1648 = vadd.f32 %v1471, %v1567
        %v1649 = vadd.f32 %v1472, %v1641
        %s1650 = scalar_lea.vmem %s2, 128
        %v1651 = vld [vmem:[%s1650] sm:$0xff]
        %v1652 = vld [vmem:[%s1650 + $0x8] sm:$0xff]
        %1653 = vrot.lane.b32.xlu0 %v250, 109
        %v1654 = vpop.permute.xlu0 %1653
        %1655 = vrot.lane.b32.xlu0 %v251, 109
        %v1656 = vpop.permute.xlu0 %1655
        %1657 = vrot.lane.b32.xlu0 %v252, 109
        %v1658 = vpop.permute.xlu0 %1657
        %vm1659 = vcmp.lt.s32.totalorder %v263, 109
        %v1660 = vsel %vm1659, %v1656, %v1658
        %v1661 = vsel %vm1659, %v1654, %v1656
        %v1662 = vsel %vm1659, %v1658, %v1654
        %v1664 = vsel %vm281, %v1651, 0
        %v1667 = vsel %vm281, %v1652, 0
        %1669 = vmatprep.subr.mxu0 %v1660
        %1670 = vmatpush1.msra.mxu0 %v1661
        %1671 = vmatprep.subr.mxu0 0.0
        %1672 = vmatpush1.msra.mxu0 0.0
        %1673 = vmatprep.subr.mxu0 0.0
        %1674 = vmatpush1.msra.mxu0 0.0
        %1675 = vmatprep.subr.mxu0 0.0
        %1676 = vmatpush1.msra.mxu0 0.0
        %1677 = vmatprep.subr.mxu0 0.0
        %1678 = vmatpush1.msra.mxu0 0.0
        %1679 = vmatprep.subr.mxu0 0.0
        %1680 = vmatpush1.msra.mxu0 0.0
        %1681 = vmatprep.subr.mxu0 0.0
        %1682 = vmatpush1.msra.mxu0 0.0
        %1683 = vmatprep.subr.mxu0 0.0
        %1684 = vmatpush1.msra.mxu0 0.0
        %1685 = vmatprep.subr.mxu0 0.0
        %1686 = vmatpush1.msra.mxu0 0.0
        %1687 = vmatprep.subr.mxu0 0.0
        %1688 = vmatpush1.msra.mxu0 0.0
        %1689 = vmatprep.subr.mxu0 0.0
        %1690 = vmatpush1.msra.mxu0 0.0
        %1691 = vmatprep.subr.mxu0 0.0
        %1692 = vmatpush1.msra.mxu0 0.0
        %1693 = vmatprep.subr.mxu0 0.0
        %1694 = vmatpush1.msra.mxu0 0.0
        %1695 = vmatprep.subr.mxu0 0.0
        %1696 = vmatpush1.msra.mxu0 0.0
        %1697 = vmatprep.subr.mxu0 0.0
        %1698 = vmatpush1.msra.mxu0 0.0
        %1699 = vmatprep.subr.mxu0 0.0
        %1700 = vmatpush1.msra.mxu0 0.0
        %1701 = vmatprep.subr.mxu0 0.0
        %1702 = vmatpush1.msra.mxu0 0.0
        %1703 = vmatprep.subr.mxu0 0.0
        %1704 = vmatpush1.msra.mxu0 0.0
        %1705 = vmatprep.subr.mxu0 0.0
        %1706 = vmatpush1.msra.mxu0 0.0
        %1707 = vmatprep.subr.mxu0 0.0
        %1708 = vmatpush1.msra.mxu0 0.0
        %1709 = vmatprep.subr.mxu0 0.0
        %1710 = vmatpush1.msra.mxu0 0.0
        %1711 = vmatprep.subr.mxu0 0.0
        %1712 = vmatpush1.msra.mxu0 0.0
        %1713 = vmatprep.subr.mxu0 0.0
        %1714 = vmatpush1.msra.mxu0 0.0
        %1715 = vmatprep.subr.mxu0 0.0
        %1716 = vmatpush1.msra.mxu0 0.0
        %1717 = vmatprep.subr.mxu0 0.0
        %1718 = vmatpush1.msra.mxu0 0.0
        %1719 = vmatprep.subr.mxu0 0.0
        %1720 = vmatpush1.msra.mxu0 0.0
        %1721 = vmatprep.subr.mxu0 0.0
        %1722 = vmatpush1.msra.mxu0 0.0
        %1723 = vmatprep.subr.mxu0 0.0
        %1724 = vmatpush1.msra.mxu0 0.0
        %1725 = vmatprep.subr.mxu0 0.0
        %1726 = vmatpush1.msra.mxu0 0.0
        %1727 = vmatprep.subr.mxu0 0.0
        %1728 = vmatpush1.msra.mxu0 0.0
        %1729 = vmatprep.subr.mxu0 0.0
        %1730 = vmatpush1.msra.mxu0 0.0
        %1731 = vmatprep.subr.mxu0 0.0
        %1732 = vmatpush1.msra.mxu0 0.0
        %1733 = vmatprep.mubr.f32.mxu0 0.0
        %1734 = vmatmul.mubr.f32.gmra.mrb[0].mxu0 %v1664
        %v1735 = vpop.f32.mrb[0].mxu0
        %v1736 = vadd.f32 0.0, %v1735
        %v1737 = vpop.f32.mrb[0].mxu0
        %v1738 = vadd.f32 0.0, %v1737
        %1739 = vmatprep.mubr.f32.mxu0 0.0
        %1740 = vmatmul.mubr.f32.gmra.mrb[0].mxu0 %v1667
        %v1741 = vpop.f32.mrb[0].mxu0
        %v1742 = vadd.f32 0.0, %v1741
        %v1743 = vpop.f32.mrb[0].mxu0
        %v1744 = vadd.f32 0.0, %v1743
        %1745 = vdwg.mxu0
        %1746 = vmatprep.subr.mxu0 0.0
        %1747 = vmatpush1.msra.mxu0 %v1662
        %1748 = vmatprep.subr.mxu0 0.0
        %1749 = vmatpush1.msra.mxu0 0.0
        %1750 = vmatprep.subr.mxu0 0.0
        %1751 = vmatpush1.msra.mxu0 0.0
        %1752 = vmatprep.subr.mxu0 0.0
        %1753 = vmatpush1.msra.mxu0 0.0
        %1754 = vmatprep.subr.mxu0 0.0
        %1755 = vmatpush1.msra.mxu0 0.0
        %1756 = vmatprep.subr.mxu0 0.0
        %1757 = vmatpush1.msra.mxu0 0.0
        %1758 = vmatprep.subr.mxu0 0.0
        %1759 = vmatpush1.msra.mxu0 0.0
        %1760 = vmatprep.subr.mxu0 0.0
        %1761 = vmatpush1.msra.mxu0 0.0
        %1762 = vmatprep.subr.mxu0 0.0
        %1763 = vmatpush1.msra.mxu0 0.0
        %1764 = vmatprep.subr.mxu0 0.0
        %1765 = vmatpush1.msra.mxu0 0.0
        %1766 = vmatprep.subr.mxu0 0.0
        %1767 = vmatpush1.msra.mxu0 0.0
        %1768 = vmatprep.subr.mxu0 0.0
        %1769 = vmatpush1.msra.mxu0 0.0
        %1770 = vmatprep.subr.mxu0 0.0
        %1771 = vmatpush1.msra.mxu0 0.0
        %1772 = vmatprep.subr.mxu0 0.0
        %1773 = vmatpush1.msra.mxu0 0.0
        %1774 = vmatprep.subr.mxu0 0.0
        %1775 = vmatpush1.msra.mxu0 0.0
        %1776 = vmatprep.subr.mxu0 0.0
        %1777 = vmatpush1.msra.mxu0 0.0
        %1778 = vmatprep.subr.mxu0 0.0
        %1779 = vmatpush1.msra.mxu0 0.0
        %1780 = vmatprep.subr.mxu0 0.0
        %1781 = vmatpush1.msra.mxu0 0.0
        %1782 = vmatprep.subr.mxu0 0.0
        %1783 = vmatpush1.msra.mxu0 0.0
        %1784 = vmatprep.subr.mxu0 0.0
        %1785 = vmatpush1.msra.mxu0 0.0
        %1786 = vmatprep.subr.mxu0 0.0
        %1787 = vmatpush1.msra.mxu0 0.0
        %1788 = vmatprep.subr.mxu0 0.0
        %1789 = vmatpush1.msra.mxu0 0.0
        %1790 = vmatprep.subr.mxu0 0.0
        %1791 = vmatpush1.msra.mxu0 0.0
        %1792 = vmatprep.subr.mxu0 0.0
        %1793 = vmatpush1.msra.mxu0 0.0
        %1794 = vmatprep.subr.mxu0 0.0
        %1795 = vmatpush1.msra.mxu0 0.0
        %1796 = vmatprep.subr.mxu0 0.0
        %1797 = vmatpush1.msra.mxu0 0.0
        %1798 = vmatprep.subr.mxu0 0.0
        %1799 = vmatpush1.msra.mxu0 0.0
        %1800 = vmatprep.subr.mxu0 0.0
        %1801 = vmatpush1.msra.mxu0 0.0
        %1802 = vmatprep.subr.mxu0 0.0
        %1803 = vmatpush1.msra.mxu0 0.0
        %1804 = vmatprep.subr.mxu0 0.0
        %1805 = vmatpush1.msra.mxu0 0.0
        %1806 = vmatprep.subr.mxu0 0.0
        %1807 = vmatpush1.msra.mxu0 0.0
        %1808 = vmatprep.subr.mxu0 0.0
        %1809 = vmatpush1.msra.mxu0 0.0
        %1810 = vmatprep.mubr.f32.mxu0 0.0
        %1811 = vmatmul.mubr.f32.gmra.mrb[0].mxu0 %v1664
        %v1812 = vpop.f32.mrb[0].mxu0
        %v1813 = vadd.f32 0.0, %v1812
        %v1814 = vpop.f32.mrb[0].mxu0
        %1815 = vmatprep.mubr.f32.mxu0 0.0
        %1816 = vmatmul.mubr.f32.gmra.mrb[0].mxu0 %v1667
        %v1817 = vpop.f32.mrb[0].mxu0
        %v1818 = vadd.f32 0.0, %v1817
        %v1819 = vpop.f32.mrb[0].mxu0
        %1820 = vdwg.mxu0
        %v1821 = vadd.f32 %v1644, %v1736
        %v1822 = vadd.f32 %v1645, %v1738
        %v1823 = vadd.f32 %v1646, %v1813
        %v1824 = vadd.f32 %v1647, %v1742
        %v1825 = vadd.f32 %v1648, %v1744
        %v1826 = vadd.f32 %v1649, %v1818
        %v1827 = vld [vmem:[%s3] sm:$0xff]
        %v1828 = vld [vmem:[%s3 + $0x8] sm:$0xff]
        %1830 = vset.pattern.permute.xlu0 0
        %1831 = vperm.xlu0 %1830, %v1827
        %v1832 = vpop.permute.xlu0 %1831
        %1835 = vset.pattern.permute.xlu0 0
        %1836 = vperm.xlu0 %1835, %v1828
        %v1837 = vpop.permute.xlu0 %1836
        %v1839 = vadd.f32 %v1821, %v1832
        %v1840 = vadd.f32 %v1822, %v1832
        %v1841 = vadd.f32 %v1823, %v1832
        %v1842 = vadd.f32 %v1824, %v1837
        %v1843 = vadd.f32 %v1825, %v1837
        %v1844 = vadd.f32 %v1826, %v1837
        %vm1845 = vcmp.ge.f32.partialorder %v1839, 0.0
        %vm1846 = vcmp.ge.f32.partialorder %v1840, 0.0
        %vm1847 = vcmp.ge.f32.partialorder %v1841, 0.0
        %vm1848 = vcmp.ge.f32.partialorder %v1842, 0.0
        %vm1849 = vcmp.ge.f32.partialorder %v1843, 0.0
        %vm1850 = vcmp.ge.f32.partialorder %v1844, 0.0
        %v1851 = vmul.f32 %v1839, 0.01
        %v1852 = vmul.f32 %v1840, 0.01
        %v1853 = vmul.f32 %v1841, 0.01
        %v1854 = vmul.f32 %v1842, 0.01
        %v1855 = vmul.f32 %v1843, 0.01
        %v1856 = vmul.f32 %v1844, 0.01
        %v1857 = vsel %vm1845, %v1839, %v1851
        %v1858 = vsel %vm1846, %v1840, %v1852
        %v1859 = vsel %vm1847, %v1841, %v1853
        %v1860 = vsel %vm1848, %v1842, %v1854
        %v1861 = vsel %vm1849, %v1843, %v1855
        %v1862 = vsel %vm1850, %v1844, %v1856
        %s1863 = scalar_lea.vmem %s3, 16
        %v1864 = vld [vmem:[%s1863] sm:$0xff]
        %v1865 = vld [vmem:[%s1863 + $0x8] sm:$0xff]
        %1867 = vset.pattern.permute.xlu0 0
        %1868 = vperm.xlu0 %1867, %v1864
        %v1869 = vpop.permute.xlu0 %1868
        %1872 = vset.pattern.permute.xlu0 0
        %1873 = vperm.xlu0 %1872, %v1865
        %v1874 = vpop.permute.xlu0 %1873
        %v1876 = vmul.f32 %v1857, %v1869
        %v1877 = vmul.f32 %v1858, %v1869
        %v1878 = vmul.f32 %v1859, %v1869
        %v1879 = vmul.f32 %v1860, %v1874
        %v1880 = vmul.f32 %v1861, %v1874
        %v1881 = vmul.f32 %v1862, %v1874
        %s1882 = scalar_lea.vmem %s3, 32
        %v1883 = vld [vmem:[%s1882] sm:$0xff]
        %v1884 = vld [vmem:[%s1882 + $0x8] sm:$0xff]
        %1886 = vset.pattern.permute.xlu0 0
        %1887 = vperm.xlu0 %1886, %v1883
        %v1888 = vpop.permute.xlu0 %1887
        %1891 = vset.pattern.permute.xlu0 0
        %1892 = vperm.xlu0 %1891, %v1884
        %v1893 = vpop.permute.xlu0 %1892
        %v1895 = vadd.f32 %v1876, %v1888
        %v1896 = vadd.f32 %v1877, %v1888
        %v1897 = vadd.f32 %v1878, %v1888
        %v1898 = vadd.f32 %v1879, %v1893
        %v1899 = vadd.f32 %v1880, %v1893
        %v1900 = vadd.f32 %v1881, %v1893
        %v1902 = vlaneseq
        %v1903 = vshrl.u32 %v1902, 7
        %v1904 = vsub.s32 0, %v1903
        %v1905 = vrot.slane %v253, %v1904
        %v1906 = vlaneseq
        %v1907 = vshrl.u32 %v1906, 7
        %v1908 = vsub.s32 1, %v1907
        %v1909 = vrot.slane %v253, %v1908
        %v1910 = vlaneseq
        %v1911 = vshrl.u32 %v1910, 7
        %v1912 = vsub.s32 2, %v1911
        %v1913 = vrot.slane %v253, %v1912
        %v1917 = vmul.f32 %v1895, %v1905
        %v1918 = vmul.f32 %v1896, %v1909
        %v1919 = vmul.f32 %v1897, %v1913
        %v1920 = vmul.f32 %v1898, %v1905
        %v1921 = vmul.f32 %v1899, %v1909
        %v1922 = vmul.f32 %v1900, %v1913
        %v1923 = vld [vmem:[%s4] sm:$0xff]
        %v1924 = vld [vmem:[%s4 + $0x8] sm:$0xff]
        %1925 = vrot.lane.b32.xlu0 %v1917, 19
        %v1926 = vpop.permute.xlu0 %1925
        %1927 = vrot.lane.b32.xlu0 %v1920, 19
        %v1928 = vpop.permute.xlu0 %1927
        %1929 = vrot.lane.b32.xlu0 %v1918, 19
        %v1930 = vpop.permute.xlu0 %1929
        %1931 = vrot.lane.b32.xlu0 %v1921, 19
        %v1932 = vpop.permute.xlu0 %1931
        %1933 = vrot.lane.b32.xlu0 %v1919, 19
        %v1934 = vpop.permute.xlu0 %1933
        %1935 = vrot.lane.b32.xlu0 %v1922, 19
        %v1936 = vpop.permute.xlu0 %1935
        %v1937 = vsel %vm264, %v1930, %v1934
        %v1938 = vsel %vm264, %v1932, %v1936
        %v1939 = vsel %vm264, %v1926, %v1930
        %v1940 = vsel %vm264, %v1928, %v1932
        %v1941 = vsel %vm264, %v1934, %v1926
        %v1942 = vsel %vm264, %v1936, %v1928
        %s1943 = scalar_lea.vmem %s4, 16
        %v1944 = vld [vmem:[%s1943] sm:$0xff]
        %v1945 = vld [vmem:[%s1943 + $0x8] sm:$0xff]
        %1946 = vrot.lane.b32.xlu0 %v1917, 18
        %v1947 = vpop.permute.xlu0 %1946
        %1948 = vrot.lane.b32.xlu0 %v1920, 18
        %v1949 = vpop.permute.xlu0 %1948
        %1950 = vrot.lane.b32.xlu0 %v1918, 18
        %v1951 = vpop.permute.xlu0 %1950
        %1952 = vrot.lane.b32.xlu0 %v1921, 18
        %v1953 = vpop.permute.xlu0 %1952
        %1954 = vrot.lane.b32.xlu0 %v1919, 18
        %v1955 = vpop.permute.xlu0 %1954
        %1956 = vrot.lane.b32.xlu0 %v1922, 18
        %v1957 = vpop.permute.xlu0 %1956
        %v1958 = vsel %vm277, %v1951, %v1955
        %v1959 = vsel %vm277, %v1953, %v1957
        %v1960 = vsel %vm277, %v1947, %v1951
        %v1961 = vsel %vm277, %v1949, %v1953
        %v1962 = vsel %vm277, %v1955, %v1947
        %v1963 = vsel %vm277, %v1957, %v1949
        %vm1964 = vcmask 130048
        %v1966 = vsel %vm1964, %v1944, 0
        %v1969 = vsel %vm1964, %v1945, 0
        %1971 = vmatprep.subr.mxu0 %v1960
        %1972 = vmatpush1.msra.mxu0 %v1962
        %1973 = vmatprep.subr.mxu0 %v1961
        %1974 = vmatpush1.msra.mxu0 %v1963
        %1975 = vmatprep.subr.mxu0 0.0
        %1976 = vmatpush1.msra.mxu0 0.0
        %1977 = vmatprep.subr.mxu0 0.0
        %1978 = vmatpush1.msra.mxu0 0.0
        %1979 = vmatprep.subr.mxu0 0.0
        %1980 = vmatpush1.msra.mxu0 0.0
        %1981 = vmatprep.subr.mxu0 0.0
        %1982 = vmatpush1.msra.mxu0 0.0
        %1983 = vmatprep.subr.mxu0 0.0
        %1984 = vmatpush1.msra.mxu0 0.0
        %1985 = vmatprep.subr.mxu0 0.0
        %1986 = vmatpush1.msra.mxu0 0.0
        %1987 = vmatprep.subr.mxu0 0.0
        %1988 = vmatpush1.msra.mxu0 0.0
        %1989 = vmatprep.subr.mxu0 0.0
        %1990 = vmatpush1.msra.mxu0 0.0
        %1991 = vmatprep.subr.mxu0 0.0
        %1992 = vmatpush1.msra.mxu0 0.0
        %1993 = vmatprep.subr.mxu0 0.0
        %1994 = vmatpush1.msra.mxu0 0.0
        %1995 = vmatprep.subr.mxu0 0.0
        %1996 = vmatpush1.msra.mxu0 0.0
        %1997 = vmatprep.subr.mxu0 0.0
        %1998 = vmatpush1.msra.mxu0 0.0
        %1999 = vmatprep.subr.mxu0 0.0
        %2000 = vmatpush1.msra.mxu0 0.0
        %2001 = vmatprep.subr.mxu0 0.0
        %2002 = vmatpush1.msra.mxu0 0.0
        %2003 = vmatprep.subr.mxu0 0.0
        %2004 = vmatpush1.msra.mxu0 0.0
        %2005 = vmatprep.subr.mxu0 0.0
        %2006 = vmatpush1.msra.mxu0 0.0
        %2007 = vmatprep.subr.mxu0 0.0
        %2008 = vmatpush1.msra.mxu0 0.0
        %2009 = vmatprep.subr.mxu0 0.0
        %2010 = vmatpush1.msra.mxu0 0.0
        %2011 = vmatprep.subr.mxu0 0.0
        %2012 = vmatpush1.msra.mxu0 0.0
        %2013 = vmatprep.subr.mxu0 0.0
        %2014 = vmatpush1.msra.mxu0 0.0
        %2015 = vmatprep.subr.mxu0 0.0
        %2016 = vmatpush1.msra.mxu0 0.0
        %2017 = vmatprep.subr.mxu0 0.0
        %2018 = vmatpush1.msra.mxu0 0.0
        %2019 = vmatprep.subr.mxu0 0.0
        %2020 = vmatpush1.msra.mxu0 0.0
        %2021 = vmatprep.subr.mxu0 0.0
        %2022 = vmatpush1.msra.mxu0 0.0
        %2023 = vmatprep.subr.mxu0 0.0
        %2024 = vmatpush1.msra.mxu0 0.0
        %2025 = vmatprep.subr.mxu0 0.0
        %2026 = vmatpush1.msra.mxu0 0.0
        %2027 = vmatprep.subr.mxu0 0.0
        %2028 = vmatpush1.msra.mxu0 0.0
        %2029 = vmatprep.subr.mxu0 0.0
        %2030 = vmatpush1.msra.mxu0 0.0
        %2031 = vmatprep.subr.mxu0 0.0
        %2032 = vmatpush1.msra.mxu0 0.0
        %2033 = vmatprep.subr.mxu0 0.0
        %2034 = vmatpush1.msra.mxu0 0.0
        %2035 = vmatprep.mubr.f32.mxu0 0.0
        %2036 = vmatmul.mubr.f32.gmra.mrb[0].mxu0 %v1966
        %v2037 = vpop.f32.mrb[0].mxu0
        %v2038 = vadd.f32 0.0, %v2037
        %v2039 = vpop.f32.mrb[0].mxu0
        %v2040 = vadd.f32 0.0, %v2039
        %2041 = vmatprep.mubr.f32.mxu0 0.0
        %2042 = vmatmul.mubr.f32.gmra.mrb[0].mxu0 %v1969
        %v2043 = vpop.f32.mrb[0].mxu0
        %v2044 = vadd.f32 0.0, %v2043
        %v2045 = vpop.f32.mrb[0].mxu0
        %v2046 = vadd.f32 0.0, %v2045
        %2047 = vdwg.mxu0
        %2048 = vmatprep.subr.mxu0 0.0
        %2049 = vmatpush1.msra.mxu0 %v1958
        %2050 = vmatprep.subr.mxu0 0.0
        %2051 = vmatpush1.msra.mxu0 %v1959
        %2052 = vmatprep.subr.mxu0 0.0
        %2053 = vmatpush1.msra.mxu0 0.0
        %2054 = vmatprep.subr.mxu0 0.0
        %2055 = vmatpush1.msra.mxu0 0.0
        %2056 = vmatprep.subr.mxu0 0.0
        %2057 = vmatpush1.msra.mxu0 0.0
        %2058 = vmatprep.subr.mxu0 0.0
        %2059 = vmatpush1.msra.mxu0 0.0
        %2060 = vmatprep.subr.mxu0 0.0
        %2061 = vmatpush1.msra.mxu0 0.0
        %2062 = vmatprep.subr.mxu0 0.0
        %2063 = vmatpush1.msra.mxu0 0.0
        %2064 = vmatprep.subr.mxu0 0.0
        %2065 = vmatpush1.msra.mxu0 0.0
        %2066 = vmatprep.subr.mxu0 0.0
        %2067 = vmatpush1.msra.mxu0 0.0
        %2068 = vmatprep.subr.mxu0 0.0
        %2069 = vmatpush1.msra.mxu0 0.0
        %2070 = vmatprep.subr.mxu0 0.0
        %2071 = vmatpush1.msra.mxu0 0.0
        %2072 = vmatprep.subr.mxu0 0.0
        %2073 = vmatpush1.msra.mxu0 0.0
        %2074 = vmatprep.subr.mxu0 0.0
        %2075 = vmatpush1.msra.mxu0 0.0
        %2076 = vmatprep.subr.mxu0 0.0
        %2077 = vmatpush1.msra.mxu0 0.0
        %2078 = vmatprep.subr.mxu0 0.0
        %2079 = vmatpush1.msra.mxu0 0.0
        %2080 = vmatprep.subr.mxu0 0.0
        %2081 = vmatpush1.msra.mxu0 0.0
        %2082 = vmatprep.subr.mxu0 0.0
        %2083 = vmatpush1.msra.mxu0 0.0
        %2084 = vmatprep.subr.mxu0 0.0
        %2085 = vmatpush1.msra.mxu0 0.0
        %2086 = vmatprep.subr.mxu0 0.0
        %2087 = vmatpush1.msra.mxu0 0.0
        %2088 = vmatprep.subr.mxu0 0.0
        %2089 = vmatpush1.msra.mxu0 0.0
        %2090 = vmatprep.subr.mxu0 0.0
        %2091 = vmatpush1.msra.mxu0 0.0
        %2092 = vmatprep.subr.mxu0 0.0
        %2093 = vmatpush1.msra.mxu0 0.0
        %2094 = vmatprep.subr.mxu0 0.0
        %2095 = vmatpush1.msra.mxu0 0.0
        %2096 = vmatprep.subr.mxu0 0.0
        %2097 = vmatpush1.msra.mxu0 0.0
        %2098 = vmatprep.subr.mxu0 0.0
        %2099 = vmatpush1.msra.mxu0 0.0
        %2100 = vmatprep.subr.mxu0 0.0
        %2101 = vmatpush1.msra.mxu0 0.0
        %2102 = vmatprep.subr.mxu0 0.0
        %2103 = vmatpush1.msra.mxu0 0.0
        %2104 = vmatprep.subr.mxu0 0.0
        %2105 = vmatpush1.msra.mxu0 0.0
        %2106 = vmatprep.subr.mxu0 0.0
        %2107 = vmatpush1.msra.mxu0 0.0
        %2108 = vmatprep.subr.mxu0 0.0
        %2109 = vmatpush1.msra.mxu0 0.0
        %2110 = vmatprep.subr.mxu0 0.0
        %2111 = vmatpush1.msra.mxu0 0.0
        %2112 = vmatprep.mubr.f32.mxu0 0.0
        %2113 = vmatmul.mubr.f32.gmra.mrb[0].mxu0 %v1966
        %v2114 = vpop.f32.mrb[0].mxu0
        %v2115 = vadd.f32 0.0, %v2114
        %v2116 = vpop.f32.mrb[0].mxu0
        %2117 = vmatprep.mubr.f32.mxu0 0.0
        %2118 = vmatmul.mubr.f32.gmra.mrb[0].mxu0 %v1969
        %v2119 = vpop.f32.mrb[0].mxu0
        %v2120 = vadd.f32 0.0, %v2119
        %v2121 = vpop.f32.mrb[0].mxu0
        %2122 = vdwg.mxu0
        %v2124 = vsel %vm1964, %v1923, 0
        %v2127 = vsel %vm1964, %v1924, 0
        %2129 = vmatprep.subr.mxu0 %v1939
        %2130 = vmatpush1.msra.mxu0 %v1941
        %2131 = vmatprep.subr.mxu0 %v1940
        %2132 = vmatpush1.msra.mxu0 %v1942
        %2133 = vmatprep.subr.mxu0 0.0
        %2134 = vmatpush1.msra.mxu0 0.0
        %2135 = vmatprep.subr.mxu0 0.0
        %2136 = vmatpush1.msra.mxu0 0.0
        %2137 = vmatprep.subr.mxu0 0.0
        %2138 = vmatpush1.msra.mxu0 0.0
        %2139 = vmatprep.subr.mxu0 0.0
        %2140 = vmatpush1.msra.mxu0 0.0
        %2141 = vmatprep.subr.mxu0 0.0
        %2142 = vmatpush1.msra.mxu0 0.0
        %2143 = vmatprep.subr.mxu0 0.0
        %2144 = vmatpush1.msra.mxu0 0.0
        %2145 = vmatprep.subr.mxu0 0.0
        %2146 = vmatpush1.msra.mxu0 0.0
        %2147 = vmatprep.subr.mxu0 0.0
        %2148 = vmatpush1.msra.mxu0 0.0
        %2149 = vmatprep.subr.mxu0 0.0
        %2150 = vmatpush1.msra.mxu0 0.0
        %2151 = vmatprep.subr.mxu0 0.0
        %2152 = vmatpush1.msra.mxu0 0.0
        %2153 = vmatprep.subr.mxu0 0.0
        %2154 = vmatpush1.msra.mxu0 0.0
        %2155 = vmatprep.subr.mxu0 0.0
        %2156 = vmatpush1.msra.mxu0 0.0
        %2157 = vmatprep.subr.mxu0 0.0
        %2158 = vmatpush1.msra.mxu0 0.0
        %2159 = vmatprep.subr.mxu0 0.0
        %2160 = vmatpush1.msra.mxu0 0.0
        %2161 = vmatprep.subr.mxu0 0.0
        %2162 = vmatpush1.msra.mxu0 0.0
        %2163 = vmatprep.subr.mxu0 0.0
        %2164 = vmatpush1.msra.mxu0 0.0
        %2165 = vmatprep.subr.mxu0 0.0
        %2166 = vmatpush1.msra.mxu0 0.0
        %2167 = vmatprep.subr.mxu0 0.0
        %2168 = vmatpush1.msra.mxu0 0.0
        %2169 = vmatprep.subr.mxu0 0.0
        %2170 = vmatpush1.msra.mxu0 0.0
        %2171 = vmatprep.subr.mxu0 0.0
        %2172 = vmatpush1.msra.mxu0 0.0
        %2173 = vmatprep.subr.mxu0 0.0
        %2174 = vmatpush1.msra.mxu0 0.0
        %2175 = vmatprep.subr.mxu0 0.0
        %2176 = vmatpush1.msra.mxu0 0.0
        %2177 = vmatprep.subr.mxu0 0.0
        %2178 = vmatpush1.msra.mxu0 0.0
        %2179 = vmatprep.subr.mxu0 0.0
        %2180 = vmatpush1.msra.mxu0 0.0
        %2181 = vmatprep.subr.mxu0 0.0
        %2182 = vmatpush1.msra.mxu0 0.0
        %2183 = vmatprep.subr.mxu0 0.0
        %2184 = vmatpush1.msra.mxu0 0.0
        %2185 = vmatprep.subr.mxu0 0.0
        %2186 = vmatpush1.msra.mxu0 0.0
        %2187 = vmatprep.subr.mxu0 0.0
        %2188 = vmatpush1.msra.mxu0 0.0
        %2189 = vmatprep.subr.mxu0 0.0
        %2190 = vmatpush1.msra.mxu0 0.0
        %2191 = vmatprep.subr.mxu0 0.0
        %2192 = vmatpush1.msra.mxu0 0.0
        %2193 = vmatprep.mubr.f32.mxu0 0.0
        %2194 = vmatmul.mubr.f32.gmra.mrb[0].mxu0 %v2124
        %v2195 = vpop.f32.mrb[0].mxu0
        %v2196 = vadd.f32 %v2038, %v2195
        %v2197 = vpop.f32.mrb[0].mxu0
        %v2198 = vadd.f32 %v2040, %v2197
        %2199 = vmatprep.mubr.f32.mxu0 0.0
        %2200 = vmatmul.mubr.f32.gmra.mrb[0].mxu0 %v2127
        %v2201 = vpop.f32.mrb[0].mxu0
        %v2202 = vadd.f32 %v2044, %v2201
        %v2203 = vpop.f32.mrb[0].mxu0
        %v2204 = vadd.f32 %v2046, %v2203
        %2205 = vdwg.mxu0
        %2206 = vmatprep.subr.mxu0 0.0
        %2207 = vmatpush1.msra.mxu0 %v1937
        %2208 = vmatprep.subr.mxu0 0.0
        %2209 = vmatpush1.msra.mxu0 %v1938
        %2210 = vmatprep.subr.mxu0 0.0
        %2211 = vmatpush1.msra.mxu0 0.0
        %2212 = vmatprep.subr.mxu0 0.0
        %2213 = vmatpush1.msra.mxu0 0.0
        %2214 = vmatprep.subr.mxu0 0.0
        %2215 = vmatpush1.msra.mxu0 0.0
        %2216 = vmatprep.subr.mxu0 0.0
        %2217 = vmatpush1.msra.mxu0 0.0
        %2218 = vmatprep.subr.mxu0 0.0
        %2219 = vmatpush1.msra.mxu0 0.0
        %2220 = vmatprep.subr.mxu0 0.0
        %2221 = vmatpush1.msra.mxu0 0.0
        %2222 = vmatprep.subr.mxu0 0.0
        %2223 = vmatpush1.msra.mxu0 0.0
        %2224 = vmatprep.subr.mxu0 0.0
        %2225 = vmatpush1.msra.mxu0 0.0
        %2226 = vmatprep.subr.mxu0 0.0
        %2227 = vmatpush1.msra.mxu0 0.0
        %2228 = vmatprep.subr.mxu0 0.0
        %2229 = vmatpush1.msra.mxu0 0.0
        %2230 = vmatprep.subr.mxu0 0.0
        %2231 = vmatpush1.msra.mxu0 0.0
        %2232 = vmatprep.subr.mxu0 0.0
        %2233 = vmatpush1.msra.mxu0 0.0
        %2234 = vmatprep.subr.mxu0 0.0
        %2235 = vmatpush1.msra.mxu0 0.0
        %2236 = vmatprep.subr.mxu0 0.0
        %2237 = vmatpush1.msra.mxu0 0.0
        %2238 = vmatprep.subr.mxu0 0.0
        %2239 = vmatpush1.msra.mxu0 0.0
        %2240 = vmatprep.subr.mxu0 0.0
        %2241 = vmatpush1.msra.mxu0 0.0
        %2242 = vmatprep.subr.mxu0 0.0
        %2243 = vmatpush1.msra.mxu0 0.0
        %2244 = vmatprep.subr.mxu0 0.0
        %2245 = vmatpush1.msra.mxu0 0.0
        %2246 = vmatprep.subr.mxu0 0.0
        %2247 = vmatpush1.msra.mxu0 0.0
        %2248 = vmatprep.subr.mxu0 0.0
        %2249 = vmatpush1.msra.mxu0 0.0
        %2250 = vmatprep.subr.mxu0 0.0
        %2251 = vmatpush1.msra.mxu0 0.0
        %2252 = vmatprep.subr.mxu0 0.0
        %2253 = vmatpush1.msra.mxu0 0.0
        %2254 = vmatprep.subr.mxu0 0.0
        %2255 = vmatpush1.msra.mxu0 0.0
        %2256 = vmatprep.subr.mxu0 0.0
        %2257 = vmatpush1.msra.mxu0 0.0
        %2258 = vmatprep.subr.mxu0 0.0
        %2259 = vmatpush1.msra.mxu0 0.0
        %2260 = vmatprep.subr.mxu0 0.0
        %2261 = vmatpush1.msra.mxu0 0.0
        %2262 = vmatprep.subr.mxu0 0.0
        %2263 = vmatpush1.msra.mxu0 0.0
        %2264 = vmatprep.subr.mxu0 0.0
        %2265 = vmatpush1.msra.mxu0 0.0
        %2266 = vmatprep.subr.mxu0 0.0
        %2267 = vmatpush1.msra.mxu0 0.0
        %2268 = vmatprep.subr.mxu0 0.0
        %2269 = vmatpush1.msra.mxu0 0.0
        %2270 = vmatprep.mubr.f32.mxu0 0.0
        %2271 = vmatmul.mubr.f32.gmra.mrb[0].mxu0 %v2124
        %v2272 = vpop.f32.mrb[0].mxu0
        %v2273 = vadd.f32 %v2115, %v2272
        %v2274 = vpop.f32.mrb[0].mxu0
        %2275 = vmatprep.mubr.f32.mxu0 0.0
        %2276 = vmatmul.mubr.f32.gmra.mrb[0].mxu0 %v2127
        %v2277 = vpop.f32.mrb[0].mxu0
        %v2278 = vadd.f32 %v2120, %v2277
        %v2279 = vpop.f32.mrb[0].mxu0
        %2280 = vdwg.mxu0
        %s2281 = scalar_lea.vmem %s4, 32
        %v2282 = vld [vmem:[%s2281] sm:$0xff]
        %v2283 = vld [vmem:[%s2281 + $0x8] sm:$0xff]
        %2284 = vrot.lane.b32.xlu0 %v1917, 17
        %v2285 = vpop.permute.xlu0 %2284
        %2286 = vrot.lane.b32.xlu0 %v1920, 17
        %v2287 = vpop.permute.xlu0 %2286
        %2288 = vrot.lane.b32.xlu0 %v1918, 17
        %v2289 = vpop.permute.xlu0 %2288
        %2290 = vrot.lane.b32.xlu0 %v1921, 17
        %v2291 = vpop.permute.xlu0 %2290
        %2292 = vrot.lane.b32.xlu0 %v1919, 17
        %v2293 = vpop.permute.xlu0 %2292
        %2294 = vrot.lane.b32.xlu0 %v1922, 17
        %v2295 = vpop.permute.xlu0 %2294
        %v2296 = vsel %vm607, %v2289, %v2293
        %v2297 = vsel %vm607, %v2291, %v2295
        %v2298 = vsel %vm607, %v2285, %v2289
        %v2299 = vsel %vm607, %v2287, %v2291
        %v2300 = vsel %vm607, %v2293, %v2285
        %v2301 = vsel %vm607, %v2295, %v2287
        %v2303 = vsel %vm1964, %v2282, 0
        %v2306 = vsel %vm1964, %v2283, 0
        %2308 = vmatprep.subr.mxu0 %v2298
        %2309 = vmatpush1.msra.mxu0 %v2300
        %2310 = vmatprep.subr.mxu0 %v2299
        %2311 = vmatpush1.msra.mxu0 %v2301
        %2312 = vmatprep.subr.mxu0 0.0
        %2313 = vmatpush1.msra.mxu0 0.0
        %2314 = vmatprep.subr.mxu0 0.0
        %2315 = vmatpush1.msra.mxu0 0.0
        %2316 = vmatprep.subr.mxu0 0.0
        %2317 = vmatpush1.msra.mxu0 0.0
        %2318 = vmatprep.subr.mxu0 0.0
        %2319 = vmatpush1.msra.mxu0 0.0
        %2320 = vmatprep.subr.mxu0 0.0
        %2321 = vmatpush1.msra.mxu0 0.0
        %2322 = vmatprep.subr.mxu0 0.0
        %2323 = vmatpush1.msra.mxu0 0.0
        %2324 = vmatprep.subr.mxu0 0.0
        %2325 = vmatpush1.msra.mxu0 0.0
        %2326 = vmatprep.subr.mxu0 0.0
        %2327 = vmatpush1.msra.mxu0 0.0
        %2328 = vmatprep.subr.mxu0 0.0
        %2329 = vmatpush1.msra.mxu0 0.0
        %2330 = vmatprep.subr.mxu0 0.0
        %2331 = vmatpush1.msra.mxu0 0.0
        %2332 = vmatprep.subr.mxu0 0.0
        %2333 = vmatpush1.msra.mxu0 0.0
        %2334 = vmatprep.subr.mxu0 0.0
        %2335 = vmatpush1.msra.mxu0 0.0
        %2336 = vmatprep.subr.mxu0 0.0
        %2337 = vmatpush1.msra.mxu0 0.0
        %2338 = vmatprep.subr.mxu0 0.0
        %2339 = vmatpush1.msra.mxu0 0.0
        %2340 = vmatprep.subr.mxu0 0.0
        %2341 = vmatpush1.msra.mxu0 0.0
        %2342 = vmatprep.subr.mxu0 0.0
        %2343 = vmatpush1.msra.mxu0 0.0
        %2344 = vmatprep.subr.mxu0 0.0
        %2345 = vmatpush1.msra.mxu0 0.0
        %2346 = vmatprep.subr.mxu0 0.0
        %2347 = vmatpush1.msra.mxu0 0.0
        %2348 = vmatprep.subr.mxu0 0.0
        %2349 = vmatpush1.msra.mxu0 0.0
        %2350 = vmatprep.subr.mxu0 0.0
        %2351 = vmatpush1.msra.mxu0 0.0
        %2352 = vmatprep.subr.mxu0 0.0
        %2353 = vmatpush1.msra.mxu0 0.0
        %2354 = vmatprep.subr.mxu0 0.0
        %2355 = vmatpush1.msra.mxu0 0.0
        %2356 = vmatprep.subr.mxu0 0.0
        %2357 = vmatpush1.msra.mxu0 0.0
        %2358 = vmatprep.subr.mxu0 0.0
        %2359 = vmatpush1.msra.mxu0 0.0
        %2360 = vmatprep.subr.mxu0 0.0
        %2361 = vmatpush1.msra.mxu0 0.0
        %2362 = vmatprep.subr.mxu0 0.0
        %2363 = vmatpush1.msra.mxu0 0.0
        %2364 = vmatprep.subr.mxu0 0.0
        %2365 = vmatpush1.msra.mxu0 0.0
        %2366 = vmatprep.subr.mxu0 0.0
        %2367 = vmatpush1.msra.mxu0 0.0
        %2368 = vmatprep.subr.mxu0 0.0
        %2369 = vmatpush1.msra.mxu0 0.0
        %2370 = vmatprep.subr.mxu0 0.0
        %2371 = vmatpush1.msra.mxu0 0.0
        %2372 = vmatprep.mubr.f32.mxu0 0.0
        %2373 = vmatmul.mubr.f32.gmra.mrb[0].mxu0 %v2303
        %v2374 = vpop.f32.mrb[0].mxu0
        %v2375 = vadd.f32 0.0, %v2374
        %v2376 = vpop.f32.mrb[0].mxu0
        %v2377 = vadd.f32 0.0, %v2376
        %2378 = vmatprep.mubr.f32.mxu0 0.0
        %2379 = vmatmul.mubr.f32.gmra.mrb[0].mxu0 %v2306
        %v2380 = vpop.f32.mrb[0].mxu0
        %v2381 = vadd.f32 0.0, %v2380
        %v2382 = vpop.f32.mrb[0].mxu0
        %v2383 = vadd.f32 0.0, %v2382
        %2384 = vdwg.mxu0
        %2385 = vmatprep.subr.mxu0 0.0
        %2386 = vmatpush1.msra.mxu0 %v2296
        %2387 = vmatprep.subr.mxu0 0.0
        %2388 = vmatpush1.msra.mxu0 %v2297
        %2389 = vmatprep.subr.mxu0 0.0
        %2390 = vmatpush1.msra.mxu0 0.0
        %2391 = vmatprep.subr.mxu0 0.0
        %2392 = vmatpush1.msra.mxu0 0.0
        %2393 = vmatprep.subr.mxu0 0.0
        %2394 = vmatpush1.msra.mxu0 0.0
        %2395 = vmatprep.subr.mxu0 0.0
        %2396 = vmatpush1.msra.mxu0 0.0
        %2397 = vmatprep.subr.mxu0 0.0
        %2398 = vmatpush1.msra.mxu0 0.0
        %2399 = vmatprep.subr.mxu0 0.0
        %2400 = vmatpush1.msra.mxu0 0.0
        %2401 = vmatprep.subr.mxu0 0.0
        %2402 = vmatpush1.msra.mxu0 0.0
        %2403 = vmatprep.subr.mxu0 0.0
        %2404 = vmatpush1.msra.mxu0 0.0
        %2405 = vmatprep.subr.mxu0 0.0
        %2406 = vmatpush1.msra.mxu0 0.0
        %2407 = vmatprep.subr.mxu0 0.0
        %2408 = vmatpush1.msra.mxu0 0.0
        %2409 = vmatprep.subr.mxu0 0.0
        %2410 = vmatpush1.msra.mxu0 0.0
        %2411 = vmatprep.subr.mxu0 0.0
        %2412 = vmatpush1.msra.mxu0 0.0
        %2413 = vmatprep.subr.mxu0 0.0
        %2414 = vmatpush1.msra.mxu0 0.0
        %2415 = vmatprep.subr.mxu0 0.0
        %2416 = vmatpush1.msra.mxu0 0.0
        %2417 = vmatprep.subr.mxu0 0.0
        %2418 = vmatpush1.msra.mxu0 0.0
        %2419 = vmatprep.subr.mxu0 0.0
        %2420 = vmatpush1.msra.mxu0 0.0
        %2421 = vmatprep.subr.mxu0 0.0
        %2422 = vmatpush1.msra.mxu0 0.0
        %2423 = vmatprep.subr.mxu0 0.0
        %2424 = vmatpush1.msra.mxu0 0.0
        %2425 = vmatprep.subr.mxu0 0.0
        %2426 = vmatpush1.msra.mxu0 0.0
        %2427 = vmatprep.subr.mxu0 0.0
        %2428 = vmatpush1.msra.mxu0 0.0
        %2429 = vmatprep.subr.mxu0 0.0
        %2430 = vmatpush1.msra.mxu0 0.0
        %2431 = vmatprep.subr.mxu0 0.0
        %2432 = vmatpush1.msra.mxu0 0.0
        %2433 = vmatprep.subr.mxu0 0.0
        %2434 = vmatpush1.msra.mxu0 0.0
        %2435 = vmatprep.subr.mxu0 0.0
        %2436 = vmatpush1.msra.mxu0 0.0
        %2437 = vmatprep.subr.mxu0 0.0
        %2438 = vmatpush1.msra.mxu0 0.0
        %2439 = vmatprep.subr.mxu0 0.0
        %2440 = vmatpush1.msra.mxu0 0.0
        %2441 = vmatprep.subr.mxu0 0.0
        %2442 = vmatpush1.msra.mxu0 0.0
        %2443 = vmatprep.subr.mxu0 0.0
        %2444 = vmatpush1.msra.mxu0 0.0
        %2445 = vmatprep.subr.mxu0 0.0
        %2446 = vmatpush1.msra.mxu0 0.0
        %2447 = vmatprep.subr.mxu0 0.0
        %2448 = vmatpush1.msra.mxu0 0.0
        %2449 = vmatprep.mubr.f32.mxu0 0.0
        %2450 = vmatmul.mubr.f32.gmra.mrb[0].mxu0 %v2303
        %v2451 = vpop.f32.mrb[0].mxu0
        %v2452 = vadd.f32 0.0, %v2451
        %v2453 = vpop.f32.mrb[0].mxu0
        %2454 = vmatprep.mubr.f32.mxu0 0.0
        %2455 = vmatmul.mubr.f32.gmra.mrb[0].mxu0 %v2306
        %v2456 = vpop.f32.mrb[0].mxu0
        %v2457 = vadd.f32 0.0, %v2456
        %v2458 = vpop.f32.mrb[0].mxu0
        %2459 = vdwg.mxu0
        %v2460 = vadd.f32 %v2196, %v2375
        %v2461 = vadd.f32 %v2198, %v2377
        %v2462 = vadd.f32 %v2273, %v2452
        %v2463 = vadd.f32 %v2202, %v2381
        %v2464 = vadd.f32 %v2204, %v2383
        %v2465 = vadd.f32 %v2278, %v2457
        %s2466 = scalar_lea.vmem %s4, 48
        %v2467 = vld [vmem:[%s2466] sm:$0xff]
        %v2468 = vld [vmem:[%s2466 + $0x8] sm:$0xff]
        %2469 = vrot.lane.b32.xlu0 %v1917, 1
        %v2470 = vpop.permute.xlu0 %2469
        %2471 = vrot.lane.b32.xlu0 %v1920, 1
        %v2472 = vpop.permute.xlu0 %2471
        %2473 = vrot.lane.b32.xlu0 %v1918, 1
        %v2474 = vpop.permute.xlu0 %2473
        %2475 = vrot.lane.b32.xlu0 %v1921, 1
        %v2476 = vpop.permute.xlu0 %2475
        %2477 = vrot.lane.b32.xlu0 %v1919, 1
        %v2478 = vpop.permute.xlu0 %2477
        %2479 = vrot.lane.b32.xlu0 %v1922, 1
        %v2480 = vpop.permute.xlu0 %2479
        %v2481 = vsel %vm784, %v2474, %v2478
        %v2482 = vsel %vm784, %v2476, %v2480
        %v2483 = vsel %vm784, %v2470, %v2474
        %v2484 = vsel %vm784, %v2472, %v2476
        %v2485 = vsel %vm784, %v2478, %v2470
        %v2486 = vsel %vm784, %v2480, %v2472
        %v2488 = vsel %vm1964, %v2467, 0
        %v2491 = vsel %vm1964, %v2468, 0
        %2493 = vmatprep.subr.mxu0 %v2483
        %2494 = vmatpush1.msra.mxu0 %v2485
        %2495 = vmatprep.subr.mxu0 %v2484
        %2496 = vmatpush1.msra.mxu0 %v2486
        %2497 = vmatprep.subr.mxu0 0.0
        %2498 = vmatpush1.msra.mxu0 0.0
        %2499 = vmatprep.subr.mxu0 0.0
        %2500 = vmatpush1.msra.mxu0 0.0
        %2501 = vmatprep.subr.mxu0 0.0
        %2502 = vmatpush1.msra.mxu0 0.0
        %2503 = vmatprep.subr.mxu0 0.0
        %2504 = vmatpush1.msra.mxu0 0.0
        %2505 = vmatprep.subr.mxu0 0.0
        %2506 = vmatpush1.msra.mxu0 0.0
        %2507 = vmatprep.subr.mxu0 0.0
        %2508 = vmatpush1.msra.mxu0 0.0
        %2509 = vmatprep.subr.mxu0 0.0
        %2510 = vmatpush1.msra.mxu0 0.0
        %2511 = vmatprep.subr.mxu0 0.0
        %2512 = vmatpush1.msra.mxu0 0.0
        %2513 = vmatprep.subr.mxu0 0.0
        %2514 = vmatpush1.msra.mxu0 0.0
        %2515 = vmatprep.subr.mxu0 0.0
        %2516 = vmatpush1.msra.mxu0 0.0
        %2517 = vmatprep.subr.mxu0 0.0
        %2518 = vmatpush1.msra.mxu0 0.0
        %2519 = vmatprep.subr.mxu0 0.0
        %2520 = vmatpush1.msra.mxu0 0.0
        %2521 = vmatprep.subr.mxu0 0.0
        %2522 = vmatpush1.msra.mxu0 0.0
        %2523 = vmatprep.subr.mxu0 0.0
        %2524 = vmatpush1.msra.mxu0 0.0
        %2525 = vmatprep.subr.mxu0 0.0
        %2526 = vmatpush1.msra.mxu0 0.0
        %2527 = vmatprep.subr.mxu0 0.0
        %2528 = vmatpush1.msra.mxu0 0.0
        %2529 = vmatprep.subr.mxu0 0.0
        %2530 = vmatpush1.msra.mxu0 0.0
        %2531 = vmatprep.subr.mxu0 0.0
        %2532 = vmatpush1.msra.mxu0 0.0
        %2533 = vmatprep.subr.mxu0 0.0
        %2534 = vmatpush1.msra.mxu0 0.0
        %2535 = vmatprep.subr.mxu0 0.0
        %2536 = vmatpush1.msra.mxu0 0.0
        %2537 = vmatprep.subr.mxu0 0.0
        %2538 = vmatpush1.msra.mxu0 0.0
        %2539 = vmatprep.subr.mxu0 0.0
        %2540 = vmatpush1.msra.mxu0 0.0
        %2541 = vmatprep.subr.mxu0 0.0
        %2542 = vmatpush1.msra.mxu0 0.0
        %2543 = vmatprep.subr.mxu0 0.0
        %2544 = vmatpush1.msra.mxu0 0.0
        %2545 = vmatprep.subr.mxu0 0.0
        %2546 = vmatpush1.msra.mxu0 0.0
        %2547 = vmatprep.subr.mxu0 0.0
        %2548 = vmatpush1.msra.mxu0 0.0
        %2549 = vmatprep.subr.mxu0 0.0
        %2550 = vmatpush1.msra.mxu0 0.0
        %2551 = vmatprep.subr.mxu0 0.0
        %2552 = vmatpush1.msra.mxu0 0.0
        %2553 = vmatprep.subr.mxu0 0.0
        %2554 = vmatpush1.msra.mxu0 0.0
        %2555 = vmatprep.subr.mxu0 0.0
        %2556 = vmatpush1.msra.mxu0 0.0
        %2557 = vmatprep.mubr.f32.mxu0 0.0
        %2558 = vmatmul.mubr.f32.gmra.mrb[0].mxu0 %v2488
        %v2559 = vpop.f32.mrb[0].mxu0
        %v2560 = vadd.f32 0.0, %v2559
        %v2561 = vpop.f32.mrb[0].mxu0
        %v2562 = vadd.f32 0.0, %v2561
        %2563 = vmatprep.mubr.f32.mxu0 0.0
        %2564 = vmatmul.mubr.f32.gmra.mrb[0].mxu0 %v2491
        %v2565 = vpop.f32.mrb[0].mxu0
        %v2566 = vadd.f32 0.0, %v2565
        %v2567 = vpop.f32.mrb[0].mxu0
        %v2568 = vadd.f32 0.0, %v2567
        %2569 = vdwg.mxu0
        %2570 = vmatprep.subr.mxu0 0.0
        %2571 = vmatpush1.msra.mxu0 %v2481
        %2572 = vmatprep.subr.mxu0 0.0
        %2573 = vmatpush1.msra.mxu0 %v2482
        %2574 = vmatprep.subr.mxu0 0.0
        %2575 = vmatpush1.msra.mxu0 0.0
        %2576 = vmatprep.subr.mxu0 0.0
        %2577 = vmatpush1.msra.mxu0 0.0
        %2578 = vmatprep.subr.mxu0 0.0
        %2579 = vmatpush1.msra.mxu0 0.0
        %2580 = vmatprep.subr.mxu0 0.0
        %2581 = vmatpush1.msra.mxu0 0.0
        %2582 = vmatprep.subr.mxu0 0.0
        %2583 = vmatpush1.msra.mxu0 0.0
        %2584 = vmatprep.subr.mxu0 0.0
        %2585 = vmatpush1.msra.mxu0 0.0
        %2586 = vmatprep.subr.mxu0 0.0
        %2587 = vmatpush1.msra.mxu0 0.0
        %2588 = vmatprep.subr.mxu0 0.0
        %2589 = vmatpush1.msra.mxu0 0.0
        %2590 = vmatprep.subr.mxu0 0.0
        %2591 = vmatpush1.msra.mxu0 0.0
        %2592 = vmatprep.subr.mxu0 0.0
        %2593 = vmatpush1.msra.mxu0 0.0
        %2594 = vmatprep.subr.mxu0 0.0
        %2595 = vmatpush1.msra.mxu0 0.0
        %2596 = vmatprep.subr.mxu0 0.0
        %2597 = vmatpush1.msra.mxu0 0.0
        %2598 = vmatprep.subr.mxu0 0.0
        %2599 = vmatpush1.msra.mxu0 0.0
        %2600 = vmatprep.subr.mxu0 0.0
        %2601 = vmatpush1.msra.mxu0 0.0
        %2602 = vmatprep.subr.mxu0 0.0
        %2603 = vmatpush1.msra.mxu0 0.0
        %2604 = vmatprep.subr.mxu0 0.0
        %2605 = vmatpush1.msra.mxu0 0.0
        %2606 = vmatprep.subr.mxu0 0.0
        %2607 = vmatpush1.msra.mxu0 0.0
        %2608 = vmatprep.subr.mxu0 0.0
        %2609 = vmatpush1.msra.mxu0 0.0
        %2610 = vmatprep.subr.mxu0 0.0
        %2611 = vmatpush1.msra.mxu0 0.0
        %2612 = vmatprep.subr.mxu0 0.0
        %2613 = vmatpush1.msra.mxu0 0.0
        %2614 = vmatprep.subr.mxu0 0.0
        %2615 = vmatpush1.msra.mxu0 0.0
        %2616 = vmatprep.subr.mxu0 0.0
        %2617 = vmatpush1.msra.mxu0 0.0
        %2618 = vmatprep.subr.mxu0 0.0
        %2619 = vmatpush1.msra.mxu0 0.0
        %2620 = vmatprep.subr.mxu0 0.0
        %2621 = vmatpush1.msra.mxu0 0.0
        %2622 = vmatprep.subr.mxu0 0.0
        %2623 = vmatpush1.msra.mxu0 0.0
        %2624 = vmatprep.subr.mxu0 0.0
        %2625 = vmatpush1.msra.mxu0 0.0
        %2626 = vmatprep.subr.mxu0 0.0
        %2627 = vmatpush1.msra.mxu0 0.0
        %2628 = vmatprep.subr.mxu0 0.0
        %2629 = vmatpush1.msra.mxu0 0.0
        %2630 = vmatprep.subr.mxu0 0.0
        %2631 = vmatpush1.msra.mxu0 0.0
        %2632 = vmatprep.subr.mxu0 0.0
        %2633 = vmatpush1.msra.mxu0 0.0
        %2634 = vmatprep.mubr.f32.mxu0 0.0
        %2635 = vmatmul.mubr.f32.gmra.mrb[0].mxu0 %v2488
        %v2636 = vpop.f32.mrb[0].mxu0
        %v2637 = vadd.f32 0.0, %v2636
        %v2638 = vpop.f32.mrb[0].mxu0
        %2639 = vmatprep.mubr.f32.mxu0 0.0
        %2640 = vmatmul.mubr.f32.gmra.mrb[0].mxu0 %v2491
        %v2641 = vpop.f32.mrb[0].mxu0
        %v2642 = vadd.f32 0.0, %v2641
        %v2643 = vpop.f32.mrb[0].mxu0
        %2644 = vdwg.mxu0
        %v2645 = vadd.f32 %v2460, %v2560
        %v2646 = vadd.f32 %v2461, %v2562
        %v2647 = vadd.f32 %v2462, %v2637
        %v2648 = vadd.f32 %v2463, %v2566
        %v2649 = vadd.f32 %v2464, %v2568
        %v2650 = vadd.f32 %v2465, %v2642
        %s2651 = scalar_lea.vmem %s4, 64
        %v2652 = vld [vmem:[%s2651] sm:$0xff]
        %v2653 = vld [vmem:[%s2651 + $0x8] sm:$0xff]
        %v2655 = vsel %vm1964, %v2652, 0
        %v2658 = vsel %vm1964, %v2653, 0
        %2660 = vmatprep.subr.mxu0 %v1918
        %2661 = vmatpush1.msra.mxu0 %v1917
        %2662 = vmatprep.subr.mxu0 %v1921
        %2663 = vmatpush1.msra.mxu0 %v1920
        %2664 = vmatprep.subr.mxu0 0.0
        %2665 = vmatpush1.msra.mxu0 0.0
        %2666 = vmatprep.subr.mxu0 0.0
        %2667 = vmatpush1.msra.mxu0 0.0
        %2668 = vmatprep.subr.mxu0 0.0
        %2669 = vmatpush1.msra.mxu0 0.0
        %2670 = vmatprep.subr.mxu0 0.0
        %2671 = vmatpush1.msra.mxu0 0.0
        %2672 = vmatprep.subr.mxu0 0.0
        %2673 = vmatpush1.msra.mxu0 0.0
        %2674 = vmatprep.subr.mxu0 0.0
        %2675 = vmatpush1.msra.mxu0 0.0
        %2676 = vmatprep.subr.mxu0 0.0
        %2677 = vmatpush1.msra.mxu0 0.0
        %2678 = vmatprep.subr.mxu0 0.0
        %2679 = vmatpush1.msra.mxu0 0.0
        %2680 = vmatprep.subr.mxu0 0.0
        %2681 = vmatpush1.msra.mxu0 0.0
        %2682 = vmatprep.subr.mxu0 0.0
        %2683 = vmatpush1.msra.mxu0 0.0
        %2684 = vmatprep.subr.mxu0 0.0
        %2685 = vmatpush1.msra.mxu0 0.0
        %2686 = vmatprep.subr.mxu0 0.0
        %2687 = vmatpush1.msra.mxu0 0.0
        %2688 = vmatprep.subr.mxu0 0.0
        %2689 = vmatpush1.msra.mxu0 0.0
        %2690 = vmatprep.subr.mxu0 0.0
        %2691 = vmatpush1.msra.mxu0 0.0
        %2692 = vmatprep.subr.mxu0 0.0
        %2693 = vmatpush1.msra.mxu0 0.0
        %2694 = vmatprep.subr.mxu0 0.0
        %2695 = vmatpush1.msra.mxu0 0.0
        %2696 = vmatprep.subr.mxu0 0.0
        %2697 = vmatpush1.msra.mxu0 0.0
        %2698 = vmatprep.subr.mxu0 0.0
        %2699 = vmatpush1.msra.mxu0 0.0
        %2700 = vmatprep.subr.mxu0 0.0
        %2701 = vmatpush1.msra.mxu0 0.0
        %2702 = vmatprep.subr.mxu0 0.0
        %2703 = vmatpush1.msra.mxu0 0.0
        %2704 = vmatprep.subr.mxu0 0.0
        %2705 = vmatpush1.msra.mxu0 0.0
        %2706 = vmatprep.subr.mxu0 0.0
        %2707 = vmatpush1.msra.mxu0 0.0
        %2708 = vmatprep.subr.mxu0 0.0
        %2709 = vmatpush1.msra.mxu0 0.0
        %2710 = vmatprep.subr.mxu0 0.0
        %2711 = vmatpush1.msra.mxu0 0.0
        %2712 = vmatprep.subr.mxu0 0.0
        %2713 = vmatpush1.msra.mxu0 0.0
        %2714 = vmatprep.subr.mxu0 0.0
        %2715 = vmatpush1.msra.mxu0 0.0
        %2716 = vmatprep.subr.mxu0 0.0
        %2717 = vmatpush1.msra.mxu0 0.0
        %2718 = vmatprep.subr.mxu0 0.0
        %2719 = vmatpush1.msra.mxu0 0.0
        %2720 = vmatprep.subr.mxu0 0.0
        %2721 = vmatpush1.msra.mxu0 0.0
        %2722 = vmatprep.subr.mxu0 0.0
        %2723 = vmatpush1.msra.mxu0 0.0
        %2724 = vmatprep.mubr.f32.mxu0 0.0
        %2725 = vmatmul.mubr.f32.gmra.mrb[0].mxu0 %v2655
        %v2726 = vpop.f32.mrb[0].mxu0
        %v2727 = vadd.f32 0.0, %v2726
        %v2728 = vpop.f32.mrb[0].mxu0
        %v2729 = vadd.f32 0.0, %v2728
        %2730 = vmatprep.mubr.f32.mxu0 0.0
        %2731 = vmatmul.mubr.f32.gmra.mrb[0].mxu0 %v2658
        %v2732 = vpop.f32.mrb[0].mxu0
        %v2733 = vadd.f32 0.0, %v2732
        %v2734 = vpop.f32.mrb[0].mxu0
        %v2735 = vadd.f32 0.0, %v2734
        %2736 = vdwg.mxu0
        %2737 = vmatprep.subr.mxu0 0.0
        %2738 = vmatpush1.msra.mxu0 %v1919
        %2739 = vmatprep.subr.mxu0 0.0
        %2740 = vmatpush1.msra.mxu0 %v1922
        %2741 = vmatprep.subr.mxu0 0.0
        %2742 = vmatpush1.msra.mxu0 0.0
        %2743 = vmatprep.subr.mxu0 0.0
        %2744 = vmatpush1.msra.mxu0 0.0
        %2745 = vmatprep.subr.mxu0 0.0
        %2746 = vmatpush1.msra.mxu0 0.0
        %2747 = vmatprep.subr.mxu0 0.0
        %2748 = vmatpush1.msra.mxu0 0.0
        %2749 = vmatprep.subr.mxu0 0.0
        %2750 = vmatpush1.msra.mxu0 0.0
        %2751 = vmatprep.subr.mxu0 0.0
        %2752 = vmatpush1.msra.mxu0 0.0
        %2753 = vmatprep.subr.mxu0 0.0
        %2754 = vmatpush1.msra.mxu0 0.0
        %2755 = vmatprep.subr.mxu0 0.0
        %2756 = vmatpush1.msra.mxu0 0.0
        %2757 = vmatprep.subr.mxu0 0.0
        %2758 = vmatpush1.msra.mxu0 0.0
        %2759 = vmatprep.subr.mxu0 0.0
        %2760 = vmatpush1.msra.mxu0 0.0
        %2761 = vmatprep.subr.mxu0 0.0
        %2762 = vmatpush1.msra.mxu0 0.0
        %2763 = vmatprep.subr.mxu0 0.0
        %2764 = vmatpush1.msra.mxu0 0.0
        %2765 = vmatprep.subr.mxu0 0.0
        %2766 = vmatpush1.msra.mxu0 0.0
        %2767 = vmatprep.subr.mxu0 0.0
        %2768 = vmatpush1.msra.mxu0 0.0
        %2769 = vmatprep.subr.mxu0 0.0
        %2770 = vmatpush1.msra.mxu0 0.0
        %2771 = vmatprep.subr.mxu0 0.0
        %2772 = vmatpush1.msra.mxu0 0.0
        %2773 = vmatprep.subr.mxu0 0.0
        %2774 = vmatpush1.msra.mxu0 0.0
        %2775 = vmatprep.subr.mxu0 0.0
        %2776 = vmatpush1.msra.mxu0 0.0
        %2777 = vmatprep.subr.mxu0 0.0
        %2778 = vmatpush1.msra.mxu0 0.0
        %2779 = vmatprep.subr.mxu0 0.0
        %2780 = vmatpush1.msra.mxu0 0.0
        %2781 = vmatprep.subr.mxu0 0.0
        %2782 = vmatpush1.msra.mxu0 0.0
        %2783 = vmatprep.subr.mxu0 0.0
        %2784 = vmatpush1.msra.mxu0 0.0
        %2785 = vmatprep.subr.mxu0 0.0
        %2786 = vmatpush1.msra.mxu0 0.0
        %2787 = vmatprep.subr.mxu0 0.0
        %2788 = vmatpush1.msra.mxu0 0.0
        %2789 = vmatprep.subr.mxu0 0.0
        %2790 = vmatpush1.msra.mxu0 0.0
        %2791 = vmatprep.subr.mxu0 0.0
        %2792 = vmatpush1.msra.mxu0 0.0
        %2793 = vmatprep.subr.mxu0 0.0
        %2794 = vmatpush1.msra.mxu0 0.0
        %2795 = vmatprep.subr.mxu0 0.0
        %2796 = vmatpush1.msra.mxu0 0.0
        %2797 = vmatprep.subr.mxu0 0.0
        %2798 = vmatpush1.msra.mxu0 0.0
        %2799 = vmatprep.subr.mxu0 0.0
        %2800 = vmatpush1.msra.mxu0 0.0
        %2801 = vmatprep.mubr.f32.mxu0 0.0
        %2802 = vmatmul.mubr.f32.gmra.mrb[0].mxu0 %v2655
        %v2803 = vpop.f32.mrb[0].mxu0
        %v2804 = vadd.f32 0.0, %v2803
        %v2805 = vpop.f32.mrb[0].mxu0
        %2806 = vmatprep.mubr.f32.mxu0 0.0
        %2807 = vmatmul.mubr.f32.gmra.mrb[0].mxu0 %v2658
        %v2808 = vpop.f32.mrb[0].mxu0
        %v2809 = vadd.f32 0.0, %v2808
        %v2810 = vpop.f32.mrb[0].mxu0
        %2811 = vdwg.mxu0
        %v2812 = vadd.f32 %v2645, %v2727
        %v2813 = vadd.f32 %v2646, %v2729
        %v2814 = vadd.f32 %v2647, %v2804
        %v2815 = vadd.f32 %v2648, %v2733
        %v2816 = vadd.f32 %v2649, %v2735
        %v2817 = vadd.f32 %v2650, %v2809
        %s2818 = scalar_lea.vmem %s4, 80
        %v2819 = vld [vmem:[%s2818] sm:$0xff]
        %v2820 = vld [vmem:[%s2818 + $0x8] sm:$0xff]
        %2821 = vrot.lane.b32.xlu0 %v1917, 127
        %v2822 = vpop.permute.xlu0 %2821
        %2823 = vrot.lane.b32.xlu0 %v1920, 127
        %v2824 = vpop.permute.xlu0 %2823
        %2825 = vrot.lane.b32.xlu0 %v1918, 127
        %v2826 = vpop.permute.xlu0 %2825
        %2827 = vrot.lane.b32.xlu0 %v1921, 127
        %v2828 = vpop.permute.xlu0 %2827
        %2829 = vrot.lane.b32.xlu0 %v1919, 127
        %v2830 = vpop.permute.xlu0 %2829
        %2831 = vrot.lane.b32.xlu0 %v1922, 127
        %v2832 = vpop.permute.xlu0 %2831
        %v2833 = vsel %vm1128, %v2826, %v2830
        %v2834 = vsel %vm1128, %v2828, %v2832
        %v2835 = vsel %vm1128, %v2822, %v2826
        %v2836 = vsel %vm1128, %v2824, %v2828
        %v2837 = vsel %vm1128, %v2830, %v2822
        %v2838 = vsel %vm1128, %v2832, %v2824
        %v2840 = vsel %vm1964, %v2819, 0
        %v2843 = vsel %vm1964, %v2820, 0
        %2845 = vmatprep.subr.mxu0 %v2833
        %2846 = vmatpush1.msra.mxu0 %v2835
        %2847 = vmatprep.subr.mxu0 %v2834
        %2848 = vmatpush1.msra.mxu0 %v2836
        %2849 = vmatprep.subr.mxu0 0.0
        %2850 = vmatpush1.msra.mxu0 0.0
        %2851 = vmatprep.subr.mxu0 0.0
        %2852 = vmatpush1.msra.mxu0 0.0
        %2853 = vmatprep.subr.mxu0 0.0
        %2854 = vmatpush1.msra.mxu0 0.0
        %2855 = vmatprep.subr.mxu0 0.0
        %2856 = vmatpush1.msra.mxu0 0.0
        %2857 = vmatprep.subr.mxu0 0.0
        %2858 = vmatpush1.msra.mxu0 0.0
        %2859 = vmatprep.subr.mxu0 0.0
        %2860 = vmatpush1.msra.mxu0 0.0
        %2861 = vmatprep.subr.mxu0 0.0
        %2862 = vmatpush1.msra.mxu0 0.0
        %2863 = vmatprep.subr.mxu0 0.0
        %2864 = vmatpush1.msra.mxu0 0.0
        %2865 = vmatprep.subr.mxu0 0.0
        %2866 = vmatpush1.msra.mxu0 0.0
        %2867 = vmatprep.subr.mxu0 0.0
        %2868 = vmatpush1.msra.mxu0 0.0
        %2869 = vmatprep.subr.mxu0 0.0
        %2870 = vmatpush1.msra.mxu0 0.0
        %2871 = vmatprep.subr.mxu0 0.0
        %2872 = vmatpush1.msra.mxu0 0.0
        %2873 = vmatprep.subr.mxu0 0.0
        %2874 = vmatpush1.msra.mxu0 0.0
        %2875 = vmatprep.subr.mxu0 0.0
        %2876 = vmatpush1.msra.mxu0 0.0
        %2877 = vmatprep.subr.mxu0 0.0
        %2878 = vmatpush1.msra.mxu0 0.0
        %2879 = vmatprep.subr.mxu0 0.0
        %2880 = vmatpush1.msra.mxu0 0.0
        %2881 = vmatprep.subr.mxu0 0.0
        %2882 = vmatpush1.msra.mxu0 0.0
        %2883 = vmatprep.subr.mxu0 0.0
        %2884 = vmatpush1.msra.mxu0 0.0
        %2885 = vmatprep.subr.mxu0 0.0
        %2886 = vmatpush1.msra.mxu0 0.0
        %2887 = vmatprep.subr.mxu0 0.0
        %2888 = vmatpush1.msra.mxu0 0.0
        %2889 = vmatprep.subr.mxu0 0.0
        %2890 = vmatpush1.msra.mxu0 0.0
        %2891 = vmatprep.subr.mxu0 0.0
        %2892 = vmatpush1.msra.mxu0 0.0
        %2893 = vmatprep.subr.mxu0 0.0
        %2894 = vmatpush1.msra.mxu0 0.0
        %2895 = vmatprep.subr.mxu0 0.0
        %2896 = vmatpush1.msra.mxu0 0.0
        %2897 = vmatprep.subr.mxu0 0.0
        %2898 = vmatpush1.msra.mxu0 0.0
        %2899 = vmatprep.subr.mxu0 0.0
        %2900 = vmatpush1.msra.mxu0 0.0
        %2901 = vmatprep.subr.mxu0 0.0
        %2902 = vmatpush1.msra.mxu0 0.0
        %2903 = vmatprep.subr.mxu0 0.0
        %2904 = vmatpush1.msra.mxu0 0.0
        %2905 = vmatprep.subr.mxu0 0.0
        %2906 = vmatpush1.msra.mxu0 0.0
        %2907 = vmatprep.subr.mxu0 0.0
        %2908 = vmatpush1.msra.mxu0 0.0
        %2909 = vmatprep.mubr.f32.mxu0 0.0
        %2910 = vmatmul.mubr.f32.gmra.mrb[0].mxu0 %v2840
        %v2911 = vpop.f32.mrb[0].mxu0
        %v2912 = vadd.f32 0.0, %v2911
        %v2913 = vpop.f32.mrb[0].mxu0
        %v2914 = vadd.f32 0.0, %v2913
        %2915 = vmatprep.mubr.f32.mxu0 0.0
        %2916 = vmatmul.mubr.f32.gmra.mrb[0].mxu0 %v2843
        %v2917 = vpop.f32.mrb[0].mxu0
        %v2918 = vadd.f32 0.0, %v2917
        %v2919 = vpop.f32.mrb[0].mxu0
        %v2920 = vadd.f32 0.0, %v2919
        %2921 = vdwg.mxu0
        %2922 = vmatprep.subr.mxu0 0.0
        %2923 = vmatpush1.msra.mxu0 %v2837
        %2924 = vmatprep.subr.mxu0 0.0
        %2925 = vmatpush1.msra.mxu0 %v2838
        %2926 = vmatprep.subr.mxu0 0.0
        %2927 = vmatpush1.msra.mxu0 0.0
        %2928 = vmatprep.subr.mxu0 0.0
        %2929 = vmatpush1.msra.mxu0 0.0
        %2930 = vmatprep.subr.mxu0 0.0
        %2931 = vmatpush1.msra.mxu0 0.0
        %2932 = vmatprep.subr.mxu0 0.0
        %2933 = vmatpush1.msra.mxu0 0.0
        %2934 = vmatprep.subr.mxu0 0.0
        %2935 = vmatpush1.msra.mxu0 0.0
        %2936 = vmatprep.subr.mxu0 0.0
        %2937 = vmatpush1.msra.mxu0 0.0
        %2938 = vmatprep.subr.mxu0 0.0
        %2939 = vmatpush1.msra.mxu0 0.0
        %2940 = vmatprep.subr.mxu0 0.0
        %2941 = vmatpush1.msra.mxu0 0.0
        %2942 = vmatprep.subr.mxu0 0.0
        %2943 = vmatpush1.msra.mxu0 0.0
        %2944 = vmatprep.subr.mxu0 0.0
        %2945 = vmatpush1.msra.mxu0 0.0
        %2946 = vmatprep.subr.mxu0 0.0
        %2947 = vmatpush1.msra.mxu0 0.0
        %2948 = vmatprep.subr.mxu0 0.0
        %2949 = vmatpush1.msra.mxu0 0.0
        %2950 = vmatprep.subr.mxu0 0.0
        %2951 = vmatpush1.msra.mxu0 0.0
        %2952 = vmatprep.subr.mxu0 0.0
        %2953 = vmatpush1.msra.mxu0 0.0
        %2954 = vmatprep.subr.mxu0 0.0
        %2955 = vmatpush1.msra.mxu0 0.0
        %2956 = vmatprep.subr.mxu0 0.0
        %2957 = vmatpush1.msra.mxu0 0.0
        %2958 = vmatprep.subr.mxu0 0.0
        %2959 = vmatpush1.msra.mxu0 0.0
        %2960 = vmatprep.subr.mxu0 0.0
        %2961 = vmatpush1.msra.mxu0 0.0
        %2962 = vmatprep.subr.mxu0 0.0
        %2963 = vmatpush1.msra.mxu0 0.0
        %2964 = vmatprep.subr.mxu0 0.0
        %2965 = vmatpush1.msra.mxu0 0.0
        %2966 = vmatprep.subr.mxu0 0.0
        %2967 = vmatpush1.msra.mxu0 0.0
        %2968 = vmatprep.subr.mxu0 0.0
        %2969 = vmatpush1.msra.mxu0 0.0
        %2970 = vmatprep.subr.mxu0 0.0
        %2971 = vmatpush1.msra.mxu0 0.0
        %2972 = vmatprep.subr.mxu0 0.0
        %2973 = vmatpush1.msra.mxu0 0.0
        %2974 = vmatprep.subr.mxu0 0.0
        %2975 = vmatpush1.msra.mxu0 0.0
        %2976 = vmatprep.subr.mxu0 0.0
        %2977 = vmatpush1.msra.mxu0 0.0
        %2978 = vmatprep.subr.mxu0 0.0
        %2979 = vmatpush1.msra.mxu0 0.0
        %2980 = vmatprep.subr.mxu0 0.0
        %2981 = vmatpush1.msra.mxu0 0.0
        %2982 = vmatprep.subr.mxu0 0.0
        %2983 = vmatpush1.msra.mxu0 0.0
        %2984 = vmatprep.subr.mxu0 0.0
        %2985 = vmatpush1.msra.mxu0 0.0
        %2986 = vmatprep.mubr.f32.mxu0 0.0
        %2987 = vmatmul.mubr.f32.gmra.mrb[0].mxu0 %v2840
        %v2988 = vpop.f32.mrb[0].mxu0
        %v2989 = vadd.f32 0.0, %v2988
        %v2990 = vpop.f32.mrb[0].mxu0
        %2991 = vmatprep.mubr.f32.mxu0 0.0
        %2992 = vmatmul.mubr.f32.gmra.mrb[0].mxu0 %v2843
        %v2993 = vpop.f32.mrb[0].mxu0
        %v2994 = vadd.f32 0.0, %v2993
        %v2995 = vpop.f32.mrb[0].mxu0
        %2996 = vdwg.mxu0
        %v2997 = vadd.f32 %v2812, %v2912
        %v2998 = vadd.f32 %v2813, %v2914
        %v2999 = vadd.f32 %v2814, %v2989
        %v3000 = vadd.f32 %v2815, %v2918
        %v3001 = vadd.f32 %v2816, %v2920
        %v3002 = vadd.f32 %v2817, %v2994
        %s3003 = scalar_lea.vmem %s4, 96
        %v3004 = vld [vmem:[%s3003] sm:$0xff]
        %v3005 = vld [vmem:[%s3003 + $0x8] sm:$0xff]
        %3006 = vrot.lane.b32.xlu0 %v1917, 111
        %v3007 = vpop.permute.xlu0 %3006
        %3008 = vrot.lane.b32.xlu0 %v1920, 111
        %v3009 = vpop.permute.xlu0 %3008
        %3010 = vrot.lane.b32.xlu0 %v1918, 111
        %v3011 = vpop.permute.xlu0 %3010
        %3012 = vrot.lane.b32.xlu0 %v1921, 111
        %v3013 = vpop.permute.xlu0 %3012
        %3014 = vrot.lane.b32.xlu0 %v1919, 111
        %v3015 = vpop.permute.xlu0 %3014
        %3016 = vrot.lane.b32.xlu0 %v1922, 111
        %v3017 = vpop.permute.xlu0 %3016
        %v3018 = vsel %vm1305, %v3011, %v3015
        %v3019 = vsel %vm1305, %v3013, %v3017
        %v3020 = vsel %vm1305, %v3007, %v3011
        %v3021 = vsel %vm1305, %v3009, %v3013
        %v3022 = vsel %vm1305, %v3015, %v3007
        %v3023 = vsel %vm1305, %v3017, %v3009
        %v3025 = vsel %vm1964, %v3004, 0
        %v3028 = vsel %vm1964, %v3005, 0
        %3030 = vmatprep.subr.mxu0 %v3018
        %3031 = vmatpush1.msra.mxu0 %v3020
        %3032 = vmatprep.subr.mxu0 %v3019
        %3033 = vmatpush1.msra.mxu0 %v3021
        %3034 = vmatprep.subr.mxu0 0.0
        %3035 = vmatpush1.msra.mxu0 0.0
        %3036 = vmatprep.subr.mxu0 0.0
        %3037 = vmatpush1.msra.mxu0 0.0
        %3038 = vmatprep.subr.mxu0 0.0
        %3039 = vmatpush1.msra.mxu0 0.0
        %3040 = vmatprep.subr.mxu0 0.0
        %3041 = vmatpush1.msra.mxu0 0.0
        %3042 = vmatprep.subr.mxu0 0.0
        %3043 = vmatpush1.msra.mxu0 0.0
        %3044 = vmatprep.subr.mxu0 0.0
        %3045 = vmatpush1.msra.mxu0 0.0
        %3046 = vmatprep.subr.mxu0 0.0
        %3047 = vmatpush1.msra.mxu0 0.0
        %3048 = vmatprep.subr.mxu0 0.0
        %3049 = vmatpush1.msra.mxu0 0.0
        %3050 = vmatprep.subr.mxu0 0.0
        %3051 = vmatpush1.msra.mxu0 0.0
        %3052 = vmatprep.subr.mxu0 0.0
        %3053 = vmatpush1.msra.mxu0 0.0
        %3054 = vmatprep.subr.mxu0 0.0
        %3055 = vmatpush1.msra.mxu0 0.0
        %3056 = vmatprep.subr.mxu0 0.0
        %3057 = vmatpush1.msra.mxu0 0.0
        %3058 = vmatprep.subr.mxu0 0.0
        %3059 = vmatpush1.msra.mxu0 0.0
        %3060 = vmatprep.subr.mxu0 0.0
        %3061 = vmatpush1.msra.mxu0 0.0
        %3062 = vmatprep.subr.mxu0 0.0
        %3063 = vmatpush1.msra.mxu0 0.0
        %3064 = vmatprep.subr.mxu0 0.0
        %3065 = vmatpush1.msra.mxu0 0.0
        %3066 = vmatprep.subr.mxu0 0.0
        %3067 = vmatpush1.msra.mxu0 0.0
        %3068 = vmatprep.subr.mxu0 0.0
        %3069 = vmatpush1.msra.mxu0 0.0
        %3070 = vmatprep.subr.mxu0 0.0
        %3071 = vmatpush1.msra.mxu0 0.0
        %3072 = vmatprep.subr.mxu0 0.0
        %3073 = vmatpush1.msra.mxu0 0.0
        %3074 = vmatprep.subr.mxu0 0.0
        %3075 = vmatpush1.msra.mxu0 0.0
        %3076 = vmatprep.subr.mxu0 0.0
        %3077 = vmatpush1.msra.mxu0 0.0
        %3078 = vmatprep.subr.mxu0 0.0
        %3079 = vmatpush1.msra.mxu0 0.0
        %3080 = vmatprep.subr.mxu0 0.0
        %3081 = vmatpush1.msra.mxu0 0.0
        %3082 = vmatprep.subr.mxu0 0.0
        %3083 = vmatpush1.msra.mxu0 0.0
        %3084 = vmatprep.subr.mxu0 0.0
        %3085 = vmatpush1.msra.mxu0 0.0
        %3086 = vmatprep.subr.mxu0 0.0
        %3087 = vmatpush1.msra.mxu0 0.0
        %3088 = vmatprep.subr.mxu0 0.0
        %3089 = vmatpush1.msra.mxu0 0.0
        %3090 = vmatprep.subr.mxu0 0.0
        %3091 = vmatpush1.msra.mxu0 0.0
        %3092 = vmatprep.subr.mxu0 0.0
        %3093 = vmatpush1.msra.mxu0 0.0
        %3094 = vmatprep.mubr.f32.mxu0 0.0
        %3095 = vmatmul.mubr.f32.gmra.mrb[0].mxu0 %v3025
        %v3096 = vpop.f32.mrb[0].mxu0
        %v3097 = vadd.f32 0.0, %v3096
        %v3098 = vpop.f32.mrb[0].mxu0
        %v3099 = vadd.f32 0.0, %v3098
        %3100 = vmatprep.mubr.f32.mxu0 0.0
        %3101 = vmatmul.mubr.f32.gmra.mrb[0].mxu0 %v3028
        %v3102 = vpop.f32.mrb[0].mxu0
        %v3103 = vadd.f32 0.0, %v3102
        %v3104 = vpop.f32.mrb[0].mxu0
        %v3105 = vadd.f32 0.0, %v3104
        %3106 = vdwg.mxu0
        %3107 = vmatprep.subr.mxu0 0.0
        %3108 = vmatpush1.msra.mxu0 %v3022
        %3109 = vmatprep.subr.mxu0 0.0
        %3110 = vmatpush1.msra.mxu0 %v3023
        %3111 = vmatprep.subr.mxu0 0.0
        %3112 = vmatpush1.msra.mxu0 0.0
        %3113 = vmatprep.subr.mxu0 0.0
        %3114 = vmatpush1.msra.mxu0 0.0
        %3115 = vmatprep.subr.mxu0 0.0
        %3116 = vmatpush1.msra.mxu0 0.0
        %3117 = vmatprep.subr.mxu0 0.0
        %3118 = vmatpush1.msra.mxu0 0.0
        %3119 = vmatprep.subr.mxu0 0.0
        %3120 = vmatpush1.msra.mxu0 0.0
        %3121 = vmatprep.subr.mxu0 0.0
        %3122 = vmatpush1.msra.mxu0 0.0
        %3123 = vmatprep.subr.mxu0 0.0
        %3124 = vmatpush1.msra.mxu0 0.0
        %3125 = vmatprep.subr.mxu0 0.0
        %3126 = vmatpush1.msra.mxu0 0.0
        %3127 = vmatprep.subr.mxu0 0.0
        %3128 = vmatpush1.msra.mxu0 0.0
        %3129 = vmatprep.subr.mxu0 0.0
        %3130 = vmatpush1.msra.mxu0 0.0
        %3131 = vmatprep.subr.mxu0 0.0
        %3132 = vmatpush1.msra.mxu0 0.0
        %3133 = vmatprep.subr.mxu0 0.0
        %3134 = vmatpush1.msra.mxu0 0.0
        %3135 = vmatprep.subr.mxu0 0.0
        %3136 = vmatpush1.msra.mxu0 0.0
        %3137 = vmatprep.subr.mxu0 0.0
        %3138 = vmatpush1.msra.mxu0 0.0
        %3139 = vmatprep.subr.mxu0 0.0
        %3140 = vmatpush1.msra.mxu0 0.0
        %3141 = vmatprep.subr.mxu0 0.0
        %3142 = vmatpush1.msra.mxu0 0.0
        %3143 = vmatprep.subr.mxu0 0.0
        %3144 = vmatpush1.msra.mxu0 0.0
        %3145 = vmatprep.subr.mxu0 0.0
        %3146 = vmatpush1.msra.mxu0 0.0
        %3147 = vmatprep.subr.mxu0 0.0
        %3148 = vmatpush1.msra.mxu0 0.0
        %3149 = vmatprep.subr.mxu0 0.0
        %3150 = vmatpush1.msra.mxu0 0.0
        %3151 = vmatprep.subr.mxu0 0.0
        %3152 = vmatpush1.msra.mxu0 0.0
        %3153 = vmatprep.subr.mxu0 0.0
        %3154 = vmatpush1.msra.mxu0 0.0
        %3155 = vmatprep.subr.mxu0 0.0
        %3156 = vmatpush1.msra.mxu0 0.0
        %3157 = vmatprep.subr.mxu0 0.0
        %3158 = vmatpush1.msra.mxu0 0.0
        %3159 = vmatprep.subr.mxu0 0.0
        %3160 = vmatpush1.msra.mxu0 0.0
        %3161 = vmatprep.subr.mxu0 0.0
        %3162 = vmatpush1.msra.mxu0 0.0
        %3163 = vmatprep.subr.mxu0 0.0
        %3164 = vmatpush1.msra.mxu0 0.0
        %3165 = vmatprep.subr.mxu0 0.0
        %3166 = vmatpush1.msra.mxu0 0.0
        %3167 = vmatprep.subr.mxu0 0.0
        %3168 = vmatpush1.msra.mxu0 0.0
        %3169 = vmatprep.subr.mxu0 0.0
        %3170 = vmatpush1.msra.mxu0 0.0
        %3171 = vmatprep.mubr.f32.mxu0 0.0
        %3172 = vmatmul.mubr.f32.gmra.mrb[0].mxu0 %v3025
        %v3173 = vpop.f32.mrb[0].mxu0
        %v3174 = vadd.f32 0.0, %v3173
        %v3175 = vpop.f32.mrb[0].mxu0
        %3176 = vmatprep.mubr.f32.mxu0 0.0
        %3177 = vmatmul.mubr.f32.gmra.mrb[0].mxu0 %v3028
        %v3178 = vpop.f32.mrb[0].mxu0
        %v3179 = vadd.f32 0.0, %v3178
        %v3180 = vpop.f32.mrb[0].mxu0
        %3181 = vdwg.mxu0
        %v3182 = vadd.f32 %v2997, %v3097
        %v3183 = vadd.f32 %v2998, %v3099
        %v3184 = vadd.f32 %v2999, %v3174
        %v3185 = vadd.f32 %v3000, %v3103
        %v3186 = vadd.f32 %v3001, %v3105
        %v3187 = vadd.f32 %v3002, %v3179
        %s3188 = scalar_lea.vmem %s4, 112
        %v3189 = vld [vmem:[%s3188] sm:$0xff]
        %v3190 = vld [vmem:[%s3188 + $0x8] sm:$0xff]
        %3191 = vrot.lane.b32.xlu0 %v1917, 110
        %v3192 = vpop.permute.xlu0 %3191
        %3193 = vrot.lane.b32.xlu0 %v1920, 110
        %v3194 = vpop.permute.xlu0 %3193
        %3195 = vrot.lane.b32.xlu0 %v1918, 110
        %v3196 = vpop.permute.xlu0 %3195
        %3197 = vrot.lane.b32.xlu0 %v1921, 110
        %v3198 = vpop.permute.xlu0 %3197
        %3199 = vrot.lane.b32.xlu0 %v1919, 110
        %v3200 = vpop.permute.xlu0 %3199
        %3201 = vrot.lane.b32.xlu0 %v1922, 110
        %v3202 = vpop.permute.xlu0 %3201
        %v3203 = vsel %vm1482, %v3196, %v3200
        %v3204 = vsel %vm1482, %v3198, %v3202
        %v3205 = vsel %vm1482, %v3192, %v3196
        %v3206 = vsel %vm1482, %v3194, %v3198
        %v3207 = vsel %vm1482, %v3200, %v3192
        %v3208 = vsel %vm1482, %v3202, %v3194
        %v3210 = vsel %vm1964, %v3189, 0
        %v3213 = vsel %vm1964, %v3190, 0
        %3215 = vmatprep.subr.mxu0 %v3203
        %3216 = vmatpush1.msra.mxu0 %v3205
        %3217 = vmatprep.subr.mxu0 %v3204
        %3218 = vmatpush1.msra.mxu0 %v3206
        %3219 = vmatprep.subr.mxu0 0.0
        %3220 = vmatpush1.msra.mxu0 0.0
        %3221 = vmatprep.subr.mxu0 0.0
        %3222 = vmatpush1.msra.mxu0 0.0
        %3223 = vmatprep.subr.mxu0 0.0
        %3224 = vmatpush1.msra.mxu0 0.0
        %3225 = vmatprep.subr.mxu0 0.0
        %3226 = vmatpush1.msra.mxu0 0.0
        %3227 = vmatprep.subr.mxu0 0.0
        %3228 = vmatpush1.msra.mxu0 0.0
        %3229 = vmatprep.subr.mxu0 0.0
        %3230 = vmatpush1.msra.mxu0 0.0
        %3231 = vmatprep.subr.mxu0 0.0
        %3232 = vmatpush1.msra.mxu0 0.0
        %3233 = vmatprep.subr.mxu0 0.0
        %3234 = vmatpush1.msra.mxu0 0.0
        %3235 = vmatprep.subr.mxu0 0.0
        %3236 = vmatpush1.msra.mxu0 0.0
        %3237 = vmatprep.subr.mxu0 0.0
        %3238 = vmatpush1.msra.mxu0 0.0
        %3239 = vmatprep.subr.mxu0 0.0
        %3240 = vmatpush1.msra.mxu0 0.0
        %3241 = vmatprep.subr.mxu0 0.0
        %3242 = vmatpush1.msra.mxu0 0.0
        %3243 = vmatprep.subr.mxu0 0.0
        %3244 = vmatpush1.msra.mxu0 0.0
        %3245 = vmatprep.subr.mxu0 0.0
        %3246 = vmatpush1.msra.mxu0 0.0
        %3247 = vmatprep.subr.mxu0 0.0
        %3248 = vmatpush1.msra.mxu0 0.0
        %3249 = vmatprep.subr.mxu0 0.0
        %3250 = vmatpush1.msra.mxu0 0.0
        %3251 = vmatprep.subr.mxu0 0.0
        %3252 = vmatpush1.msra.mxu0 0.0
        %3253 = vmatprep.subr.mxu0 0.0
        %3254 = vmatpush1.msra.mxu0 0.0
        %3255 = vmatprep.subr.mxu0 0.0
        %3256 = vmatpush1.msra.mxu0 0.0
        %3257 = vmatprep.subr.mxu0 0.0
        %3258 = vmatpush1.msra.mxu0 0.0
        %3259 = vmatprep.subr.mxu0 0.0
        %3260 = vmatpush1.msra.mxu0 0.0
        %3261 = vmatprep.subr.mxu0 0.0
        %3262 = vmatpush1.msra.mxu0 0.0
        %3263 = vmatprep.subr.mxu0 0.0
        %3264 = vmatpush1.msra.mxu0 0.0
        %3265 = vmatprep.subr.mxu0 0.0
        %3266 = vmatpush1.msra.mxu0 0.0
        %3267 = vmatprep.subr.mxu0 0.0
        %3268 = vmatpush1.msra.mxu0 0.0
        %3269 = vmatprep.subr.mxu0 0.0
        %3270 = vmatpush1.msra.mxu0 0.0
        %3271 = vmatprep.subr.mxu0 0.0
        %3272 = vmatpush1.msra.mxu0 0.0
        %3273 = vmatprep.subr.mxu0 0.0
        %3274 = vmatpush1.msra.mxu0 0.0
        %3275 = vmatprep.subr.mxu0 0.0
        %3276 = vmatpush1.msra.mxu0 0.0
        %3277 = vmatprep.subr.mxu0 0.0
        %3278 = vmatpush1.msra.mxu0 0.0
        %3279 = vmatprep.mubr.f32.mxu0 0.0
        %3280 = vmatmul.mubr.f32.gmra.mrb[0].mxu0 %v3210
        %v3281 = vpop.f32.mrb[0].mxu0
        %v3282 = vadd.f32 0.0, %v3281
        %v3283 = vpop.f32.mrb[0].mxu0
        %v3284 = vadd.f32 0.0, %v3283
        %3285 = vmatprep.mubr.f32.mxu0 0.0
        %3286 = vmatmul.mubr.f32.gmra.mrb[0].mxu0 %v3213
        %v3287 = vpop.f32.mrb[0].mxu0
        %v3288 = vadd.f32 0.0, %v3287
        %v3289 = vpop.f32.mrb[0].mxu0
        %v3290 = vadd.f32 0.0, %v3289
        %3291 = vdwg.mxu0
        %3292 = vmatprep.subr.mxu0 0.0
        %3293 = vmatpush1.msra.mxu0 %v3207
        %3294 = vmatprep.subr.mxu0 0.0
        %3295 = vmatpush1.msra.mxu0 %v3208
        %3296 = vmatprep.subr.mxu0 0.0
        %3297 = vmatpush1.msra.mxu0 0.0
        %3298 = vmatprep.subr.mxu0 0.0
        %3299 = vmatpush1.msra.mxu0 0.0
        %3300 = vmatprep.subr.mxu0 0.0
        %3301 = vmatpush1.msra.mxu0 0.0
        %3302 = vmatprep.subr.mxu0 0.0
        %3303 = vmatpush1.msra.mxu0 0.0
        %3304 = vmatprep.subr.mxu0 0.0
        %3305 = vmatpush1.msra.mxu0 0.0
        %3306 = vmatprep.subr.mxu0 0.0
        %3307 = vmatpush1.msra.mxu0 0.0
        %3308 = vmatprep.subr.mxu0 0.0
        %3309 = vmatpush1.msra.mxu0 0.0
        %3310 = vmatprep.subr.mxu0 0.0
        %3311 = vmatpush1.msra.mxu0 0.0
        %3312 = vmatprep.subr.mxu0 0.0
        %3313 = vmatpush1.msra.mxu0 0.0
        %3314 = vmatprep.subr.mxu0 0.0
        %3315 = vmatpush1.msra.mxu0 0.0
        %3316 = vmatprep.subr.mxu0 0.0
        %3317 = vmatpush1.msra.mxu0 0.0
        %3318 = vmatprep.subr.mxu0 0.0
        %3319 = vmatpush1.msra.mxu0 0.0
        %3320 = vmatprep.subr.mxu0 0.0
        %3321 = vmatpush1.msra.mxu0 0.0
        %3322 = vmatprep.subr.mxu0 0.0
        %3323 = vmatpush1.msra.mxu0 0.0
        %3324 = vmatprep.subr.mxu0 0.0
        %3325 = vmatpush1.msra.mxu0 0.0
        %3326 = vmatprep.subr.mxu0 0.0
        %3327 = vmatpush1.msra.mxu0 0.0
        %3328 = vmatprep.subr.mxu0 0.0
        %3329 = vmatpush1.msra.mxu0 0.0
        %3330 = vmatprep.subr.mxu0 0.0
        %3331 = vmatpush1.msra.mxu0 0.0
        %3332 = vmatprep.subr.mxu0 0.0
        %3333 = vmatpush1.msra.mxu0 0.0
        %3334 = vmatprep.subr.mxu0 0.0
        %3335 = vmatpush1.msra.mxu0 0.0
        %3336 = vmatprep.subr.mxu0 0.0
        %3337 = vmatpush1.msra.mxu0 0.0
        %3338 = vmatprep.subr.mxu0 0.0
        %3339 = vmatpush1.msra.mxu0 0.0
        %3340 = vmatprep.subr.mxu0 0.0
        %3341 = vmatpush1.msra.mxu0 0.0
        %3342 = vmatprep.subr.mxu0 0.0
        %3343 = vmatpush1.msra.mxu0 0.0
        %3344 = vmatprep.subr.mxu0 0.0
        %3345 = vmatpush1.msra.mxu0 0.0
        %3346 = vmatprep.subr.mxu0 0.0
        %3347 = vmatpush1.msra.mxu0 0.0
        %3348 = vmatprep.subr.mxu0 0.0
        %3349 = vmatpush1.msra.mxu0 0.0
        %3350 = vmatprep.subr.mxu0 0.0
        %3351 = vmatpush1.msra.mxu0 0.0
        %3352 = vmatprep.subr.mxu0 0.0
        %3353 = vmatpush1.msra.mxu0 0.0
        %3354 = vmatprep.subr.mxu0 0.0
        %3355 = vmatpush1.msra.mxu0 0.0
        %3356 = vmatprep.mubr.f32.mxu0 0.0
        %3357 = vmatmul.mubr.f32.gmra.mrb[0].mxu0 %v3210
        %v3358 = vpop.f32.mrb[0].mxu0
        %v3359 = vadd.f32 0.0, %v3358
        %v3360 = vpop.f32.mrb[0].mxu0
        %3361 = vmatprep.mubr.f32.mxu0 0.0
        %3362 = vmatmul.mubr.f32.gmra.mrb[0].mxu0 %v3213
        %v3363 = vpop.f32.mrb[0].mxu0
        %v3364 = vadd.f32 0.0, %v3363
        %v3365 = vpop.f32.mrb[0].mxu0
        %3366 = vdwg.mxu0
        %v3367 = vadd.f32 %v3182, %v3282
        %v3368 = vadd.f32 %v3183, %v3284
        %v3369 = vadd.f32 %v3184, %v3359
        %v3370 = vadd.f32 %v3185, %v3288
        %v3371 = vadd.f32 %v3186, %v3290
        %v3372 = vadd.f32 %v3187, %v3364
        %s3373 = scalar_lea.vmem %s4, 128
        %v3374 = vld [vmem:[%s3373] sm:$0xff]
        %v3375 = vld [vmem:[%s3373 + $0x8] sm:$0xff]
        %3376 = vrot.lane.b32.xlu0 %v1917, 109
        %v3377 = vpop.permute.xlu0 %3376
        %3378 = vrot.lane.b32.xlu0 %v1920, 109
        %v3379 = vpop.permute.xlu0 %3378
        %3380 = vrot.lane.b32.xlu0 %v1918, 109
        %v3381 = vpop.permute.xlu0 %3380
        %3382 = vrot.lane.b32.xlu0 %v1921, 109
        %v3383 = vpop.permute.xlu0 %3382
        %3384 = vrot.lane.b32.xlu0 %v1919, 109
        %v3385 = vpop.permute.xlu0 %3384
        %3386 = vrot.lane.b32.xlu0 %v1922, 109
        %v3387 = vpop.permute.xlu0 %3386
        %v3388 = vsel %vm1659, %v3381, %v3385
        %v3389 = vsel %vm1659, %v3383, %v3387
        %v3390 = vsel %vm1659, %v3377, %v3381
        %v3391 = vsel %vm1659, %v3379, %v3383
        %v3392 = vsel %vm1659, %v3385, %v3377
        %v3393 = vsel %vm1659, %v3387, %v3379
        %v3395 = vsel %vm1964, %v3374, 0
        %v3398 = vsel %vm1964, %v3375, 0
        %3400 = vmatprep.subr.mxu0 %v3388
        %3401 = vmatpush1.msra.mxu0 %v3390
        %3402 = vmatprep.subr.mxu0 %v3389
        %3403 = vmatpush1.msra.mxu0 %v3391
        %3404 = vmatprep.subr.mxu0 0.0
        %3405 = vmatpush1.msra.mxu0 0.0
        %3406 = vmatprep.subr.mxu0 0.0
        %3407 = vmatpush1.msra.mxu0 0.0
        %3408 = vmatprep.subr.mxu0 0.0
        %3409 = vmatpush1.msra.mxu0 0.0
        %3410 = vmatprep.subr.mxu0 0.0
        %3411 = vmatpush1.msra.mxu0 0.0
        %3412 = vmatprep.subr.mxu0 0.0
        %3413 = vmatpush1.msra.mxu0 0.0
        %3414 = vmatprep.subr.mxu0 0.0
        %3415 = vmatpush1.msra.mxu0 0.0
        %3416 = vmatprep.subr.mxu0 0.0
        %3417 = vmatpush1.msra.mxu0 0.0
        %3418 = vmatprep.subr.mxu0 0.0
        %3419 = vmatpush1.msra.mxu0 0.0
        %3420 = vmatprep.subr.mxu0 0.0
        %3421 = vmatpush1.msra.mxu0 0.0
        %3422 = vmatprep.subr.mxu0 0.0
        %3423 = vmatpush1.msra.mxu0 0.0
        %3424 = vmatprep.subr.mxu0 0.0
        %3425 = vmatpush1.msra.mxu0 0.0
        %3426 = vmatprep.subr.mxu0 0.0
        %3427 = vmatpush1.msra.mxu0 0.0
        %3428 = vmatprep.subr.mxu0 0.0
        %3429 = vmatpush1.msra.mxu0 0.0
        %3430 = vmatprep.subr.mxu0 0.0
        %3431 = vmatpush1.msra.mxu0 0.0
        %3432 = vmatprep.subr.mxu0 0.0
        %3433 = vmatpush1.msra.mxu0 0.0
        %3434 = vmatprep.subr.mxu0 0.0
        %3435 = vmatpush1.msra.mxu0 0.0
        %3436 = vmatprep.subr.mxu0 0.0
        %3437 = vmatpush1.msra.mxu0 0.0
        %3438 = vmatprep.subr.mxu0 0.0
        %3439 = vmatpush1.msra.mxu0 0.0
        %3440 = vmatprep.subr.mxu0 0.0
        %3441 = vmatpush1.msra.mxu0 0.0
        %3442 = vmatprep.subr.mxu0 0.0
        %3443 = vmatpush1.msra.mxu0 0.0
        %3444 = vmatprep.subr.mxu0 0.0
        %3445 = vmatpush1.msra.mxu0 0.0
        %3446 = vmatprep.subr.mxu0 0.0
        %3447 = vmatpush1.msra.mxu0 0.0
        %3448 = vmatprep.subr.mxu0 0.0
        %3449 = vmatpush1.msra.mxu0 0.0
        %3450 = vmatprep.subr.mxu0 0.0
        %3451 = vmatpush1.msra.mxu0 0.0
        %3452 = vmatprep.subr.mxu0 0.0
        %3453 = vmatpush1.msra.mxu0 0.0
        %3454 = vmatprep.subr.mxu0 0.0
        %3455 = vmatpush1.msra.mxu0 0.0
        %3456 = vmatprep.subr.mxu0 0.0
        %3457 = vmatpush1.msra.mxu0 0.0
        %3458 = vmatprep.subr.mxu0 0.0
        %3459 = vmatpush1.msra.mxu0 0.0
        %3460 = vmatprep.subr.mxu0 0.0
        %3461 = vmatpush1.msra.mxu0 0.0
        %3462 = vmatprep.subr.mxu0 0.0
        %3463 = vmatpush1.msra.mxu0 0.0
        %3464 = vmatprep.mubr.f32.mxu0 0.0
        %3465 = vmatmul.mubr.f32.gmra.mrb[0].mxu0 %v3395
        %v3466 = vpop.f32.mrb[0].mxu0
        %v3467 = vadd.f32 0.0, %v3466
        %v3468 = vpop.f32.mrb[0].mxu0
        %v3469 = vadd.f32 0.0, %v3468
        %3470 = vmatprep.mubr.f32.mxu0 0.0
        %3471 = vmatmul.mubr.f32.gmra.mrb[0].mxu0 %v3398
        %v3472 = vpop.f32.mrb[0].mxu0
        %v3473 = vadd.f32 0.0, %v3472
        %v3474 = vpop.f32.mrb[0].mxu0
        %v3475 = vadd.f32 0.0, %v3474
        %3476 = vdwg.mxu0
        %3477 = vmatprep.subr.mxu0 0.0
        %3478 = vmatpush1.msra.mxu0 %v3392
        %3479 = vmatprep.subr.mxu0 0.0
        %3480 = vmatpush1.msra.mxu0 %v3393
        %3481 = vmatprep.subr.mxu0 0.0
        %3482 = vmatpush1.msra.mxu0 0.0
        %3483 = vmatprep.subr.mxu0 0.0
        %3484 = vmatpush1.msra.mxu0 0.0
        %3485 = vmatprep.subr.mxu0 0.0
        %3486 = vmatpush1.msra.mxu0 0.0
        %3487 = vmatprep.subr.mxu0 0.0
        %3488 = vmatpush1.msra.mxu0 0.0
        %3489 = vmatprep.subr.mxu0 0.0
        %3490 = vmatpush1.msra.mxu0 0.0
        %3491 = vmatprep.subr.mxu0 0.0
        %3492 = vmatpush1.msra.mxu0 0.0
        %3493 = vmatprep.subr.mxu0 0.0
        %3494 = vmatpush1.msra.mxu0 0.0
        %3495 = vmatprep.subr.mxu0 0.0
        %3496 = vmatpush1.msra.mxu0 0.0
        %3497 = vmatprep.subr.mxu0 0.0
        %3498 = vmatpush1.msra.mxu0 0.0
        %3499 = vmatprep.subr.mxu0 0.0
        %3500 = vmatpush1.msra.mxu0 0.0
        %3501 = vmatprep.subr.mxu0 0.0
        %3502 = vmatpush1.msra.mxu0 0.0
        %3503 = vmatprep.subr.mxu0 0.0
        %3504 = vmatpush1.msra.mxu0 0.0
        %3505 = vmatprep.subr.mxu0 0.0
        %3506 = vmatpush1.msra.mxu0 0.0
        %3507 = vmatprep.subr.mxu0 0.0
        %3508 = vmatpush1.msra.mxu0 0.0
        %3509 = vmatprep.subr.mxu0 0.0
        %3510 = vmatpush1.msra.mxu0 0.0
        %3511 = vmatprep.subr.mxu0 0.0
        %3512 = vmatpush1.msra.mxu0 0.0
        %3513 = vmatprep.subr.mxu0 0.0
        %3514 = vmatpush1.msra.mxu0 0.0
        %3515 = vmatprep.subr.mxu0 0.0
        %3516 = vmatpush1.msra.mxu0 0.0
        %3517 = vmatprep.subr.mxu0 0.0
        %3518 = vmatpush1.msra.mxu0 0.0
        %3519 = vmatprep.subr.mxu0 0.0
        %3520 = vmatpush1.msra.mxu0 0.0
        %3521 = vmatprep.subr.mxu0 0.0
        %3522 = vmatpush1.msra.mxu0 0.0
        %3523 = vmatprep.subr.mxu0 0.0
        %3524 = vmatpush1.msra.mxu0 0.0
        %3525 = vmatprep.subr.mxu0 0.0
        %3526 = vmatpush1.msra.mxu0 0.0
        %3527 = vmatprep.subr.mxu0 0.0
        %3528 = vmatpush1.msra.mxu0 0.0
        %3529 = vmatprep.subr.mxu0 0.0
        %3530 = vmatpush1.msra.mxu0 0.0
        %3531 = vmatprep.subr.mxu0 0.0
        %3532 = vmatpush1.msra.mxu0 0.0
        %3533 = vmatprep.subr.mxu0 0.0
        %3534 = vmatpush1.msra.mxu0 0.0
        %3535 = vmatprep.subr.mxu0 0.0
        %3536 = vmatpush1.msra.mxu0 0.0
        %3537 = vmatprep.subr.mxu0 0.0
        %3538 = vmatpush1.msra.mxu0 0.0
        %3539 = vmatprep.subr.mxu0 0.0
        %3540 = vmatpush1.msra.mxu0 0.0
        %3541 = vmatprep.mubr.f32.mxu0 0.0
        %3542 = vmatmul.mubr.f32.gmra.mrb[0].mxu0 %v3395
        %v3543 = vpop.f32.mrb[0].mxu0
        %v3544 = vadd.f32 0.0, %v3543
        %v3545 = vpop.f32.mrb[0].mxu0
        %3546 = vmatprep.mubr.f32.mxu0 0.0
        %3547 = vmatmul.mubr.f32.gmra.mrb[0].mxu0 %v3398
        %v3548 = vpop.f32.mrb[0].mxu0
        %v3549 = vadd.f32 0.0, %v3548
        %v3550 = vpop.f32.mrb[0].mxu0
        %3551 = vdwg.mxu0
        %v3552 = vadd.f32 %v3367, %v3467
        %v3553 = vadd.f32 %v3368, %v3469
        %v3554 = vadd.f32 %v3369, %v3544
        %v3555 = vadd.f32 %v3370, %v3473
        %v3556 = vadd.f32 %v3371, %v3475
        %v3557 = vadd.f32 %v3372, %v3549
        %v3558 = vld [vmem:[%s5] sm:$0xff]
        %v3559 = vld [vmem:[%s5 + $0x8] sm:$0xff]
        %3561 = vset.pattern.permute.xlu0 0
        %3562 = vperm.xlu0 %3561, %v3558
        %v3563 = vpop.permute.xlu0 %3562
        %3566 = vset.pattern.permute.xlu0 0
        %3567 = vperm.xlu0 %3566, %v3559
        %v3568 = vpop.permute.xlu0 %3567
        %v3570 = vadd.f32 %v3552, %v3563
        %v3571 = vadd.f32 %v3553, %v3563
        %v3572 = vadd.f32 %v3554, %v3563
        %v3573 = vadd.f32 %v3555, %v3568
        %v3574 = vadd.f32 %v3556, %v3568
        %v3575 = vadd.f32 %v3557, %v3568
        %vm3576 = vcmp.ge.f32.partialorder %v3570, 0.0
        %vm3577 = vcmp.ge.f32.partialorder %v3571, 0.0
        %vm3578 = vcmp.ge.f32.partialorder %v3572, 0.0
        %vm3579 = vcmp.ge.f32.partialorder %v3573, 0.0
        %vm3580 = vcmp.ge.f32.partialorder %v3574, 0.0
        %vm3581 = vcmp.ge.f32.partialorder %v3575, 0.0
        %v3582 = vmul.f32 %v3570, 0.01
        %v3583 = vmul.f32 %v3571, 0.01
        %v3584 = vmul.f32 %v3572, 0.01
        %v3585 = vmul.f32 %v3573, 0.01
        %v3586 = vmul.f32 %v3574, 0.01
        %v3587 = vmul.f32 %v3575, 0.01
        %v3588 = vsel %vm3576, %v3570, %v3582
        %v3589 = vsel %vm3577, %v3571, %v3583
        %v3590 = vsel %vm3578, %v3572, %v3584
        %v3591 = vsel %vm3579, %v3573, %v3585
        %v3592 = vsel %vm3580, %v3574, %v3586
        %v3593 = vsel %vm3581, %v3575, %v3587
        %s3594 = scalar_lea.vmem %s5, 16
        %v3595 = vld [vmem:[%s3594] sm:$0xff]
        %v3596 = vld [vmem:[%s3594 + $0x8] sm:$0xff]
        %3598 = vset.pattern.permute.xlu0 0
        %3599 = vperm.xlu0 %3598, %v3595
        %v3600 = vpop.permute.xlu0 %3599
        %3603 = vset.pattern.permute.xlu0 0
        %3604 = vperm.xlu0 %3603, %v3596
        %v3605 = vpop.permute.xlu0 %3604
        %v3607 = vmul.f32 %v3588, %v3600
        %v3608 = vmul.f32 %v3589, %v3600
        %v3609 = vmul.f32 %v3590, %v3600
        %v3610 = vmul.f32 %v3591, %v3605
        %v3611 = vmul.f32 %v3592, %v3605
        %v3612 = vmul.f32 %v3593, %v3605
        %s3613 = scalar_lea.vmem %s5, 32
        %v3614 = vld [vmem:[%s3613] sm:$0xff]
        %v3615 = vld [vmem:[%s3613 + $0x8] sm:$0xff]
        %3617 = vset.pattern.permute.xlu0 0
        %3618 = vperm.xlu0 %3617, %v3614
        %v3619 = vpop.permute.xlu0 %3618
        %3622 = vset.pattern.permute.xlu0 0
        %3623 = vperm.xlu0 %3622, %v3615
        %v3624 = vpop.permute.xlu0 %3623
        %v3626 = vadd.f32 %v3607, %v3619
        %v3627 = vadd.f32 %v3608, %v3619
        %v3628 = vadd.f32 %v3609, %v3619
        %v3629 = vadd.f32 %v3610, %v3624
        %v3630 = vadd.f32 %v3611, %v3624
        %v3631 = vadd.f32 %v3612, %v3624
        %3632 = vst [vmem:[%s244] sm:$0xff] %v3626
        %3633 = vst [vmem:[%s244 + $0x8] sm:$0xff] %v3627
        %3634 = vst [vmem:[%s244 + $0x10] sm:$0xff] %v3628
        %3635 = vst [vmem:[%s244 + $0x18] sm:$0xff] %v3629
        %3636 = vst [vmem:[%s244 + $0x20] sm:$0xff] %v3630
        %3637 = vst [vmem:[%s244 + $0x28] sm:$0xff] %v3631
        %s3638 = sand.u32 %s159, 1
        %s3639 = scalar_lea.sflag [#allocation3], %s3638
        %s3640 = sand.u32 %s159, 1
        %s3641 = smul.addr %s3640, 48
        %s3642 = scalar_lea.vmem [#allocation2], %s3641
        // Predicated region
        $region45: #{tpu_custom_call.1} parent=43 // pred_check
          %p3643 = pneg %p169
        $region46: #{tpu_custom_call.1} parent=43 // pred_check_branch
          %3645 = sbr.rel (%p3643) target = $region48
        $region47: #{tpu_custom_call.1} parent=43 // pred_region
          %s3647 = ssub.s32 768, 768
          %3648 = vsyncadd %s3639, %s3647
          %s3649 = smul.addr %s20, 6
          %s3650 = smul.addr %s3649, 128
          %s3651 = scalar_lea.hbm %s6, %s3650
          %s3652 = sshll.u32 %s3642, 4
          %s3653 = int_to_ptr.vmem [resolvable:$true] %s3652
          %3658 = dma.vmem_to_hbm [thread:$0]  %s3653, 768, %s3651, %s3639, 384, 384, 24
        $region48: #{tpu_custom_call.1} parent=43 // pred_fallthru
          _
      $region44: #{tpu_custom_call.1} parent=5 // pred_fallthru
        _
      %p3659 = scmp.le.s32.totalorder 2, %s15
      // Predicated region
      $region49: #{tpu_custom_call.1} parent=5 // pred_check
        %p3660 = pneg %p3659
      $region50: #{tpu_custom_call.1} parent=5 // pred_check_branch
        %3662 = sbr.rel (%p3660) target = $region52
      $region51: #{tpu_custom_call.1} parent=5 // pred_region
        %s3663 = ssub.s32 %s15, 2
        // Predicated region
        $region53: #{tpu_custom_call.1} parent=51 // pred_check
          %p3664 = pneg %p175
        $region54: #{tpu_custom_call.1} parent=51 // pred_check_branch
          %3666 = sbr.rel (%p3664) target = $region56
        $region55: #{tpu_custom_call.1} parent=51 // pred_region
          %s3667 = sand.u32 %s160, 1
          %s3668 = scalar_lea.sflag [#allocation3], %s3667
          %s3669 = sand.u32 %s160, 1
          %s3670 = smul.addr %s3669, 48
          %s3671 = scalar_lea.vmem [#allocation2], %s3670
          %3672 = dma.done %s3668, 768
        $region56: #{tpu_custom_call.1} parent=51 // pred_fallthru
          _
      $region52: #{tpu_custom_call.1} parent=5 // pred_fallthru
        _
    $region6: #{tpu_custom_call.1} parent=1 // loop_footer
      %s19 = sadd.s32 1, %s15
    $region7: #{tpu_custom_call.1} parent=1 // loop_footer_branch
      %14 = sbr.rel target = $region3
    $region8: #{tpu_custom_call.1} parent=1 // loop_exit
      _
    %3673 = vsyncpa [#allocation3], 1
    %s3674 = scalar_lea.sflag [#allocation3], 1
    %3675 = vsyncpa %s3674, 1

</llo_original>
